<compile_context>
chip_gen: v5e
topology: v5e:2x2
jax: 0.10.0
libtpu: 0.0.40
codegen_flags: <defaults>
</compile_context>

<pallas_src>
import functools

import numpy as np
import jax
import jax.numpy as jnp
from jax.experimental import pallas as pl
from jax.experimental.pallas import tpu as pltpu

# ---- module hyper-parameters (EuclideanCodebook.__init__) -------------------
DIM = 32                 # dim
CODEBOOK_SIZE = 64       # codebook_size
NUM_CODEBOOKS = 1        # num_codebooks
KMEANS_LLOYD_ITERS = 10  # kmeans() hard-codes num_iters = 10

_LANE = 128              # TPU lane width
ROW_TILE_MAX = 1024      # max rows of `flatten` per grid step
_BIG = 1e30              # ||e||^2 sentinel for padded codebook rows


def _round_up(x, m):
    return ((x + m - 1) // m) * m


def _choose_row_tile(n):
    """Row tile: multiple of 128 (lane-dense idx rows), keeps >= 2 grid steps
    on the row axis when the data allows it (v7x megacore), capped at 1024."""
    npad128 = _round_up(max(n, 1), _LANE)
    half = (npad128 // 2) // _LANE * _LANE
    return min(ROW_TILE_MAX, max(_LANE, half))


# ---- Pallas kernel: forward hot path -----------------------------------------
def _vq_forward_kernel(x_ref, e_ref, esq_ref, dist_ref, idx_ref, q_ref):
    x = x_ref[0]                         # (TN, D)    f32
    e = e_ref[0]                         # (Cpad, D)  f32
    e_sq = esq_ref[...]                  # (1, Cpad)  f32  (padded rows = 1e30)
    tn = x.shape[0]
    cpad = e.shape[0]

    dn = (((1,), (1,)), ((), ()))        # contract the feature dim of both operands
    xe = jax.lax.dot_general(x, e, dn, precision=jax.lax.Precision.HIGHEST,
                             preferred_element_type=jnp.float32)              # (TN, Cpad)
    x_sq = jnp.sum(x * x, axis=-1, keepdims=True)                             # (TN, 1)
    d2 = jnp.maximum(x_sq + e_sq - 2.0 * xe, 0.0)                             # (TN, Cpad)

    # argmin on squared distance (sqrt is monotonic -> not on the critical path)
    m = jnp.min(d2, axis=-1, keepdims=True)
    col = jax.lax.broadcasted_iota(jnp.int32, (tn, cpad), 1)
    idx = jnp.min(jnp.where(d2 == m, col, cpad), axis=-1, keepdims=True)      # (TN, 1) int32
    onehot = (col == idx).astype(jnp.float32)                                 # get_ind(): hard one-hot

    # quantized rows: exact one-hot gather realised as an MXU matmul
    q_ref[0] = jnp.dot(onehot, e, precision=jax.lax.Precision.HIGHEST,
                       preferred_element_type=jnp.float32)                    # (TN, D)

    # lane-dense row of indices: iota(8, Cpad) @ onehot^T -> (8, TN); keep row 0
    col8 = jax.lax.broadcasted_iota(jnp.int32, (8, cpad), 1).astype(jnp.float32)
    idx_rows = jax.lax.dot_general(col8, onehot, (((1,), (1,)), ((), ())),
                                   preferred_element_type=jnp.float32)        # (8, TN), exact ints
    idx_ref[...] = idx_rows[0:1, :].astype(jnp.int32)                         # (1, TN)

    # dist output last: the EUP sqrt overlaps with the stores above
    dist_ref[0] = -jnp.sqrt(d2)


def vq_forward(flatten, embed):
    """flatten: (h, N, D) f32; embed: (h, C, D) f32
       -> dist (h, N, C) f32, idx (h, N) int32, quant (h, N, D) f32."""
    h, n, d = flatten.shape
    hc, c, dc = embed.shape
    assert dc == d and hc == h == 1, "kernel assumes num_codebooks == 1"

    tn = _choose_row_tile(n)
    npad = _round_up(n, tn)
    cpad = _round_up(max(c, _LANE), _LANE)

    x = flatten if npad == n else jnp.pad(flatten, ((0, 0), (0, npad - n), (0, 0)))
    e_sq = jnp.sum(embed * embed, axis=-1)                       # (h, C), precomputed once
    if cpad != c:
        e_pad = jnp.pad(embed, ((0, 0), (0, cpad - c), (0, 0)))
        e_sq = jnp.pad(e_sq, ((0, 0), (0, cpad - c)), constant_values=_BIG)
    else:
        e_pad = embed

    grid = (h, npad // tn)
    dist, idx, quant = pl.pallas_call(
        _vq_forward_kernel,
        out_shape=(
            jax.ShapeDtypeStruct((h, npad, cpad), jnp.float32),  # dist (lane-dense C)
            jax.ShapeDtypeStruct((h, npad), jnp.int32),          # argmin index (lane-dense rows)
            jax.ShapeDtypeStruct((h, npad, d), jnp.float32),     # quantized rows
        ),
        grid_spec=pltpu.PrefetchScalarGridSpec(
            num_scalar_prefetch=0,
            grid=grid,
            in_specs=[
                pl.BlockSpec((1, tn, d), lambda hh, ii: (hh, ii, 0)),
                pl.BlockSpec((1, cpad, d), lambda hh, ii: (hh, 0, 0)),   # loop-invariant
                pl.BlockSpec((1, cpad), lambda hh, ii: (hh, 0)),         # loop-invariant
            ],
            out_specs=[
                pl.BlockSpec((1, tn, cpad), lambda hh, ii: (hh, ii, 0)),
                pl.BlockSpec((1, tn), lambda hh, ii: (hh, ii)),
                pl.BlockSpec((1, tn, d), lambda hh, ii: (hh, ii, 0)),
            ],
        ),
        compiler_params=pltpu.CompilerParams(
            dimension_semantics=("parallel", "parallel")),
    )(x, e_pad, e_sq)
    return dist[:, :n, :c], idx[:, :n], quant[:, :n, :]


# ---- Pallas kernel: k-means "labels + statistics" (Lloyd iterations) ---------
def _vq_stats_kernel(x_ref, e_ref, esq_ref, bins_ref, sums_ref, *, n_rows, mask_rows):
    @pl.when(pl.program_id(1) == 0)
    def _():
        bins_ref[...] = jnp.zeros_like(bins_ref)
        sums_ref[...] = jnp.zeros_like(sums_ref)

    x_bf = x_ref[0]                      # (TN, D)    bf16
    e_bf = e_ref[0]                      # (Cpad, D)  bf16
    e_sq = esq_ref[...]                  # (1, Cpad)  f32
    tn = x_bf.shape[0]
    cpad = e_bf.shape[0]

    dn = (((1,), (1,)), ((), ()))
    xe = jax.lax.dot_general(x_bf, e_bf, dn, preferred_element_type=jnp.float32)  # (TN, Cpad)
    # argmin_j ||x - e_j||^2 : the ||x||^2 term is constant per row -> dropped
    score = e_sq - 2.0 * xe                                                        # f32

    m = jnp.min(score, axis=-1, keepdims=True)
    col = jax.lax.broadcasted_iota(jnp.int32, (tn, cpad), 1)
    idx = jnp.min(jnp.where(score == m, col, cpad), axis=-1, keepdims=True)        # (TN, 1)
    onehot = (col == idx).astype(jnp.float32)
    if mask_rows:   # static: only when N was padded to a multiple of the tile
        row = pl.program_id(1) * tn + jax.lax.broadcasted_iota(jnp.int32, (tn, 1), 0)
        onehot = jnp.where(row < n_rows, onehot, 0.0)

    # batched_bincount: per-code counts
    bins_ref[...] += jnp.sum(onehot, axis=0, keepdims=True)                        # (1, Cpad)
    # scatter_add of samples into their code: onehot^T @ x on the MXU
    dn_t = (((0,), (0,)), ((), ()))
    sums_ref[0] += jax.lax.dot_general(onehot.astype(jnp.bfloat16), x_bf, dn_t,
                                       preferred_element_type=jnp.float32)         # (Cpad, D)


def _vq_stats_call(x_pad_bf16, embed, n_rows):
    """x_pad_bf16: (h, Npad, D) bf16; embed: (h, C, D) f32 -> bins (h, C), sums (h, C, D)."""
    h, npad, d = x_pad_bf16.shape
    hc, c, dc = embed.shape
    assert dc == d and hc == h == 1
    tn = _choose_row_tile(n_rows)
    assert npad == _round_up(n_rows, tn)
    cpad = _round_up(max(c, _LANE), _LANE)

    e_sq = jnp.sum(embed * embed, axis=-1)
    if cpad != c:
        e_pad = jnp.pad(embed, ((0, 0), (0, cpad - c), (0, 0)))
        e_sq = jnp.pad(e_sq, ((0, 0), (0, cpad - c)), constant_values=_BIG)
    else:
        e_pad = embed
    e_bf = e_pad.astype(jnp.bfloat16)

    grid = (h, npad // tn)
    kernel = functools.partial(_vq_stats_kernel, n_rows=n_rows,
                               mask_rows=(npad != n_rows))
    bins, sums = pl.pallas_call(
        kernel,
        out_shape=(
            jax.ShapeDtypeStruct((h, cpad), jnp.float32),
            jax.ShapeDtypeStruct((h, cpad, d), jnp.float32),
        ),
        grid_spec=pltpu.PrefetchScalarGridSpec(
            num_scalar_prefetch=0,
            grid=grid,
            in_specs=[
                pl.BlockSpec((1, tn, d), lambda hh, ii: (hh, ii, 0)),
                pl.BlockSpec((1, cpad, d), lambda hh, ii: (hh, 0, 0)),
                pl.BlockSpec((1, cpad), lambda hh, ii: (hh, 0)),
            ],
            out_specs=[
                pl.BlockSpec((1, cpad), lambda hh, ii: (hh, 0)),         # accumulator
                pl.BlockSpec((1, cpad, d), lambda hh, ii: (hh, 0, 0)),   # accumulator
            ],
        ),
        compiler_params=pltpu.CompilerParams(
            dimension_semantics=("parallel", "arbitrary")),
    )(x_pad_bf16, e_bf, e_sq)
    return bins[:, :c], sums[:, :c, :]


# ---- plain-JAX glue: kmeans codebook initialisation (init_embed_) ------------
def _cdist(a, b):
    a2 = jnp.sum(a * a, axis=-1, keepdims=True)
    b2 = jnp.sum(b * b, axis=-1, keepdims=True)
    ab = jnp.einsum('hnd,hkd->hnk', a, b)
    return jnp.sqrt(jnp.maximum(a2 + jnp.swapaxes(b2, -1, -2) - 2.0 * ab, 0.0))


def _kmeans_init(samples, num_clusters, num_iters):
    """Deterministic analogue of kmeans() used by init_embed_ (buffer setup)."""
    h, n, d = samples.shape
    means = jnp.zeros((h, num_clusters, d), jnp.float32)
    # TODO(synk): torch seeds means[:, 0] with torch.randint; deterministic pick of sample 0 here.
    means = means.at[:, 0].set(samples[:, 0])

    col = jnp.arange(num_clusters)[None, None, :]            # (1, 1, C)

    def seed_body(k, means):
        dists = _cdist(samples, means)                       # (h, N, C)
        dists = jnp.where(col < k, dists, jnp.inf)           # only the first k centroids exist
        min_d = jnp.min(dists, axis=-1)                      # (h, N)
        # TODO(synk): torch draws the next centroid via torch.multinomial(min_d / sum);
        # deterministic farthest-point (argmax of min_d) is used instead.
        nxt = jnp.argmax(min_d, axis=-1)                     # (h,)
        chosen = jnp.take_along_axis(
            samples, jnp.broadcast_to(nxt[:, None, None], (h, 1, d)), axis=1)
        return jax.lax.dynamic_update_slice(means, chosen, (0, k, 0))

    means = jax.lax.fori_loop(1, num_clusters, seed_body, means)

    # Lloyd iterations: nearest-code assignment + bin/sum statistics fused in
    # one Pallas call per iteration (no (N, C) one-hot / dist round trip to HBM).
    tn = _choose_row_tile(n)
    npad = _round_up(n, tn)
    x_pad = samples if npad == n else jnp.pad(samples, ((0, 0), (0, npad - n), (0, 0)))
    x_pad_bf = x_pad.astype(jnp.bfloat16)     # cast once; reused by all iterations

    def lloyd_body(_, carry):
        means, _bins = carry
        bins, sums = _vq_stats_call(x_pad_bf, means, n)      # (h, C), (h, C, D)
        zero = bins == 0
        denom = jnp.where(zero, 1.0, bins)
        new_means = sums / denom[..., None]
        means = jnp.where(zero[..., None], means, new_means)
        return (means, bins)

    means, bins = jax.lax.fori_loop(
        0, num_iters, lloyd_body,
        (means, jnp.zeros((h, num_clusters), jnp.float32)))
    return means, bins


# ---- forward ------------------------------------------------------------------
@jax.jit
def euclidean_codebook_forward(x):
    """Mirrors EuclideanCodebook.forward; returns
    (quantize, embed_ind, dist, embed, flatten, init_cb)."""
    x = x.astype(jnp.float32)
    if x.ndim < 4:                     # needs_codebook_dim
        x = x[None]                    # (1, b, n, d)
    h = x.shape[0]
    d = x.shape[-1]
    flatten = x.reshape(h, -1, d)      # (h, N, d)

    # init_embed_: kmeans-initialise the codebook buffers from the data
    embed, _cluster_size = _kmeans_init(flatten, CODEBOOK_SIZE, KMEANS_LLOYD_ITERS)
    init_cb = embed

    # hot path: distances, hard one-hot argmax, codebook lookup (Pallas kernel)
    dist, idx, quant = vq_forward(flatten, embed)

    embed_ind = idx.astype(jnp.float32)[None]   # (1, h, N): straight-through fwd value == index
    quantize = quant[None]                      # (1, h, N, d) == batched_embedding(embed_ind, embed)
    return quantize, embed_ind, dist, embed, flatten, init_cb


if __name__ == "__main__":
    key = jax.random.PRNGKey(0)
    # x: (batch=2, seq=64, dim=32) -> flatten N = 128 rows, codebook 64x32
    x = jax.random.normal(key, (2, 64, DIM), dtype=jnp.float32)

    outs = jax.block_until_ready(euclidean_codebook_forward(x))
    quantize, embed_ind, dist, embed, flatten, init_cb = outs

    # range checks mirroring the module's ValueError guards (host-side)
    if float(embed_ind.min()) < 0:
        raise ValueError("embed_ind contains negative values.")
    if float(embed_ind.max()) >= CODEBOOK_SIZE:
        raise ValueError("embed_ind contains out-of-range values.")

    N = x.shape[0] * x.shape[1]
    assert quantize.shape == (1, 1, N, DIM)
    assert embed_ind.shape == (1, 1, N)
    assert dist.shape == (1, N, CODEBOOK_SIZE)
    assert embed.shape == (NUM_CODEBOOKS, CODEBOOK_SIZE, DIM)
    assert flatten.shape == (1, N, DIM)

    # light numerical verification against a pure-numpy reference
    idxs = np.asarray(embed_ind[0, 0]).astype(np.int64)
    e_np = np.asarray(embed[0])
    f_np = np.asarray(flatten[0])

    np.testing.assert_allclose(np.asarray(quantize[0, 0]), e_np[idxs], rtol=1e-2, atol=1e-2)

    ref_dist = -np.sqrt(np.maximum(
        (f_np * f_np).sum(-1)[:, None] + (e_np * e_np).sum(-1)[None, :]
        - 2.0 * f_np @ e_np.T, 0.0))
    np.testing.assert_allclose(np.asarray(dist[0]), ref_dist, rtol=1e-3, atol=3e-2)

    # the chosen code is (numerically) the nearest one
    chosen = ref_dist[np.arange(N), idxs]
    np.testing.assert_allclose(chosen, ref_dist.max(-1), rtol=1e-3, atol=1e-3)

    print("KERNEL_OK")
</pallas_src>

<mosaic_0001>
module attributes {stable_mosaic.version = 11 : i64} {
  func.func @_vq_stats_kernel(%arg0: i32, %arg1: i32, %arg2: memref<1x128x32xbf16, #tpu.memory_space<vmem>>, %arg3: memref<1x128x32xbf16, #tpu.memory_space<vmem>>, %arg4: memref<1x128xf32, #tpu.memory_space<vmem>>, %arg5: memref<1x128xf32, #tpu.memory_space<vmem>>, %arg6: memref<1x128x32xf32, #tpu.memory_space<vmem>>) attributes {dimension_semantics = [#tpu.dimension_semantics<parallel>, #tpu.dimension_semantics<arbitrary>], iteration_bounds = array<i64: 1, 1>, scalar_prefetch = 0 : i64, scratch_operands = 0 : i64, tpu.core_type = #tpu.core_type<tc>, window_params = [{transform_indices = @transform_0, window_bounds = array<i64: 1, 128, 32>}, {transform_indices = @transform_1, window_bounds = array<i64: 1, 128, 32>}, {transform_indices = @transform_2, window_bounds = array<i64: 1, 128>}, {transform_indices = @transform_3, window_bounds = array<i64: 1, 128>}, {transform_indices = @transform_4, window_bounds = array<i64: 1, 128, 32>}]} {
    %c0_i32 = arith.constant 0 : i32
    %0 = arith.cmpi eq, %arg1, %c0_i32 : i32
    %1 = arith.extui %0 : i1 to i32
    %c0_i32_0 = arith.constant 0 : i32
    %2 = arith.cmpi ne, %1, %c0_i32_0 : i32
    scf.if %2 {
      %cst_23 = arith.constant 0.000000e+00 : f32
      %39 = vector.broadcast %cst_23 : f32 to vector<1x128xf32>
      %c0_24 = arith.constant 0 : index
      %c0_25 = arith.constant 0 : index
      %40 = vector.load %arg5[%c0_24, %c0_25] : memref<1x128xf32, #tpu.memory_space<vmem>>, vector<1x128xf32>
      tpu.vector_store %arg5[%c0_24, %c0_25], %39 {strides = array<i32>} : memref<1x128xf32, #tpu.memory_space<vmem>>, vector<1x128xf32>,
      %cst_26 = arith.constant 0.000000e+00 : f32
      %41 = vector.broadcast %cst_26 : f32 to vector<1x128x32xf32>
      %c0_27 = arith.constant 0 : index
      %c0_28 = arith.constant 0 : index
      %c0_29 = arith.constant 0 : index
      %42 = vector.load %arg6[%c0_27, %c0_28, %c0_29] : memref<1x128x32xf32, #tpu.memory_space<vmem>>, vector<1x128x32xf32>
      tpu.vector_store %arg6[%c0_27, %c0_28, %c0_29], %41 {strides = array<i32>} : memref<1x128x32xf32, #tpu.memory_space<vmem>>, vector<1x128x32xf32>,
    } else {
    }
    %c0 = arith.constant 0 : index
    %c0_1 = arith.constant 0 : index
    %c0_2 = arith.constant 0 : index
    %3 = vector.load %arg2[%c0, %c0_1, %c0_2] : memref<1x128x32xbf16, #tpu.memory_space<vmem>>, vector<1x128x32xbf16>
    %4 = vector.shape_cast %3 : vector<1x128x32xbf16> to vector<128x32xbf16>
    %c0_3 = arith.constant 0 : index
    %c0_4 = arith.constant 0 : index
    %c0_5 = arith.constant 0 : index
    %5 = vector.load %arg3[%c0_3, %c0_4, %c0_5] : memref<1x128x32xbf16, #tpu.memory_space<vmem>>, vector<1x128x32xbf16>
    %6 = vector.shape_cast %5 : vector<1x128x32xbf16> to vector<128x32xbf16>
    %c0_6 = arith.constant 0 : index
    %c0_7 = arith.constant 0 : index
    %7 = vector.load %arg4[%c0_6, %c0_7] : memref<1x128xf32, #tpu.memory_space<vmem>>, vector<1x128xf32>
    %cst = arith.constant dense<0.000000e+00> : vector<128x128xf32>
    %8 = tpu.matmul %4, %6, %cst {dimension_numbers = #tpu.dot_dimension_numbers<[1], [1], [0], [0], [0, 0, 1, 0], [], []>} : vector<128x32xbf16>, vector<128x32xbf16>, vector<128x128xf32> -> vector<128x128xf32>
    %cst_8 = arith.constant 2.000000e+00 : f32
    %9 = vector.broadcast %cst_8 : f32 to vector<128x128xf32>
    %10 = arith.mulf %9, %8 : vector<128x128xf32>
    %11 = vector.broadcast %7 : vector<1x128xf32> to vector<128x128xf32>
    %12 = arith.subf %11, %10 : vector<128x128xf32>
    %cst_9 = arith.constant dense<0x7F800000> : vector<128xf32>
    %13 = vector.multi_reduction <minimumf>, %12, %cst_9 [1] : vector<128x128xf32> to vector<128xf32>
    %14 = vector.shape_cast %13 : vector<128xf32> to vector<128x1xf32>
    %15 = tpu.iota {dimensions = array<i32: 1>} : vector<128x128xi32>
    %16 = vector.broadcast %14 : vector<128x1xf32> to vector<128x128xf32>
    %17 = arith.cmpf oeq, %12, %16 : vector<128x128xf32>
    %c128_i32 = arith.constant 128 : i32
    %18 = vector.broadcast %c128_i32 : i32 to vector<128x128xi32>
    %19 = arith.select %17, %15, %18 : vector<128x128xi1>, vector<128x128xi32>
    %cst_10 = arith.constant dense<2147483647> : vector<128xi32>
    %20 = vector.multi_reduction <minsi>, %19, %cst_10 [1] : vector<128x128xi32> to vector<128xi32>
    %21 = vector.shape_cast %20 : vector<128xi32> to vector<128x1xi32>
    %22 = vector.broadcast %21 : vector<128x1xi32> to vector<128x128xi32>
    %23 = arith.cmpi eq, %15, %22 : vector<128x128xi32>
    %24 = arith.extui %23 : vector<128x128xi1> to vector<128x128xi32>
    %25 = arith.sitofp %24 : vector<128x128xi32> to vector<128x128xf32>
    %c0_11 = arith.constant 0 : index
    %c0_12 = arith.constant 0 : index
    %26 = vector.load %arg5[%c0_11, %c0_12] : memref<1x128xf32, #tpu.memory_space<vmem>>, vector<1x128xf32>
    %cst_13 = arith.constant dense<0.000000e+00> : vector<128xf32>
    %27 = vector.multi_reduction <add>, %25, %cst_13 [0] : vector<128x128xf32> to vector<128xf32>
    %28 = vector.shape_cast %27 : vector<128xf32> to vector<1x128xf32>
    %29 = arith.addf %26, %28 : vector<1x128xf32>
    %c0_14 = arith.constant 0 : index
    %c0_15 = arith.constant 0 : index
    %30 = vector.load %arg5[%c0_14, %c0_15] : memref<1x128xf32, #tpu.memory_space<vmem>>, vector<1x128xf32>
    tpu.vector_store %arg5[%c0_14, %c0_15], %29 {strides = array<i32>} : memref<1x128xf32, #tpu.memory_space<vmem>>, vector<1x128xf32>,
    %c0_16 = arith.constant 0 : index
    %c0_17 = arith.constant 0 : index
    %c0_18 = arith.constant 0 : index
    %31 = vector.load %arg6[%c0_16, %c0_17, %c0_18] : memref<1x128x32xf32, #tpu.memory_space<vmem>>, vector<1x128x32xf32>
    %32 = vector.shape_cast %31 : vector<1x128x32xf32> to vector<128x32xf32>
    %33 = arith.truncf %25 : vector<128x128xf32> to vector<128x128xbf16>
    %cst_19 = arith.constant dense<0.000000e+00> : vector<128x32xf32>
    %34 = tpu.matmul %33, %4, %cst_19 {dimension_numbers = #tpu.dot_dimension_numbers<[0], [0], [1], [1], [0, 1, 1, 1], [], []>} : vector<128x128xbf16>, vector<128x32xbf16>, vector<128x32xf32> -> vector<128x32xf32>
    %35 = arith.addf %32, %34 : vector<128x32xf32>
    %c0_20 = arith.constant 0 : index
    %c0_21 = arith.constant 0 : index
    %c0_22 = arith.constant 0 : index
    %36 = vector.load %arg6[%c0_20, %c0_21, %c0_22] : memref<1x128x32xf32, #tpu.memory_space<vmem>>, vector<1x128x32xf32>
    %37 = vector.shape_cast %36 : vector<1x128x32xf32> to vector<128x32xf32>
    %38 = vector.shape_cast %35 : vector<128x32xf32> to vector<1x128x32xf32>
    tpu.vector_store %arg6[%c0_20, %c0_21, %c0_22], %38 {strides = array<i32>} : memref<1x128x32xf32, #tpu.memory_space<vmem>>, vector<1x128x32xf32>,
    return
  }
  func.func @transform_0(%arg0: i32, %arg1: i32) -> (i32, i32, i32) {
    %c0_i32 = arith.constant 0 : i32
    %c0_i32_0 = arith.constant 0 : i32
    return %arg0, %arg1, %c0_i32 : i32, i32, i32
  }
  func.func @transform_1(%arg0: i32, %arg1: i32) -> (i32, i32, i32) {
    %c0_i32 = arith.constant 0 : i32
    %c0_i32_0 = arith.constant 0 : i32
    %c0_i32_1 = arith.constant 0 : i32
    return %arg0, %c0_i32, %c0_i32_0 : i32, i32, i32
  }
  func.func @transform_2(%arg0: i32, %arg1: i32) -> (i32, i32) {
    %c0_i32 = arith.constant 0 : i32
    %c0_i32_0 = arith.constant 0 : i32
    return %arg0, %c0_i32 : i32, i32
  }
  func.func @transform_3(%arg0: i32, %arg1: i32) -> (i32, i32) {
    %c0_i32 = arith.constant 0 : i32
    %c0_i32_0 = arith.constant 0 : i32
    return %arg0, %c0_i32 : i32, i32
  }
  func.func @transform_4(%arg0: i32, %arg1: i32) -> (i32, i32, i32) {
    %c0_i32 = arith.constant 0 : i32
    %c0_i32_0 = arith.constant 0 : i32
    %c0_i32_1 = arith.constant 0 : i32
    return %arg0, %c0_i32, %c0_i32_0 : i32, i32, i32
  }
}

module attributes {stable_mosaic.version = 11 : i64} {
  func.func @_vq_forward_kernel(%arg0: i32, %arg1: i32, %arg2: memref<1x128x32xf32, #tpu.memory_space<vmem>>, %arg3: memref<1x128x32xf32, #tpu.memory_space<vmem>>, %arg4: memref<1x128xf32, #tpu.memory_space<vmem>>, %arg5: memref<1x128x128xf32, #tpu.memory_space<vmem>>, %arg6: memref<1x128xi32, #tpu.memory_space<vmem>>, %arg7: memref<1x128x32xf32, #tpu.memory_space<vmem>>) attributes {dimension_semantics = [#tpu.dimension_semantics<parallel>, #tpu.dimension_semantics<parallel>], iteration_bounds = array<i64: 1, 1>, scalar_prefetch = 0 : i64, scratch_operands = 0 : i64, tpu.core_type = #tpu.core_type<tc>, window_params = [{transform_indices = @transform_0, window_bounds = array<i64: 1, 128, 32>}, {transform_indices = @transform_1, window_bounds = array<i64: 1, 128, 32>}, {transform_indices = @transform_2, window_bounds = array<i64: 1, 128>}, {transform_indices = @transform_3, window_bounds = array<i64: 1, 128, 128>}, {transform_indices = @transform_4, window_bounds = array<i64: 1, 128>}, {transform_indices = @transform_5, window_bounds = array<i64: 1, 128, 32>}]} {
    %c0 = arith.constant 0 : index
    %c0_0 = arith.constant 0 : index
    %c0_1 = arith.constant 0 : index
    %0 = vector.load %arg2[%c0, %c0_0, %c0_1] : memref<1x128x32xf32, #tpu.memory_space<vmem>>, vector<1x128x32xf32>
    %1 = vector.shape_cast %0 : vector<1x128x32xf32> to vector<128x32xf32>
    %c0_2 = arith.constant 0 : index
    %c0_3 = arith.constant 0 : index
    %c0_4 = arith.constant 0 : index
    %2 = vector.load %arg3[%c0_2, %c0_3, %c0_4] : memref<1x128x32xf32, #tpu.memory_space<vmem>>, vector<1x128x32xf32>
    %3 = vector.shape_cast %2 : vector<1x128x32xf32> to vector<128x32xf32>
    %c0_5 = arith.constant 0 : index
    %c0_6 = arith.constant 0 : index
    %4 = vector.load %arg4[%c0_5, %c0_6] : memref<1x128xf32, #tpu.memory_space<vmem>>, vector<1x128xf32>
    %cst = arith.constant dense<0.000000e+00> : vector<128x128xf32>
    %5 = tpu.matmul %1, %3, %cst {dimension_numbers = #tpu.dot_dimension_numbers<[1], [1], [0], [0], [0, 0, 1, 0], [], []>, precision = #tpu.contract_precision<fp32>} : vector<128x32xf32>, vector<128x32xf32>, vector<128x128xf32> -> vector<128x128xf32>
    %6 = arith.mulf %1, %1 : vector<128x32xf32>
    %cst_7 = arith.constant dense<0.000000e+00> : vector<128xf32>
    %7 = vector.multi_reduction <add>, %6, %cst_7 [1] : vector<128x32xf32> to vector<128xf32>
    %8 = vector.shape_cast %7 : vector<128xf32> to vector<128x1xf32>
    %9 = vector.broadcast %8 : vector<128x1xf32> to vector<128x128xf32>
    %10 = vector.broadcast %4 : vector<1x128xf32> to vector<128x128xf32>
    %11 = arith.addf %9, %10 : vector<128x128xf32>
    %cst_8 = arith.constant 2.000000e+00 : f32
    %12 = vector.broadcast %cst_8 : f32 to vector<128x128xf32>
    %13 = arith.mulf %12, %5 : vector<128x128xf32>
    %14 = arith.subf %11, %13 : vector<128x128xf32>
    %cst_9 = arith.constant 0.000000e+00 : f32
    %15 = vector.broadcast %cst_9 : f32 to vector<128x128xf32>
    %16 = arith.maximumf %14, %15 : vector<128x128xf32>
    %cst_10 = arith.constant dense<0x7F800000> : vector<128xf32>
    %17 = vector.multi_reduction <minimumf>, %16, %cst_10 [1] : vector<128x128xf32> to vector<128xf32>
    %18 = vector.shape_cast %17 : vector<128xf32> to vector<128x1xf32>
    %19 = tpu.iota {dimensions = array<i32: 1>} : vector<128x128xi32>
    %20 = vector.broadcast %18 : vector<128x1xf32> to vector<128x128xf32>
    %21 = arith.cmpf oeq, %16, %20 : vector<128x128xf32>
    %c128_i32 = arith.constant 128 : i32
    %22 = vector.broadcast %c128_i32 : i32 to vector<128x128xi32>
    %23 = arith.select %21, %19, %22 : vector<128x128xi1>, vector<128x128xi32>
    %cst_11 = arith.constant dense<2147483647> : vector<128xi32>
    %24 = vector.multi_reduction <minsi>, %23, %cst_11 [1] : vector<128x128xi32> to vector<128xi32>
    %25 = vector.shape_cast %24 : vector<128xi32> to vector<128x1xi32>
    %26 = vector.broadcast %25 : vector<128x1xi32> to vector<128x128xi32>
    %27 = arith.cmpi eq, %19, %26 : vector<128x128xi32>
    %28 = arith.extui %27 : vector<128x128xi1> to vector<128x128xi32>
    %29 = arith.sitofp %28 : vector<128x128xi32> to vector<128x128xf32>
    %cst_12 = arith.constant dense<0.000000e+00> : vector<128x32xf32>
    %30 = tpu.matmul %29, %3, %cst_12 {dimension_numbers = #tpu.dot_dimension_numbers<[1], [0], [0], [1], [0, 0, 1, 1], [], []>, precision = #tpu.contract_precision<fp32>} : vector<128x128xf32>, vector<128x32xf32>, vector<128x32xf32> -> vector<128x32xf32>
    %c0_13 = arith.constant 0 : index
    %c0_14 = arith.constant 0 : index
    %c0_15 = arith.constant 0 : index
    %31 = vector.load %arg7[%c0_13, %c0_14, %c0_15] : memref<1x128x32xf32, #tpu.memory_space<vmem>>, vector<1x128x32xf32>
    %32 = vector.shape_cast %31 : vector<1x128x32xf32> to vector<128x32xf32>
    %33 = vector.shape_cast %30 : vector<128x32xf32> to vector<1x128x32xf32>
    tpu.vector_store %arg7[%c0_13, %c0_14, %c0_15], %33 {strides = array<i32>} : memref<1x128x32xf32, #tpu.memory_space<vmem>>, vector<1x128x32xf32>,
    %34 = tpu.iota {dimensions = array<i32: 1>} : vector<8x128xi32>
    %35 = arith.sitofp %34 : vector<8x128xi32> to vector<8x128xf32>
    %cst_16 = arith.constant dense<0.000000e+00> : vector<8x128xf32>
    %36 = tpu.matmul %35, %29, %cst_16 {dimension_numbers = #tpu.dot_dimension_numbers<[1], [1], [0], [0], [0, 0, 1, 0], [], []>} : vector<8x128xf32>, vector<128x128xf32>, vector<8x128xf32> -> vector<8x128xf32>
    %37 = vector.extract_strided_slice %36 {offsets = [0, 0], sizes = [1, 128], strides = [1, 1]} : vector<8x128xf32> to vector<1x128xf32>
    %38 = arith.fptosi %37 : vector<1x128xf32> to vector<1x128xi32>
    %c0_17 = arith.constant 0 : index
    %c0_18 = arith.constant 0 : index
    %39 = vector.load %arg6[%c0_17, %c0_18] : memref<1x128xi32, #tpu.memory_space<vmem>>, vector<1x128xi32>
    tpu.vector_store %arg6[%c0_17, %c0_18], %38 {strides = array<i32>} : memref<1x128xi32, #tpu.memory_space<vmem>>, vector<1x128xi32>,
    %40 = math.sqrt %16 : vector<128x128xf32>
    %cst_19 = arith.constant 0.000000e+00 : f32
    %41 = vector.broadcast %cst_19 : f32 to vector<128x128xf32>
    %42 = arith.subf %41, %40 : vector<128x128xf32>
    %c0_20 = arith.constant 0 : index
    %c0_21 = arith.constant 0 : index
    %c0_22 = arith.constant 0 : index
    %43 = vector.load %arg5[%c0_20, %c0_21, %c0_22] : memref<1x128x128xf32, #tpu.memory_space<vmem>>, vector<1x128x128xf32>
    %44 = vector.shape_cast %43 : vector<1x128x128xf32> to vector<128x128xf32>
    %45 = vector.shape_cast %42 : vector<128x128xf32> to vector<1x128x128xf32>
    tpu.vector_store %arg5[%c0_20, %c0_21, %c0_22], %45 {strides = array<i32>} : memref<1x128x128xf32, #tpu.memory_space<vmem>>, vector<1x128x128xf32>,
    return
  }
  func.func @transform_0(%arg0: i32, %arg1: i32) -> (i32, i32, i32) {
    %c0_i32 = arith.constant 0 : i32
    %c0_i32_0 = arith.constant 0 : i32
    return %arg0, %arg1, %c0_i32 : i32, i32, i32
  }
  func.func @transform_1(%arg0: i32, %arg1: i32) -> (i32, i32, i32) {
    %c0_i32 = arith.constant 0 : i32
    %c0_i32_0 = arith.constant 0 : i32
    %c0_i32_1 = arith.constant 0 : i32
    return %arg0, %c0_i32, %c0_i32_0 : i32, i32, i32
  }
  func.func @transform_2(%arg0: i32, %arg1: i32) -> (i32, i32) {
    %c0_i32 = arith.constant 0 : i32
    %c0_i32_0 = arith.constant 0 : i32
    return %arg0, %c0_i32 : i32, i32
  }
  func.func @transform_3(%arg0: i32, %arg1: i32) -> (i32, i32, i32) {
    %c0_i32 = arith.constant 0 : i32
    %c0_i32_0 = arith.constant 0 : i32
    return %arg0, %arg1, %c0_i32 : i32, i32, i32
  }
  func.func @transform_4(%arg0: i32, %arg1: i32) -> (i32, i32) {
    %c0_i32 = arith.constant 0 : i32
    return %arg0, %arg1 : i32, i32
  }
  func.func @transform_5(%arg0: i32, %arg1: i32) -> (i32, i32, i32) {
    %c0_i32 = arith.constant 0 : i32
    %c0_i32_0 = arith.constant 0 : i32
    return %arg0, %arg1, %c0_i32 : i32, i32, i32
  }
}

</mosaic_0001>

<llo_original>
// kernel: closed_call.10
$region0: #{closed_call.10}
  #allocation0 [shape = 'u32[]', space=smem, size = 0x4, offset = 0x4, fixed_abs, tag = 'smem constant byte address 0x4 - core index']
  #allocation1 [shape = 'u32[72,128]{1,0:T(1,128)}', space=vmem, size = 0x9000, scoped, tag = 'internal scratch']
  %s0 = inlined_call_operand.vmem [shape: bf16[1,128,32], index: 0, kind: input, shape index: {}]
  %s1 = inlined_call_operand.vmem [shape: bf16[1,128,32], index: 1, kind: input, shape index: {}]
  %s2 = inlined_call_operand.vmem [shape: f32[1,128], index: 2, kind: input, shape index: {}]
  %s3 = inlined_call_operand.vmem [shape: f32[1,128], index: 3, kind: output, shape index: {0}]
  %s4 = inlined_call_operand.vmem [shape: f32[1,128,32], index: 4, kind: output, shape index: {1}]
  %5 = xla_tuple %s3, %s4
  %s6 = sld [smem:[#allocation0]]
  $region34: #{closed_call.10} parent=0
    _
  %s8 = ssub.s32 1, %s6
  %s9 = scalar_select 0, %s8, %s6
  // Predicated region
  $region2: #{closed_call.10} parent=0 // pred_check
    _
  $region3: #{closed_call.10} parent=0 // pred_check_branch
    %11 = sbr.rel (0) target = $region5
  $region4: #{closed_call.10} parent=0 // pred_region
    _
  $region5: #{closed_call.10} parent=0 // pred_fallthru
    _
  // Predicated region
  $region6: #{closed_call.10} parent=0 // pred_check
    _
  $region7: #{closed_call.10} parent=0 // pred_check_branch
    %13 = sbr.rel (0) target = $region9
  $region8: #{closed_call.10} parent=0 // pred_region
    _
  $region9: #{closed_call.10} parent=0 // pred_fallthru
    _
  // Predicated region
  $region10: #{closed_call.10} parent=0 // pred_check
    _
  $region11: #{closed_call.10} parent=0 // pred_check_branch
    %15 = sbr.rel (0) target = $region13
  $region12: #{closed_call.10} parent=0 // pred_region
    _
  $region13: #{closed_call.10} parent=0 // pred_fallthru
    _
  %p16 = scmp.eq.s32.totalorder 0, 0
  // Predicated region
  $region14: #{closed_call.10} parent=0 // pred_check
    %p17 = pneg %p16
  $region15: #{closed_call.10} parent=0 // pred_check_branch
    %19 = sbr.rel (%p17) target = $region17
  $region16: #{closed_call.10} parent=0 // pred_region
    %20 = vst [vmem:[%s3] sm:$0x1] 0.0
    %vm21 = vcmask 261120
    %22 = vst.msk [vmem:[%s4] sm:$0xff] %vm21, 0.0
    %23 = vst.msk [vmem:[%s4 + $0x8] sm:$0xff] %vm21, 0.0
    %24 = vst.msk [vmem:[%s4 + $0x10] sm:$0xff] %vm21, 0.0
    %25 = vst.msk [vmem:[%s4 + $0x18] sm:$0xff] %vm21, 0.0
    %26 = vst.msk [vmem:[%s4 + $0x20] sm:$0xff] %vm21, 0.0
    %27 = vst.msk [vmem:[%s4 + $0x28] sm:$0xff] %vm21, 0.0
    %28 = vst.msk [vmem:[%s4 + $0x30] sm:$0xff] %vm21, 0.0
    %29 = vst.msk [vmem:[%s4 + $0x38] sm:$0xff] %vm21, 0.0
    %30 = vst.msk [vmem:[%s4 + $0x40] sm:$0xff] %vm21, 0.0
    %31 = vst.msk [vmem:[%s4 + $0x48] sm:$0xff] %vm21, 0.0
    %32 = vst.msk [vmem:[%s4 + $0x50] sm:$0xff] %vm21, 0.0
    %33 = vst.msk [vmem:[%s4 + $0x58] sm:$0xff] %vm21, 0.0
    %34 = vst.msk [vmem:[%s4 + $0x60] sm:$0xff] %vm21, 0.0
    %35 = vst.msk [vmem:[%s4 + $0x68] sm:$0xff] %vm21, 0.0
    %36 = vst.msk [vmem:[%s4 + $0x70] sm:$0xff] %vm21, 0.0
    %37 = vst.msk [vmem:[%s4 + $0x78] sm:$0xff] %vm21, 0.0
  $region17: #{closed_call.10} parent=0 // pred_fallthru
    _
  %v38 = vld [vmem:[%s0] sm:$0xf]
  %v39 = vld [vmem:[%s0 + $0x4] sm:$0xf]
  %v40 = vld [vmem:[%s0 + $0x8] sm:$0xf]
  %v41 = vld [vmem:[%s0 + $0xc] sm:$0xf]
  %v42 = vld [vmem:[%s0 + $0x10] sm:$0xf]
  %v43 = vld [vmem:[%s0 + $0x14] sm:$0xf]
  %v44 = vld [vmem:[%s0 + $0x18] sm:$0xf]
  %v45 = vld [vmem:[%s0 + $0x1c] sm:$0xf]
  %v46 = vld [vmem:[%s0 + $0x20] sm:$0xf]
  %v47 = vld [vmem:[%s0 + $0x24] sm:$0xf]
  %v48 = vld [vmem:[%s0 + $0x28] sm:$0xf]
  %v49 = vld [vmem:[%s0 + $0x2c] sm:$0xf]
  %v50 = vld [vmem:[%s0 + $0x30] sm:$0xf]
  %v51 = vld [vmem:[%s0 + $0x34] sm:$0xf]
  %v52 = vld [vmem:[%s0 + $0x38] sm:$0xf]
  %v53 = vld [vmem:[%s0 + $0x3c] sm:$0xf]
  %v54 = vld [vmem:[%s1] sm:$0xf]
  %v55 = vld [vmem:[%s1 + $0x4] sm:$0xf]
  %v56 = vld [vmem:[%s1 + $0x8] sm:$0xf]
  %v57 = vld [vmem:[%s1 + $0xc] sm:$0xf]
  %v58 = vld [vmem:[%s1 + $0x10] sm:$0xf]
  %v59 = vld [vmem:[%s1 + $0x14] sm:$0xf]
  %v60 = vld [vmem:[%s1 + $0x18] sm:$0xf]
  %v61 = vld [vmem:[%s1 + $0x1c] sm:$0xf]
  %v62 = vld [vmem:[%s1 + $0x20] sm:$0xf]
  %v63 = vld [vmem:[%s1 + $0x24] sm:$0xf]
  %v64 = vld [vmem:[%s1 + $0x28] sm:$0xf]
  %v65 = vld [vmem:[%s1 + $0x2c] sm:$0xf]
  %v66 = vld [vmem:[%s1 + $0x30] sm:$0xf]
  %v67 = vld [vmem:[%s1 + $0x34] sm:$0xf]
  %v68 = vld [vmem:[%s1 + $0x38] sm:$0xf]
  %v69 = vld [vmem:[%s1 + $0x3c] sm:$0xf]
  %v70 = vld [vmem:[%s2] sm:$0x1]
  %v87 = vunpack.c.l.b16 %v38
  %v88 = vunpack.c.l.b16 %v39
  %v89 = vunpack.c.l.b16 %v40
  %v90 = vunpack.c.l.b16 %v41
  %v91 = vunpack.c.l.b16 %v42
  %v92 = vunpack.c.l.b16 %v43
  %v93 = vunpack.c.l.b16 %v44
  %v94 = vunpack.c.l.b16 %v45
  %v95 = vunpack.c.l.b16 %v46
  %v96 = vunpack.c.l.b16 %v47
  %v97 = vunpack.c.l.b16 %v48
  %v98 = vunpack.c.l.b16 %v49
  %v99 = vunpack.c.l.b16 %v50
  %v100 = vunpack.c.l.b16 %v51
  %v101 = vunpack.c.l.b16 %v52
  %v102 = vunpack.c.l.b16 %v53
  %v103 = vpack.c.b16 %v88, %v87
  %v104 = vpack.c.b16 %v90, %v89
  %v105 = vpack.c.b16 %v92, %v91
  %v106 = vpack.c.b16 %v94, %v93
  %v107 = vpack.c.b16 %v96, %v95
  %v108 = vpack.c.b16 %v98, %v97
  %v109 = vpack.c.b16 %v100, %v99
  %v110 = vpack.c.b16 %v102, %v101
  %v127 = vunpack.c.l.b16 %v54
  %v128 = vunpack.c.l.b16 %v55
  %v129 = vunpack.c.l.b16 %v56
  %v130 = vunpack.c.l.b16 %v57
  %v131 = vunpack.c.l.b16 %v58
  %v132 = vunpack.c.l.b16 %v59
  %v133 = vunpack.c.l.b16 %v60
  %v134 = vunpack.c.l.b16 %v61
  %v135 = vunpack.c.l.b16 %v62
  %v136 = vunpack.c.l.b16 %v63
  %v137 = vunpack.c.l.b16 %v64
  %v138 = vunpack.c.l.b16 %v65
  %v139 = vunpack.c.l.b16 %v66
  %v140 = vunpack.c.l.b16 %v67
  %v141 = vunpack.c.l.b16 %v68
  %v142 = vunpack.c.l.b16 %v69
  %v143 = vpack.c.b16 %v128, %v127
  %v144 = vpack.c.b16 %v130, %v129
  %v145 = vpack.c.b16 %v132, %v131
  %v146 = vpack.c.b16 %v134, %v133
  %v147 = vpack.c.b16 %v136, %v135
  %v148 = vpack.c.b16 %v138, %v137
  %v149 = vpack.c.b16 %v140, %v139
  %v150 = vpack.c.b16 %v142, %v141
  %vm151 = vcmask 261120
  %v153 = vsel %vm151, %v103, 0
  %v156 = vsel %vm151, %v104, 0
  %v159 = vsel %vm151, %v105, 0
  %v162 = vsel %vm151, %v106, 0
  %v165 = vsel %vm151, %v107, 0
  %v168 = vsel %vm151, %v108, 0
  %v171 = vsel %vm151, %v109, 0
  %v174 = vsel %vm151, %v110, 0
  %v177 = vsel %vm151, %v143, 0
  %v180 = vsel %vm151, %v144, 0
  %v183 = vsel %vm151, %v145, 0
  %v186 = vsel %vm151, %v146, 0
  %v189 = vsel %vm151, %v147, 0
  %v192 = vsel %vm151, %v148, 0
  %v195 = vsel %vm151, %v149, 0
  %v198 = vsel %vm151, %v150, 0
  %200 = vmatpush.bf16.xpose.msra.mxu0 %v198
  %201 = vmatpush.bf16.xpose.msra.mxu0 %v195
  %202 = vmatpush.bf16.xpose.msra.mxu0 %v192
  %203 = vmatpush.bf16.xpose.msra.mxu0 %v189
  %204 = vmatpush.bf16.xpose.msra.mxu0 %v186
  %205 = vmatpush.bf16.xpose.msra.mxu0 %v183
  %206 = vmatpush.bf16.xpose.msra.mxu0 %v180
  %207 = vmatpush.bf16.xpose.msra.mxu0 %v177
  %208 = vmatmul.bf16.gmra.mxu0 %v153
  %v209 = vpop.f32.mrf.mxu0
  %v210 = vadd.f32 0.0, %v209
  %v211 = vpop.f32.mrf.mxu0
  %v212 = vadd.f32 0.0, %v211
  %213 = vmatmul.bf16.gmra.mxu0 %v156
  %v214 = vpop.f32.mrf.mxu0
  %v215 = vadd.f32 0.0, %v214
  %v216 = vpop.f32.mrf.mxu0
  %v217 = vadd.f32 0.0, %v216
  %218 = vmatmul.bf16.gmra.mxu0 %v159
  %v219 = vpop.f32.mrf.mxu0
  %v220 = vadd.f32 0.0, %v219
  %v221 = vpop.f32.mrf.mxu0
  %v222 = vadd.f32 0.0, %v221
  %223 = vmatmul.bf16.gmra.mxu0 %v162
  %v224 = vpop.f32.mrf.mxu0
  %v225 = vadd.f32 0.0, %v224
  %v226 = vpop.f32.mrf.mxu0
  %v227 = vadd.f32 0.0, %v226
  %228 = vmatmul.bf16.gmra.mxu0 %v165
  %v229 = vpop.f32.mrf.mxu0
  %v230 = vadd.f32 0.0, %v229
  %v231 = vpop.f32.mrf.mxu0
  %v232 = vadd.f32 0.0, %v231
  %233 = vmatmul.bf16.gmra.mxu0 %v168
  %v234 = vpop.f32.mrf.mxu0
  %v235 = vadd.f32 0.0, %v234
  %v236 = vpop.f32.mrf.mxu0
  %v237 = vadd.f32 0.0, %v236
  %238 = vmatmul.bf16.gmra.mxu0 %v171
  %v239 = vpop.f32.mrf.mxu0
  %v240 = vadd.f32 0.0, %v239
  %v241 = vpop.f32.mrf.mxu0
  %v242 = vadd.f32 0.0, %v241
  %243 = vmatmul.bf16.gmra.mxu0 %v174
  %v244 = vpop.f32.mrf.mxu0
  %v245 = vadd.f32 0.0, %v244
  %v246 = vpop.f32.mrf.mxu0
  %v247 = vadd.f32 0.0, %v246
  %248 = vdwg.mxu0
  %v249 = vmul.f32 %v210, 2.0
  %v250 = vmul.f32 %v212, 2.0
  %v251 = vmul.f32 %v215, 2.0
  %v252 = vmul.f32 %v217, 2.0
  %v253 = vmul.f32 %v220, 2.0
  %v254 = vmul.f32 %v222, 2.0
  %v255 = vmul.f32 %v225, 2.0
  %v256 = vmul.f32 %v227, 2.0
  %v257 = vmul.f32 %v230, 2.0
  %v258 = vmul.f32 %v232, 2.0
  %v259 = vmul.f32 %v235, 2.0
  %v260 = vmul.f32 %v237, 2.0
  %v261 = vmul.f32 %v240, 2.0
  %v262 = vmul.f32 %v242, 2.0
  %v263 = vmul.f32 %v245, 2.0
  %v264 = vmul.f32 %v247, 2.0
  %v266 = vperm.slane %v70, 0
  %v268 = vsub.f32 %v266, %v249
  %v269 = vsub.f32 %v266, %v250
  %v270 = vsub.f32 %v266, %v251
  %v271 = vsub.f32 %v266, %v252
  %v272 = vsub.f32 %v266, %v253
  %v273 = vsub.f32 %v266, %v254
  %v274 = vsub.f32 %v266, %v255
  %v275 = vsub.f32 %v266, %v256
  %v276 = vsub.f32 %v266, %v257
  %v277 = vsub.f32 %v266, %v258
  %v278 = vsub.f32 %v266, %v259
  %v279 = vsub.f32 %v266, %v260
  %v280 = vsub.f32 %v266, %v261
  %v281 = vsub.f32 %v266, %v262
  %v282 = vsub.f32 %v266, %v263
  %v283 = vsub.f32 %v266, %v264
  %284 = vmin.xlane.f32.xlu0 %v268
  %v285 = vpop.xlane.xlu0 %284
  %286 = vmin.xlane.f32.xlu0 %v269
  %v287 = vpop.xlane.xlu0 %286
  %288 = vmin.xlane.f32.xlu0 %v270
  %v289 = vpop.xlane.xlu0 %288
  %290 = vmin.xlane.f32.xlu0 %v271
  %v291 = vpop.xlane.xlu0 %290
  %292 = vmin.xlane.f32.xlu0 %v272
  %v293 = vpop.xlane.xlu0 %292
  %294 = vmin.xlane.f32.xlu0 %v273
  %v295 = vpop.xlane.xlu0 %294
  %296 = vmin.xlane.f32.xlu0 %v274
  %v297 = vpop.xlane.xlu0 %296
  %298 = vmin.xlane.f32.xlu0 %v275
  %v299 = vpop.xlane.xlu0 %298
  %300 = vmin.xlane.f32.xlu0 %v276
  %v301 = vpop.xlane.xlu0 %300
  %302 = vmin.xlane.f32.xlu0 %v277
  %v303 = vpop.xlane.xlu0 %302
  %304 = vmin.xlane.f32.xlu0 %v278
  %v305 = vpop.xlane.xlu0 %304
  %306 = vmin.xlane.f32.xlu0 %v279
  %v307 = vpop.xlane.xlu0 %306
  %308 = vmin.xlane.f32.xlu0 %v280
  %v309 = vpop.xlane.xlu0 %308
  %310 = vmin.xlane.f32.xlu0 %v281
  %v311 = vpop.xlane.xlu0 %310
  %312 = vmin.xlane.f32.xlu0 %v282
  %v313 = vpop.xlane.xlu0 %312
  %314 = vmin.xlane.f32.xlu0 %v283
  %v315 = vpop.xlane.xlu0 %314
  %v316 = vlaneseq
  %v317 = vand.u32 %v316, 127
  %vm318 = vcmp.eq.f32.partialorder %v268, %v285
  %vm319 = vcmp.eq.f32.partialorder %v269, %v287
  %vm320 = vcmp.eq.f32.partialorder %v270, %v289
  %vm321 = vcmp.eq.f32.partialorder %v271, %v291
  %vm322 = vcmp.eq.f32.partialorder %v272, %v293
  %vm323 = vcmp.eq.f32.partialorder %v273, %v295
  %vm324 = vcmp.eq.f32.partialorder %v274, %v297
  %vm325 = vcmp.eq.f32.partialorder %v275, %v299
  %vm326 = vcmp.eq.f32.partialorder %v276, %v301
  %vm327 = vcmp.eq.f32.partialorder %v277, %v303
  %vm328 = vcmp.eq.f32.partialorder %v278, %v305
  %vm329 = vcmp.eq.f32.partialorder %v279, %v307
  %vm330 = vcmp.eq.f32.partialorder %v280, %v309
  %vm331 = vcmp.eq.f32.partialorder %v281, %v311
  %vm332 = vcmp.eq.f32.partialorder %v282, %v313
  %vm333 = vcmp.eq.f32.partialorder %v283, %v315
  %v334 = vsel %vm318, %v317, 128
  %v335 = vsel %vm319, %v317, 128
  %v336 = vsel %vm320, %v317, 128
  %v337 = vsel %vm321, %v317, 128
  %v338 = vsel %vm322, %v317, 128
  %v339 = vsel %vm323, %v317, 128
  %v340 = vsel %vm324, %v317, 128
  %v341 = vsel %vm325, %v317, 128
  %v342 = vsel %vm326, %v317, 128
  %v343 = vsel %vm327, %v317, 128
  %v344 = vsel %vm328, %v317, 128
  %v345 = vsel %vm329, %v317, 128
  %v346 = vsel %vm330, %v317, 128
  %v347 = vsel %vm331, %v317, 128
  %v348 = vsel %vm332, %v317, 128
  %v349 = vsel %vm333, %v317, 128
  %v350 = vand.u32 %v334, 65535
  %v351 = vshra.s32 %v334, 16
  %v352 = vcvt.s32.f32 %v350
  %v353 = vcvt.s32.f32 %v351
  %354 = vmin.xlane.f32.xlu0 %v353
  %v355 = vpop.xlane.xlu0 %354
  %vm356 = vcmp.eq.f32.partialorder %v353, %v355
  %v357 = vsel %vm356, %v352, inf
  %358 = vmin.xlane.f32.xlu0 %v357
  %v359 = vpop.xlane.xlu0 %358
  %v360 = vcvt.f32.s32 %v359
  %v361 = vcvt.f32.s32 %v355
  %v362 = vshll.u32 %v361, 16
  %v363 = vadd.s32 %v362, %v360
  %v364 = vand.u32 %v335, 65535
  %v365 = vshra.s32 %v335, 16
  %v366 = vcvt.s32.f32 %v364
  %v367 = vcvt.s32.f32 %v365
  %368 = vmin.xlane.f32.xlu0 %v367
  %v369 = vpop.xlane.xlu0 %368
  %vm370 = vcmp.eq.f32.partialorder %v367, %v369
  %v371 = vsel %vm370, %v366, inf
  %372 = vmin.xlane.f32.xlu0 %v371
  %v373 = vpop.xlane.xlu0 %372
  %v374 = vcvt.f32.s32 %v373
  %v375 = vcvt.f32.s32 %v369
  %v376 = vshll.u32 %v375, 16
  %v377 = vadd.s32 %v376, %v374
  %v378 = vand.u32 %v336, 65535
  %v379 = vshra.s32 %v336, 16
  %v380 = vcvt.s32.f32 %v378
  %v381 = vcvt.s32.f32 %v379
  %382 = vmin.xlane.f32.xlu0 %v381
  %v383 = vpop.xlane.xlu0 %382
  %vm384 = vcmp.eq.f32.partialorder %v381, %v383
  %v385 = vsel %vm384, %v380, inf
  %386 = vmin.xlane.f32.xlu0 %v385
  %v387 = vpop.xlane.xlu0 %386
  %v388 = vcvt.f32.s32 %v387
  %v389 = vcvt.f32.s32 %v383
  %v390 = vshll.u32 %v389, 16
  %v391 = vadd.s32 %v390, %v388
  %v392 = vand.u32 %v337, 65535
  %v393 = vshra.s32 %v337, 16
  %v394 = vcvt.s32.f32 %v392
  %v395 = vcvt.s32.f32 %v393
  %396 = vmin.xlane.f32.xlu0 %v395
  %v397 = vpop.xlane.xlu0 %396
  %vm398 = vcmp.eq.f32.partialorder %v395, %v397
  %v399 = vsel %vm398, %v394, inf
  %400 = vmin.xlane.f32.xlu0 %v399
  %v401 = vpop.xlane.xlu0 %400
  %v402 = vcvt.f32.s32 %v401
  %v403 = vcvt.f32.s32 %v397
  %v404 = vshll.u32 %v403, 16
  %v405 = vadd.s32 %v404, %v402
  %v406 = vand.u32 %v338, 65535
  %v407 = vshra.s32 %v338, 16
  %v408 = vcvt.s32.f32 %v406
  %v409 = vcvt.s32.f32 %v407
  %410 = vmin.xlane.f32.xlu0 %v409
  %v411 = vpop.xlane.xlu0 %410
  %vm412 = vcmp.eq.f32.partialorder %v409, %v411
  %v413 = vsel %vm412, %v408, inf
  %414 = vmin.xlane.f32.xlu0 %v413
  %v415 = vpop.xlane.xlu0 %414
  %v416 = vcvt.f32.s32 %v415
  %v417 = vcvt.f32.s32 %v411
  %v418 = vshll.u32 %v417, 16
  %v419 = vadd.s32 %v418, %v416
  %v420 = vand.u32 %v339, 65535
  %v421 = vshra.s32 %v339, 16
  %v422 = vcvt.s32.f32 %v420
  %v423 = vcvt.s32.f32 %v421
  %424 = vmin.xlane.f32.xlu0 %v423
  %v425 = vpop.xlane.xlu0 %424
  %vm426 = vcmp.eq.f32.partialorder %v423, %v425
  %v427 = vsel %vm426, %v422, inf
  %428 = vmin.xlane.f32.xlu0 %v427
  %v429 = vpop.xlane.xlu0 %428
  %v430 = vcvt.f32.s32 %v429
  %v431 = vcvt.f32.s32 %v425
  %v432 = vshll.u32 %v431, 16
  %v433 = vadd.s32 %v432, %v430
  %v434 = vand.u32 %v340, 65535
  %v435 = vshra.s32 %v340, 16
  %v436 = vcvt.s32.f32 %v434
  %v437 = vcvt.s32.f32 %v435
  %438 = vmin.xlane.f32.xlu0 %v437
  %v439 = vpop.xlane.xlu0 %438
  %vm440 = vcmp.eq.f32.partialorder %v437, %v439
  %v441 = vsel %vm440, %v436, inf
  %442 = vmin.xlane.f32.xlu0 %v441
  %v443 = vpop.xlane.xlu0 %442
  %v444 = vcvt.f32.s32 %v443
  %v445 = vcvt.f32.s32 %v439
  %v446 = vshll.u32 %v445, 16
  %v447 = vadd.s32 %v446, %v444
  %v448 = vand.u32 %v341, 65535
  %v449 = vshra.s32 %v341, 16
  %v450 = vcvt.s32.f32 %v448
  %v451 = vcvt.s32.f32 %v449
  %452 = vmin.xlane.f32.xlu0 %v451
  %v453 = vpop.xlane.xlu0 %452
  %vm454 = vcmp.eq.f32.partialorder %v451, %v453
  %v455 = vsel %vm454, %v450, inf
  %456 = vmin.xlane.f32.xlu0 %v455
  %v457 = vpop.xlane.xlu0 %456
  %v458 = vcvt.f32.s32 %v457
  %v459 = vcvt.f32.s32 %v453
  %v460 = vshll.u32 %v459, 16
  %v461 = vadd.s32 %v460, %v458
  %v462 = vand.u32 %v342, 65535
  %v463 = vshra.s32 %v342, 16
  %v464 = vcvt.s32.f32 %v462
  %v465 = vcvt.s32.f32 %v463
  %466 = vmin.xlane.f32.xlu0 %v465
  %v467 = vpop.xlane.xlu0 %466
  %vm468 = vcmp.eq.f32.partialorder %v465, %v467
  %v469 = vsel %vm468, %v464, inf
  %470 = vmin.xlane.f32.xlu0 %v469
  %v471 = vpop.xlane.xlu0 %470
  %v472 = vcvt.f32.s32 %v471
  %v473 = vcvt.f32.s32 %v467
  %v474 = vshll.u32 %v473, 16
  %v475 = vadd.s32 %v474, %v472
  %v476 = vand.u32 %v343, 65535
  %v477 = vshra.s32 %v343, 16
  %v478 = vcvt.s32.f32 %v476
  %v479 = vcvt.s32.f32 %v477
  %480 = vmin.xlane.f32.xlu0 %v479
  %v481 = vpop.xlane.xlu0 %480
  %vm482 = vcmp.eq.f32.partialorder %v479, %v481
  %v483 = vsel %vm482, %v478, inf
  %484 = vmin.xlane.f32.xlu0 %v483
  %v485 = vpop.xlane.xlu0 %484
  %v486 = vcvt.f32.s32 %v485
  %v487 = vcvt.f32.s32 %v481
  %v488 = vshll.u32 %v487, 16
  %v489 = vadd.s32 %v488, %v486
  %v490 = vand.u32 %v344, 65535
  %v491 = vshra.s32 %v344, 16
  %v492 = vcvt.s32.f32 %v490
  %v493 = vcvt.s32.f32 %v491
  %494 = vmin.xlane.f32.xlu0 %v493
  %v495 = vpop.xlane.xlu0 %494
  %vm496 = vcmp.eq.f32.partialorder %v493, %v495
  %v497 = vsel %vm496, %v492, inf
  %498 = vmin.xlane.f32.xlu0 %v497
  %v499 = vpop.xlane.xlu0 %498
  %v500 = vcvt.f32.s32 %v499
  %v501 = vcvt.f32.s32 %v495
  %v502 = vshll.u32 %v501, 16
  %v503 = vadd.s32 %v502, %v500
  %v504 = vand.u32 %v345, 65535
  %v505 = vshra.s32 %v345, 16
  %v506 = vcvt.s32.f32 %v504
  %v507 = vcvt.s32.f32 %v505
  %508 = vmin.xlane.f32.xlu0 %v507
  %v509 = vpop.xlane.xlu0 %508
  %vm510 = vcmp.eq.f32.partialorder %v507, %v509
  %v511 = vsel %vm510, %v506, inf
  %512 = vmin.xlane.f32.xlu0 %v511
  %v513 = vpop.xlane.xlu0 %512
  %v514 = vcvt.f32.s32 %v513
  %v515 = vcvt.f32.s32 %v509
  %v516 = vshll.u32 %v515, 16
  %v517 = vadd.s32 %v516, %v514
  %v518 = vand.u32 %v346, 65535
  %v519 = vshra.s32 %v346, 16
  %v520 = vcvt.s32.f32 %v518
  %v521 = vcvt.s32.f32 %v519
  %522 = vmin.xlane.f32.xlu0 %v521
  %v523 = vpop.xlane.xlu0 %522
  %vm524 = vcmp.eq.f32.partialorder %v521, %v523
  %v525 = vsel %vm524, %v520, inf
  %526 = vmin.xlane.f32.xlu0 %v525
  %v527 = vpop.xlane.xlu0 %526
  %v528 = vcvt.f32.s32 %v527
  %v529 = vcvt.f32.s32 %v523
  %v530 = vshll.u32 %v529, 16
  %v531 = vadd.s32 %v530, %v528
  %v532 = vand.u32 %v347, 65535
  %v533 = vshra.s32 %v347, 16
  %v534 = vcvt.s32.f32 %v532
  %v535 = vcvt.s32.f32 %v533
  %536 = vmin.xlane.f32.xlu0 %v535
  %v537 = vpop.xlane.xlu0 %536
  %vm538 = vcmp.eq.f32.partialorder %v535, %v537
  %v539 = vsel %vm538, %v534, inf
  %540 = vmin.xlane.f32.xlu0 %v539
  %v541 = vpop.xlane.xlu0 %540
  %v542 = vcvt.f32.s32 %v541
  %v543 = vcvt.f32.s32 %v537
  %v544 = vshll.u32 %v543, 16
  %v545 = vadd.s32 %v544, %v542
  %v546 = vand.u32 %v348, 65535
  %v547 = vshra.s32 %v348, 16
  %v548 = vcvt.s32.f32 %v546
  %v549 = vcvt.s32.f32 %v547
  %550 = vmin.xlane.f32.xlu0 %v549
  %v551 = vpop.xlane.xlu0 %550
  %vm552 = vcmp.eq.f32.partialorder %v549, %v551
  %v553 = vsel %vm552, %v548, inf
  %554 = vmin.xlane.f32.xlu0 %v553
  %v555 = vpop.xlane.xlu0 %554
  %v556 = vcvt.f32.s32 %v555
  %v557 = vcvt.f32.s32 %v551
  %v558 = vshll.u32 %v557, 16
  %v559 = vadd.s32 %v558, %v556
  %v560 = vand.u32 %v349, 65535
  %v561 = vshra.s32 %v349, 16
  %v562 = vcvt.s32.f32 %v560
  %v563 = vcvt.s32.f32 %v561
  %564 = vmin.xlane.f32.xlu0 %v563
  %v565 = vpop.xlane.xlu0 %564
  %vm566 = vcmp.eq.f32.partialorder %v563, %v565
  %v567 = vsel %vm566, %v562, inf
  %568 = vmin.xlane.f32.xlu0 %v567
  %v569 = vpop.xlane.xlu0 %568
  %v570 = vcvt.f32.s32 %v569
  %v571 = vcvt.f32.s32 %v565
  %v572 = vshll.u32 %v571, 16
  %v573 = vadd.s32 %v572, %v570
  %vm574 = vcmp.eq.s32.totalorder %v317, %v363
  %vm575 = vcmp.eq.s32.totalorder %v317, %v377
  %vm576 = vcmp.eq.s32.totalorder %v317, %v391
  %vm577 = vcmp.eq.s32.totalorder %v317, %v405
  %vm578 = vcmp.eq.s32.totalorder %v317, %v419
  %vm579 = vcmp.eq.s32.totalorder %v317, %v433
  %vm580 = vcmp.eq.s32.totalorder %v317, %v447
  %vm581 = vcmp.eq.s32.totalorder %v317, %v461
  %vm582 = vcmp.eq.s32.totalorder %v317, %v475
  %vm583 = vcmp.eq.s32.totalorder %v317, %v489
  %vm584 = vcmp.eq.s32.totalorder %v317, %v503
  %vm585 = vcmp.eq.s32.totalorder %v317, %v517
  %vm586 = vcmp.eq.s32.totalorder %v317, %v531
  %vm587 = vcmp.eq.s32.totalorder %v317, %v545
  %vm588 = vcmp.eq.s32.totalorder %v317, %v559
  %vm589 = vcmp.eq.s32.totalorder %v317, %v573
  %v590 = vsel %vm574, 1, 0
  %v591 = vsel %vm575, 1, 0
  %v592 = vsel %vm576, 1, 0
  %v593 = vsel %vm577, 1, 0
  %v594 = vsel %vm578, 1, 0
  %v595 = vsel %vm579, 1, 0
  %v596 = vsel %vm580, 1, 0
  %v597 = vsel %vm581, 1, 0
  %v598 = vsel %vm582, 1, 0
  %v599 = vsel %vm583, 1, 0
  %v600 = vsel %vm584, 1, 0
  %v601 = vsel %vm585, 1, 0
  %v602 = vsel %vm586, 1, 0
  %v603 = vsel %vm587, 1, 0
  %v604 = vsel %vm588, 1, 0
  %v605 = vsel %vm589, 1, 0
  %v606 = vcvt.s32.f32 %v590
  %v607 = vcvt.s32.f32 %v591
  %v608 = vcvt.s32.f32 %v592
  %v609 = vcvt.s32.f32 %v593
  %v610 = vcvt.s32.f32 %v594
  %v611 = vcvt.s32.f32 %v595
  %v612 = vcvt.s32.f32 %v596
  %v613 = vcvt.s32.f32 %v597
  %v614 = vcvt.s32.f32 %v598
  %v615 = vcvt.s32.f32 %v599
  %v616 = vcvt.s32.f32 %v600
  %v617 = vcvt.s32.f32 %v601
  %v618 = vcvt.s32.f32 %v602
  %v619 = vcvt.s32.f32 %v603
  %v620 = vcvt.s32.f32 %v604
  %v621 = vcvt.s32.f32 %v605
  %v622 = vld [vmem:[%s3] sm:$0x1]
  %v623 = vadd.f32 %v606, %v607
  %v624 = vadd.f32 %v623, %v608
  %v625 = vadd.f32 %v624, %v609
  %v626 = vadd.f32 %v625, %v610
  %v627 = vadd.f32 %v626, %v611
  %v628 = vadd.f32 %v627, %v612
  %v629 = vadd.f32 %v628, %v613
  %v630 = vadd.f32 %v629, %v614
  %v631 = vadd.f32 %v630, %v615
  %v632 = vadd.f32 %v631, %v616
  %v633 = vadd.f32 %v632, %v617
  %v634 = vadd.f32 %v633, %v618
  %v635 = vadd.f32 %v634, %v619
  %v636 = vadd.f32 %v635, %v620
  %v637 = vadd.f32 %v636, %v621
  %v638 = vrot.slane %v637, 4
  %v639 = vadd.f32 %v637, %v638
  %v640 = vrot.slane %v639, 2
  %v641 = vadd.f32 %v639, %v640
  %v642 = vrot.slane %v641, 1
  %v643 = vadd.f32 %v641, %v642
  %v644 = vadd.f32 %v622, %v643
  %645 = vst [vmem:[%s3] sm:$0x1] %v644
  %v646 = vld [vmem:[%s4] sm:$0xff]
  %v647 = vld [vmem:[%s4 + $0x8] sm:$0xff]
  %v648 = vld [vmem:[%s4 + $0x10] sm:$0xff]
  %v649 = vld [vmem:[%s4 + $0x18] sm:$0xff]
  %v650 = vld [vmem:[%s4 + $0x20] sm:$0xff]
  %v651 = vld [vmem:[%s4 + $0x28] sm:$0xff]
  %v652 = vld [vmem:[%s4 + $0x30] sm:$0xff]
  %v653 = vld [vmem:[%s4 + $0x38] sm:$0xff]
  %v654 = vld [vmem:[%s4 + $0x40] sm:$0xff]
  %v655 = vld [vmem:[%s4 + $0x48] sm:$0xff]
  %v656 = vld [vmem:[%s4 + $0x50] sm:$0xff]
  %v657 = vld [vmem:[%s4 + $0x58] sm:$0xff]
  %v658 = vld [vmem:[%s4 + $0x60] sm:$0xff]
  %v659 = vld [vmem:[%s4 + $0x68] sm:$0xff]
  %v660 = vld [vmem:[%s4 + $0x70] sm:$0xff]
  %v661 = vld [vmem:[%s4 + $0x78] sm:$0xff]
  %v662 = vpack.c.bf16 %v607, %v606
  %v663 = vpack.c.bf16 %v609, %v608
  %v664 = vpack.c.bf16 %v611, %v610
  %v665 = vpack.c.bf16 %v613, %v612
  %v666 = vpack.c.bf16 %v615, %v614
  %v667 = vpack.c.bf16 %v617, %v616
  %v668 = vpack.c.bf16 %v619, %v618
  %v669 = vpack.c.bf16 %v621, %v620
  %670 = vxpose.xlu0.c.b16.start [1/8] %v662, 128
  %671 = vxpose.xlu0.c.b16.cont [2/8] %v663, 128
  %672 = vxpose.xlu0.c.b16.cont [3/8] %v664, 128
  %673 = vxpose.xlu0.c.b16.cont [4/8] %v665, 128
  %674 = vxpose.xlu0.c.b16.cont [5/8] %v666, 128
  %675 = vxpose.xlu0.c.b16.cont [6/8] %v667, 128
  %676 = vxpose.xlu0.c.b16.cont [7/8] %v668, 128
  %677 = vxpose.xlu0.c.b16.end [8/8] %v669, 128
  %v678 = vpop.trf.xlu0
  %v679 = vpop.trf.xlu0
  %v680 = vpop.trf.xlu0
  %v681 = vpop.trf.xlu0
  %v682 = vpop.trf.xlu0
  %v683 = vpop.trf.xlu0
  %v684 = vpop.trf.xlu0
  %v685 = vpop.trf.xlu0
  %694 = vmatpush.bf16.msra.mxu0 %v110
  %695 = vmatpush.bf16.msra.mxu0 %v109
  %696 = vmatpush.bf16.msra.mxu0 %v108
  %697 = vmatpush.bf16.msra.mxu0 %v107
  %698 = vmatpush.bf16.msra.mxu0 %v106
  %699 = vmatpush.bf16.msra.mxu0 %v105
  %700 = vmatpush.bf16.msra.mxu0 %v104
  %701 = vmatpush.bf16.msra.mxu0 %v103
  %702 = vmatmul.bf16.gmra.mxu0 %v678
  %v703 = vpop.f32.mrf.mxu0
  %v704 = vadd.f32 0.0, %v703
  %v705 = vpop.f32.mrf.mxu0
  %v706 = vadd.f32 0.0, %v705
  %707 = vmatmul.bf16.gmra.mxu0 %v679
  %v708 = vpop.f32.mrf.mxu0
  %v709 = vadd.f32 0.0, %v708
  %v710 = vpop.f32.mrf.mxu0
  %v711 = vadd.f32 0.0, %v710
  %712 = vmatmul.bf16.gmra.mxu0 %v680
  %v713 = vpop.f32.mrf.mxu0
  %v714 = vadd.f32 0.0, %v713
  %v715 = vpop.f32.mrf.mxu0
  %v716 = vadd.f32 0.0, %v715
  %717 = vmatmul.bf16.gmra.mxu0 %v681
  %v718 = vpop.f32.mrf.mxu0
  %v719 = vadd.f32 0.0, %v718
  %v720 = vpop.f32.mrf.mxu0
  %v721 = vadd.f32 0.0, %v720
  %722 = vmatmul.bf16.gmra.mxu0 %v682
  %v723 = vpop.f32.mrf.mxu0
  %v724 = vadd.f32 0.0, %v723
  %v725 = vpop.f32.mrf.mxu0
  %v726 = vadd.f32 0.0, %v725
  %727 = vmatmul.bf16.gmra.mxu0 %v683
  %v728 = vpop.f32.mrf.mxu0
  %v729 = vadd.f32 0.0, %v728
  %v730 = vpop.f32.mrf.mxu0
  %v731 = vadd.f32 0.0, %v730
  %732 = vmatmul.bf16.gmra.mxu0 %v684
  %v733 = vpop.f32.mrf.mxu0
  %v734 = vadd.f32 0.0, %v733
  %v735 = vpop.f32.mrf.mxu0
  %v736 = vadd.f32 0.0, %v735
  %737 = vmatmul.bf16.gmra.mxu0 %v685
  %v738 = vpop.f32.mrf.mxu0
  %v739 = vadd.f32 0.0, %v738
  %v740 = vpop.f32.mrf.mxu0
  %v741 = vadd.f32 0.0, %v740
  %742 = vdwg.mxu0
  %v743 = vadd.f32 %v646, %v704
  %v744 = vadd.f32 %v647, %v706
  %v745 = vadd.f32 %v648, %v709
  %v746 = vadd.f32 %v649, %v711
  %v747 = vadd.f32 %v650, %v714
  %v748 = vadd.f32 %v651, %v716
  %v749 = vadd.f32 %v652, %v719
  %v750 = vadd.f32 %v653, %v721
  %v751 = vadd.f32 %v654, %v724
  %v752 = vadd.f32 %v655, %v726
  %v753 = vadd.f32 %v656, %v729
  %v754 = vadd.f32 %v657, %v731
  %v755 = vadd.f32 %v658, %v734
  %v756 = vadd.f32 %v659, %v736
  %v757 = vadd.f32 %v660, %v739
  %v758 = vadd.f32 %v661, %v741
  %759 = vst.msk [vmem:[%s4] sm:$0xff] %vm151, %v743
  %760 = vst.msk [vmem:[%s4 + $0x8] sm:$0xff] %vm151, %v744
  %761 = vst.msk [vmem:[%s4 + $0x10] sm:$0xff] %vm151, %v745
  %762 = vst.msk [vmem:[%s4 + $0x18] sm:$0xff] %vm151, %v746
  %763 = vst.msk [vmem:[%s4 + $0x20] sm:$0xff] %vm151, %v747
  %764 = vst.msk [vmem:[%s4 + $0x28] sm:$0xff] %vm151, %v748
  %765 = vst.msk [vmem:[%s4 + $0x30] sm:$0xff] %vm151, %v749
  %766 = vst.msk [vmem:[%s4 + $0x38] sm:$0xff] %vm151, %v750
  %767 = vst.msk [vmem:[%s4 + $0x40] sm:$0xff] %vm151, %v751
  %768 = vst.msk [vmem:[%s4 + $0x48] sm:$0xff] %vm151, %v752
  %769 = vst.msk [vmem:[%s4 + $0x50] sm:$0xff] %vm151, %v753
  %770 = vst.msk [vmem:[%s4 + $0x58] sm:$0xff] %vm151, %v754
  %771 = vst.msk [vmem:[%s4 + $0x60] sm:$0xff] %vm151, %v755
  %772 = vst.msk [vmem:[%s4 + $0x68] sm:$0xff] %vm151, %v756
  %773 = vst.msk [vmem:[%s4 + $0x70] sm:$0xff] %vm151, %v757
  %774 = vst.msk [vmem:[%s4 + $0x78] sm:$0xff] %vm151, %v758
  // Predicated region
  $region18: #{closed_call.10} parent=0 // pred_check
    _
  $region19: #{closed_call.10} parent=0 // pred_check_branch
    %776 = sbr.rel (0) target = $region21
  $region20: #{closed_call.10} parent=0 // pred_region
    _
  $region21: #{closed_call.10} parent=0 // pred_fallthru
    _
  // Predicated region
  $region22: #{closed_call.10} parent=0 // pred_check
    _
  $region23: #{closed_call.10} parent=0 // pred_check_branch
    %778 = sbr.rel (0) target = $region25
  $region24: #{closed_call.10} parent=0 // pred_region
    _
  $region25: #{closed_call.10} parent=0 // pred_fallthru
    _
  // Predicated region
  $region26: #{closed_call.10} parent=0 // pred_check
    _
  $region27: #{closed_call.10} parent=0 // pred_check_branch
    %780 = sbr.rel (0) target = $region29
  $region28: #{closed_call.10} parent=0 // pred_region
    _
  $region29: #{closed_call.10} parent=0 // pred_fallthru
    _
  // Predicated region
  $region30: #{closed_call.10} parent=0 // pred_check
    _
  $region31: #{closed_call.10} parent=0 // pred_check_branch
    %782 = sbr.rel (0) target = $region33
  $region32: #{closed_call.10} parent=0 // pred_region
    _
  $region33: #{closed_call.10} parent=0 // pred_fallthru
    _

// kernel: euclidean_codebook_forward.1
$region0: #{euclidean_codebook_forward.1}
  #allocation0 [shape = 'u32[]', space=smem, size = 0x4, offset = 0x4, fixed_abs, tag = 'smem constant byte address 0x4 - core index']
  #allocation1 [shape = 'u32[72,128]{1,0:T(1,128)}', space=vmem, size = 0x9000, scoped, tag = 'internal scratch']
  %s0 = inlined_call_operand.vmem [shape: f32[1,128,32], index: 0, kind: input, shape index: {}]
  %s1 = inlined_call_operand.vmem [shape: f32[1,128,32], index: 1, kind: input, shape index: {}]
  %s2 = inlined_call_operand.vmem [shape: f32[1,128], index: 2, kind: input, shape index: {}]
  %s3 = inlined_call_operand.vmem [shape: f32[1,128,128], index: 3, kind: output, shape index: {0}]
  %s4 = inlined_call_operand.vmem [shape: s32[1,128], index: 4, kind: output, shape index: {1}]
  %s5 = inlined_call_operand.vmem [shape: f32[1,128,32], index: 5, kind: output, shape index: {2}]
  %6 = xla_tuple %s3, %s4, %s5
  %s7 = sld [smem:[#allocation0]]
  $region38: #{euclidean_codebook_forward.1} parent=0
    _
  %s9 = ssub.s32 1, %s7
  %s10 = scalar_select 0, %s9, %s7
  // Predicated region
  $region2: #{euclidean_codebook_forward.1} parent=0 // pred_check
    _
  $region3: #{euclidean_codebook_forward.1} parent=0 // pred_check_branch
    %12 = sbr.rel (0) target = $region5
  $region4: #{euclidean_codebook_forward.1} parent=0 // pred_region
    _
  $region5: #{euclidean_codebook_forward.1} parent=0 // pred_fallthru
    _
  // Predicated region
  $region6: #{euclidean_codebook_forward.1} parent=0 // pred_check
    _
  $region7: #{euclidean_codebook_forward.1} parent=0 // pred_check_branch
    %14 = sbr.rel (0) target = $region9
  $region8: #{euclidean_codebook_forward.1} parent=0 // pred_region
    _
  $region9: #{euclidean_codebook_forward.1} parent=0 // pred_fallthru
    _
  // Predicated region
  $region10: #{euclidean_codebook_forward.1} parent=0 // pred_check
    _
  $region11: #{euclidean_codebook_forward.1} parent=0 // pred_check_branch
    %16 = sbr.rel (0) target = $region13
  $region12: #{euclidean_codebook_forward.1} parent=0 // pred_region
    _
  $region13: #{euclidean_codebook_forward.1} parent=0 // pred_fallthru
    _
  %v17 = vld [vmem:[%s0] sm:$0xff]
  %v18 = vld [vmem:[%s0 + $0x8] sm:$0xff]
  %v19 = vld [vmem:[%s0 + $0x10] sm:$0xff]
  %v20 = vld [vmem:[%s0 + $0x18] sm:$0xff]
  %v21 = vld [vmem:[%s0 + $0x20] sm:$0xff]
  %v22 = vld [vmem:[%s0 + $0x28] sm:$0xff]
  %v23 = vld [vmem:[%s0 + $0x30] sm:$0xff]
  %v24 = vld [vmem:[%s0 + $0x38] sm:$0xff]
  %v25 = vld [vmem:[%s0 + $0x40] sm:$0xff]
  %v26 = vld [vmem:[%s0 + $0x48] sm:$0xff]
  %v27 = vld [vmem:[%s0 + $0x50] sm:$0xff]
  %v28 = vld [vmem:[%s0 + $0x58] sm:$0xff]
  %v29 = vld [vmem:[%s0 + $0x60] sm:$0xff]
  %v30 = vld [vmem:[%s0 + $0x68] sm:$0xff]
  %v31 = vld [vmem:[%s0 + $0x70] sm:$0xff]
  %v32 = vld [vmem:[%s0 + $0x78] sm:$0xff]
  %v33 = vld [vmem:[%s1] sm:$0xff]
  %v34 = vld [vmem:[%s1 + $0x8] sm:$0xff]
  %v35 = vld [vmem:[%s1 + $0x10] sm:$0xff]
  %v36 = vld [vmem:[%s1 + $0x18] sm:$0xff]
  %v37 = vld [vmem:[%s1 + $0x20] sm:$0xff]
  %v38 = vld [vmem:[%s1 + $0x28] sm:$0xff]
  %v39 = vld [vmem:[%s1 + $0x30] sm:$0xff]
  %v40 = vld [vmem:[%s1 + $0x38] sm:$0xff]
  %v41 = vld [vmem:[%s1 + $0x40] sm:$0xff]
  %v42 = vld [vmem:[%s1 + $0x48] sm:$0xff]
  %v43 = vld [vmem:[%s1 + $0x50] sm:$0xff]
  %v44 = vld [vmem:[%s1 + $0x58] sm:$0xff]
  %v45 = vld [vmem:[%s1 + $0x60] sm:$0xff]
  %v46 = vld [vmem:[%s1 + $0x68] sm:$0xff]
  %v47 = vld [vmem:[%s1 + $0x70] sm:$0xff]
  %v48 = vld [vmem:[%s1 + $0x78] sm:$0xff]
  %v49 = vld [vmem:[%s2] sm:$0x1]
  %vm50 = vcmask 261120
  %v52 = vsel %vm50, %v17, 0
  %v55 = vsel %vm50, %v18, 0
  %v58 = vsel %vm50, %v19, 0
  %v61 = vsel %vm50, %v20, 0
  %v64 = vsel %vm50, %v21, 0
  %v67 = vsel %vm50, %v22, 0
  %v70 = vsel %vm50, %v23, 0
  %v73 = vsel %vm50, %v24, 0
  %v76 = vsel %vm50, %v25, 0
  %v79 = vsel %vm50, %v26, 0
  %v82 = vsel %vm50, %v27, 0
  %v85 = vsel %vm50, %v28, 0
  %v88 = vsel %vm50, %v29, 0
  %v91 = vsel %vm50, %v30, 0
  %v94 = vsel %vm50, %v31, 0
  %v97 = vsel %vm50, %v32, 0
  %v100 = vsel %vm50, %v33, 0
  %v103 = vsel %vm50, %v34, 0
  %v106 = vsel %vm50, %v35, 0
  %v109 = vsel %vm50, %v36, 0
  %v112 = vsel %vm50, %v37, 0
  %v115 = vsel %vm50, %v38, 0
  %v118 = vsel %vm50, %v39, 0
  %v121 = vsel %vm50, %v40, 0
  %v124 = vsel %vm50, %v41, 0
  %v127 = vsel %vm50, %v42, 0
  %v130 = vsel %vm50, %v43, 0
  %v133 = vsel %vm50, %v44, 0
  %v136 = vsel %vm50, %v45, 0
  %v139 = vsel %vm50, %v46, 0
  %v142 = vsel %vm50, %v47, 0
  %v145 = vsel %vm50, %v48, 0
  %v147 = vand.u32 %v145, 4294901760
  %148 = vmatpush.xpose.msra.mxu0 %v147
  %v149 = vand.u32 %v142, 4294901760
  %150 = vmatpush.xpose.msra.mxu0 %v149
  %v151 = vand.u32 %v139, 4294901760
  %152 = vmatpush.xpose.msra.mxu0 %v151
  %v153 = vand.u32 %v136, 4294901760
  %154 = vmatpush.xpose.msra.mxu0 %v153
  %v155 = vand.u32 %v133, 4294901760
  %156 = vmatpush.xpose.msra.mxu0 %v155
  %v157 = vand.u32 %v130, 4294901760
  %158 = vmatpush.xpose.msra.mxu0 %v157
  %v159 = vand.u32 %v127, 4294901760
  %160 = vmatpush.xpose.msra.mxu0 %v159
  %v161 = vand.u32 %v124, 4294901760
  %162 = vmatpush.xpose.msra.mxu0 %v161
  %v163 = vand.u32 %v121, 4294901760
  %164 = vmatpush.xpose.msra.mxu0 %v163
  %v165 = vand.u32 %v118, 4294901760
  %166 = vmatpush.xpose.msra.mxu0 %v165
  %v167 = vand.u32 %v115, 4294901760
  %168 = vmatpush.xpose.msra.mxu0 %v167
  %v169 = vand.u32 %v112, 4294901760
  %170 = vmatpush.xpose.msra.mxu0 %v169
  %v171 = vand.u32 %v109, 4294901760
  %172 = vmatpush.xpose.msra.mxu0 %v171
  %v173 = vand.u32 %v106, 4294901760
  %174 = vmatpush.xpose.msra.mxu0 %v173
  %v175 = vand.u32 %v103, 4294901760
  %176 = vmatpush.xpose.msra.mxu0 %v175
  %v177 = vand.u32 %v100, 4294901760
  %178 = vmatpush.xpose.msra.mxu0 %v177
  %v179 = vand.u32 %v52, 4294901760
  %v180 = vsub.f32 %v52, %v179
  %v181 = vand.u32 %v180, 4294901760
  %v182 = vsub.f32 %v180, %v181
  %v183 = vand.u32 %v182, 4294901760
  %184 = vmatmul.f32.gmra.mxu0 %v183
  %v185 = vpop.f32.mrf.mxu0
  %v186 = vadd.f32 0.0, %v185
  %v187 = vand.u32 %v55, 4294901760
  %v188 = vsub.f32 %v55, %v187
  %v189 = vand.u32 %v188, 4294901760
  %v190 = vsub.f32 %v188, %v189
  %v191 = vand.u32 %v190, 4294901760
  %192 = vmatmul.f32.gmra.mxu0 %v191
  %v193 = vpop.f32.mrf.mxu0
  %v194 = vadd.f32 0.0, %v193
  %v195 = vand.u32 %v58, 4294901760
  %v196 = vsub.f32 %v58, %v195
  %v197 = vand.u32 %v196, 4294901760
  %v198 = vsub.f32 %v196, %v197
  %v199 = vand.u32 %v198, 4294901760
  %200 = vmatmul.f32.gmra.mxu0 %v199
  %v201 = vpop.f32.mrf.mxu0
  %v202 = vadd.f32 0.0, %v201
  %v203 = vand.u32 %v61, 4294901760
  %v204 = vsub.f32 %v61, %v203
  %v205 = vand.u32 %v204, 4294901760
  %v206 = vsub.f32 %v204, %v205
  %v207 = vand.u32 %v206, 4294901760
  %208 = vmatmul.f32.gmra.mxu0 %v207
  %v209 = vpop.f32.mrf.mxu0
  %v210 = vadd.f32 0.0, %v209
  %v211 = vand.u32 %v64, 4294901760
  %v212 = vsub.f32 %v64, %v211
  %v213 = vand.u32 %v212, 4294901760
  %v214 = vsub.f32 %v212, %v213
  %v215 = vand.u32 %v214, 4294901760
  %216 = vmatmul.f32.gmra.mxu0 %v215
  %v217 = vpop.f32.mrf.mxu0
  %v218 = vadd.f32 0.0, %v217
  %v219 = vand.u32 %v67, 4294901760
  %v220 = vsub.f32 %v67, %v219
  %v221 = vand.u32 %v220, 4294901760
  %v222 = vsub.f32 %v220, %v221
  %v223 = vand.u32 %v222, 4294901760
  %224 = vmatmul.f32.gmra.mxu0 %v223
  %v225 = vpop.f32.mrf.mxu0
  %v226 = vadd.f32 0.0, %v225
  %v227 = vand.u32 %v70, 4294901760
  %v228 = vsub.f32 %v70, %v227
  %v229 = vand.u32 %v228, 4294901760
  %v230 = vsub.f32 %v228, %v229
  %v231 = vand.u32 %v230, 4294901760
  %232 = vmatmul.f32.gmra.mxu0 %v231
  %v233 = vpop.f32.mrf.mxu0
  %v234 = vadd.f32 0.0, %v233
  %v235 = vand.u32 %v73, 4294901760
  %v236 = vsub.f32 %v73, %v235
  %v237 = vand.u32 %v236, 4294901760
  %v238 = vsub.f32 %v236, %v237
  %v239 = vand.u32 %v238, 4294901760
  %240 = vmatmul.f32.gmra.mxu0 %v239
  %v241 = vpop.f32.mrf.mxu0
  %v242 = vadd.f32 0.0, %v241
  %v243 = vand.u32 %v76, 4294901760
  %v244 = vsub.f32 %v76, %v243
  %v245 = vand.u32 %v244, 4294901760
  %v246 = vsub.f32 %v244, %v245
  %v247 = vand.u32 %v246, 4294901760
  %248 = vmatmul.f32.gmra.mxu0 %v247
  %v249 = vpop.f32.mrf.mxu0
  %v250 = vadd.f32 0.0, %v249
  %v251 = vand.u32 %v79, 4294901760
  %v252 = vsub.f32 %v79, %v251
  %v253 = vand.u32 %v252, 4294901760
  %v254 = vsub.f32 %v252, %v253
  %v255 = vand.u32 %v254, 4294901760
  %256 = vmatmul.f32.gmra.mxu0 %v255
  %v257 = vpop.f32.mrf.mxu0
  %v258 = vadd.f32 0.0, %v257
  %v259 = vand.u32 %v82, 4294901760
  %v260 = vsub.f32 %v82, %v259
  %v261 = vand.u32 %v260, 4294901760
  %v262 = vsub.f32 %v260, %v261
  %v263 = vand.u32 %v262, 4294901760
  %264 = vmatmul.f32.gmra.mxu0 %v263
  %v265 = vpop.f32.mrf.mxu0
  %v266 = vadd.f32 0.0, %v265
  %v267 = vand.u32 %v85, 4294901760
  %v268 = vsub.f32 %v85, %v267
  %v269 = vand.u32 %v268, 4294901760
  %v270 = vsub.f32 %v268, %v269
  %v271 = vand.u32 %v270, 4294901760
  %272 = vmatmul.f32.gmra.mxu0 %v271
  %v273 = vpop.f32.mrf.mxu0
  %v274 = vadd.f32 0.0, %v273
  %v275 = vand.u32 %v88, 4294901760
  %v276 = vsub.f32 %v88, %v275
  %v277 = vand.u32 %v276, 4294901760
  %v278 = vsub.f32 %v276, %v277
  %v279 = vand.u32 %v278, 4294901760
  %280 = vmatmul.f32.gmra.mxu0 %v279
  %v281 = vpop.f32.mrf.mxu0
  %v282 = vadd.f32 0.0, %v281
  %v283 = vand.u32 %v91, 4294901760
  %v284 = vsub.f32 %v91, %v283
  %v285 = vand.u32 %v284, 4294901760
  %v286 = vsub.f32 %v284, %v285
  %v287 = vand.u32 %v286, 4294901760
  %288 = vmatmul.f32.gmra.mxu0 %v287
  %v289 = vpop.f32.mrf.mxu0
  %v290 = vadd.f32 0.0, %v289
  %v291 = vand.u32 %v94, 4294901760
  %v292 = vsub.f32 %v94, %v291
  %v293 = vand.u32 %v292, 4294901760
  %v294 = vsub.f32 %v292, %v293
  %v295 = vand.u32 %v294, 4294901760
  %296 = vmatmul.f32.gmra.mxu0 %v295
  %v297 = vpop.f32.mrf.mxu0
  %v298 = vadd.f32 0.0, %v297
  %v299 = vand.u32 %v97, 4294901760
  %v300 = vsub.f32 %v97, %v299
  %v301 = vand.u32 %v300, 4294901760
  %v302 = vsub.f32 %v300, %v301
  %v303 = vand.u32 %v302, 4294901760
  %304 = vmatmul.f32.gmra.mxu0 %v303
  %v305 = vpop.f32.mrf.mxu0
  %v306 = vadd.f32 0.0, %v305
  %307 = vdwg.mxu0
  %v308 = vand.u32 %v145, 4294901760
  %v309 = vsub.f32 %v145, %v308
  %v310 = vand.u32 %v309, 4294901760
  %v311 = vsub.f32 %v309, %v310
  %v312 = vand.u32 %v311, 4294901760
  %313 = vmatpush.xpose.msra.mxu0 %v312
  %v314 = vand.u32 %v142, 4294901760
  %v315 = vsub.f32 %v142, %v314
  %v316 = vand.u32 %v315, 4294901760
  %v317 = vsub.f32 %v315, %v316
  %v318 = vand.u32 %v317, 4294901760
  %319 = vmatpush.xpose.msra.mxu0 %v318
  %v320 = vand.u32 %v139, 4294901760
  %v321 = vsub.f32 %v139, %v320
  %v322 = vand.u32 %v321, 4294901760
  %v323 = vsub.f32 %v321, %v322
  %v324 = vand.u32 %v323, 4294901760
  %325 = vmatpush.xpose.msra.mxu0 %v324
  %v326 = vand.u32 %v136, 4294901760
  %v327 = vsub.f32 %v136, %v326
  %v328 = vand.u32 %v327, 4294901760
  %v329 = vsub.f32 %v327, %v328
  %v330 = vand.u32 %v329, 4294901760
  %331 = vmatpush.xpose.msra.mxu0 %v330
  %v332 = vand.u32 %v133, 4294901760
  %v333 = vsub.f32 %v133, %v332
  %v334 = vand.u32 %v333, 4294901760
  %v335 = vsub.f32 %v333, %v334
  %v336 = vand.u32 %v335, 4294901760
  %337 = vmatpush.xpose.msra.mxu0 %v336
  %v338 = vand.u32 %v130, 4294901760
  %v339 = vsub.f32 %v130, %v338
  %v340 = vand.u32 %v339, 4294901760
  %v341 = vsub.f32 %v339, %v340
  %v342 = vand.u32 %v341, 4294901760
  %343 = vmatpush.xpose.msra.mxu0 %v342
  %v344 = vand.u32 %v127, 4294901760
  %v345 = vsub.f32 %v127, %v344
  %v346 = vand.u32 %v345, 4294901760
  %v347 = vsub.f32 %v345, %v346
  %v348 = vand.u32 %v347, 4294901760
  %349 = vmatpush.xpose.msra.mxu0 %v348
  %v350 = vand.u32 %v124, 4294901760
  %v351 = vsub.f32 %v124, %v350
  %v352 = vand.u32 %v351, 4294901760
  %v353 = vsub.f32 %v351, %v352
  %v354 = vand.u32 %v353, 4294901760
  %355 = vmatpush.xpose.msra.mxu0 %v354
  %v356 = vand.u32 %v121, 4294901760
  %v357 = vsub.f32 %v121, %v356
  %v358 = vand.u32 %v357, 4294901760
  %v359 = vsub.f32 %v357, %v358
  %v360 = vand.u32 %v359, 4294901760
  %361 = vmatpush.xpose.msra.mxu0 %v360
  %v362 = vand.u32 %v118, 4294901760
  %v363 = vsub.f32 %v118, %v362
  %v364 = vand.u32 %v363, 4294901760
  %v365 = vsub.f32 %v363, %v364
  %v366 = vand.u32 %v365, 4294901760
  %367 = vmatpush.xpose.msra.mxu0 %v366
  %v368 = vand.u32 %v115, 4294901760
  %v369 = vsub.f32 %v115, %v368
  %v370 = vand.u32 %v369, 4294901760
  %v371 = vsub.f32 %v369, %v370
  %v372 = vand.u32 %v371, 4294901760
  %373 = vmatpush.xpose.msra.mxu0 %v372
  %v374 = vand.u32 %v112, 4294901760
  %v375 = vsub.f32 %v112, %v374
  %v376 = vand.u32 %v375, 4294901760
  %v377 = vsub.f32 %v375, %v376
  %v378 = vand.u32 %v377, 4294901760
  %379 = vmatpush.xpose.msra.mxu0 %v378
  %v380 = vand.u32 %v109, 4294901760
  %v381 = vsub.f32 %v109, %v380
  %v382 = vand.u32 %v381, 4294901760
  %v383 = vsub.f32 %v381, %v382
  %v384 = vand.u32 %v383, 4294901760
  %385 = vmatpush.xpose.msra.mxu0 %v384
  %v386 = vand.u32 %v106, 4294901760
  %v387 = vsub.f32 %v106, %v386
  %v388 = vand.u32 %v387, 4294901760
  %v389 = vsub.f32 %v387, %v388
  %v390 = vand.u32 %v389, 4294901760
  %391 = vmatpush.xpose.msra.mxu0 %v390
  %v392 = vand.u32 %v103, 4294901760
  %v393 = vsub.f32 %v103, %v392
  %v394 = vand.u32 %v393, 4294901760
  %v395 = vsub.f32 %v393, %v394
  %v396 = vand.u32 %v395, 4294901760
  %397 = vmatpush.xpose.msra.mxu0 %v396
  %v398 = vand.u32 %v100, 4294901760
  %v399 = vsub.f32 %v100, %v398
  %v400 = vand.u32 %v399, 4294901760
  %v401 = vsub.f32 %v399, %v400
  %v402 = vand.u32 %v401, 4294901760
  %403 = vmatpush.xpose.msra.mxu0 %v402
  %v404 = vand.u32 %v52, 4294901760
  %405 = vmatmul.f32.gmra.mxu0 %v404
  %v406 = vpop.f32.mrf.mxu0
  %v407 = vadd.f32 %v186, %v406
  %v408 = vand.u32 %v55, 4294901760
  %409 = vmatmul.f32.gmra.mxu0 %v408
  %v410 = vpop.f32.mrf.mxu0
  %v411 = vadd.f32 %v194, %v410
  %v412 = vand.u32 %v58, 4294901760
  %413 = vmatmul.f32.gmra.mxu0 %v412
  %v414 = vpop.f32.mrf.mxu0
  %v415 = vadd.f32 %v202, %v414
  %v416 = vand.u32 %v61, 4294901760
  %417 = vmatmul.f32.gmra.mxu0 %v416
  %v418 = vpop.f32.mrf.mxu0
  %v419 = vadd.f32 %v210, %v418
  %v420 = vand.u32 %v64, 4294901760
  %421 = vmatmul.f32.gmra.mxu0 %v420
  %v422 = vpop.f32.mrf.mxu0
  %v423 = vadd.f32 %v218, %v422
  %v424 = vand.u32 %v67, 4294901760
  %425 = vmatmul.f32.gmra.mxu0 %v424
  %v426 = vpop.f32.mrf.mxu0
  %v427 = vadd.f32 %v226, %v426
  %v428 = vand.u32 %v70, 4294901760
  %429 = vmatmul.f32.gmra.mxu0 %v428
  %v430 = vpop.f32.mrf.mxu0
  %v431 = vadd.f32 %v234, %v430
  %v432 = vand.u32 %v73, 4294901760
  %433 = vmatmul.f32.gmra.mxu0 %v432
  %v434 = vpop.f32.mrf.mxu0
  %v435 = vadd.f32 %v242, %v434
  %v436 = vand.u32 %v76, 4294901760
  %437 = vmatmul.f32.gmra.mxu0 %v436
  %v438 = vpop.f32.mrf.mxu0
  %v439 = vadd.f32 %v250, %v438
  %v440 = vand.u32 %v79, 4294901760
  %441 = vmatmul.f32.gmra.mxu0 %v440
  %v442 = vpop.f32.mrf.mxu0
  %v443 = vadd.f32 %v258, %v442
  %v444 = vand.u32 %v82, 4294901760
  %445 = vmatmul.f32.gmra.mxu0 %v444
  %v446 = vpop.f32.mrf.mxu0
  %v447 = vadd.f32 %v266, %v446
  %v448 = vand.u32 %v85, 4294901760
  %449 = vmatmul.f32.gmra.mxu0 %v448
  %v450 = vpop.f32.mrf.mxu0
  %v451 = vadd.f32 %v274, %v450
  %v452 = vand.u32 %v88, 4294901760
  %453 = vmatmul.f32.gmra.mxu0 %v452
  %v454 = vpop.f32.mrf.mxu0
  %v455 = vadd.f32 %v282, %v454
  %v456 = vand.u32 %v91, 4294901760
  %457 = vmatmul.f32.gmra.mxu0 %v456
  %v458 = vpop.f32.mrf.mxu0
  %v459 = vadd.f32 %v290, %v458
  %v460 = vand.u32 %v94, 4294901760
  %461 = vmatmul.f32.gmra.mxu0 %v460
  %v462 = vpop.f32.mrf.mxu0
  %v463 = vadd.f32 %v298, %v462
  %v464 = vand.u32 %v97, 4294901760
  %465 = vmatmul.f32.gmra.mxu0 %v464
  %v466 = vpop.f32.mrf.mxu0
  %v467 = vadd.f32 %v306, %v466
  %468 = vdwg.mxu0
  %v469 = vand.u32 %v145, 4294901760
  %v470 = vsub.f32 %v145, %v469
  %471 = vmatpush.xpose.msra.mxu0 %v470
  %v472 = vand.u32 %v142, 4294901760
  %v473 = vsub.f32 %v142, %v472
  %474 = vmatpush.xpose.msra.mxu0 %v473
  %v475 = vand.u32 %v139, 4294901760
  %v476 = vsub.f32 %v139, %v475
  %477 = vmatpush.xpose.msra.mxu0 %v476
  %v478 = vand.u32 %v136, 4294901760
  %v479 = vsub.f32 %v136, %v478
  %480 = vmatpush.xpose.msra.mxu0 %v479
  %v481 = vand.u32 %v133, 4294901760
  %v482 = vsub.f32 %v133, %v481
  %483 = vmatpush.xpose.msra.mxu0 %v482
  %v484 = vand.u32 %v130, 4294901760
  %v485 = vsub.f32 %v130, %v484
  %486 = vmatpush.xpose.msra.mxu0 %v485
  %v487 = vand.u32 %v127, 4294901760
  %v488 = vsub.f32 %v127, %v487
  %489 = vmatpush.xpose.msra.mxu0 %v488
  %v490 = vand.u32 %v124, 4294901760
  %v491 = vsub.f32 %v124, %v490
  %492 = vmatpush.xpose.msra.mxu0 %v491
  %v493 = vand.u32 %v121, 4294901760
  %v494 = vsub.f32 %v121, %v493
  %495 = vmatpush.xpose.msra.mxu0 %v494
  %v496 = vand.u32 %v118, 4294901760
  %v497 = vsub.f32 %v118, %v496
  %498 = vmatpush.xpose.msra.mxu0 %v497
  %v499 = vand.u32 %v115, 4294901760
  %v500 = vsub.f32 %v115, %v499
  %501 = vmatpush.xpose.msra.mxu0 %v500
  %v502 = vand.u32 %v112, 4294901760
  %v503 = vsub.f32 %v112, %v502
  %504 = vmatpush.xpose.msra.mxu0 %v503
  %v505 = vand.u32 %v109, 4294901760
  %v506 = vsub.f32 %v109, %v505
  %507 = vmatpush.xpose.msra.mxu0 %v506
  %v508 = vand.u32 %v106, 4294901760
  %v509 = vsub.f32 %v106, %v508
  %510 = vmatpush.xpose.msra.mxu0 %v509
  %v511 = vand.u32 %v103, 4294901760
  %v512 = vsub.f32 %v103, %v511
  %513 = vmatpush.xpose.msra.mxu0 %v512
  %v514 = vand.u32 %v100, 4294901760
  %v515 = vsub.f32 %v100, %v514
  %516 = vmatpush.xpose.msra.mxu0 %v515
  %v517 = vand.u32 %v52, 4294901760
  %v518 = vsub.f32 %v52, %v517
  %519 = vmatmul.f32.gmra.mxu0 %v518
  %v520 = vpop.f32.mrf.mxu0
  %v521 = vadd.f32 %v407, %v520
  %v522 = vand.u32 %v55, 4294901760
  %v523 = vsub.f32 %v55, %v522
  %524 = vmatmul.f32.gmra.mxu0 %v523
  %v525 = vpop.f32.mrf.mxu0
  %v526 = vadd.f32 %v411, %v525
  %v527 = vand.u32 %v58, 4294901760
  %v528 = vsub.f32 %v58, %v527
  %529 = vmatmul.f32.gmra.mxu0 %v528
  %v530 = vpop.f32.mrf.mxu0
  %v531 = vadd.f32 %v415, %v530
  %v532 = vand.u32 %v61, 4294901760
  %v533 = vsub.f32 %v61, %v532
  %534 = vmatmul.f32.gmra.mxu0 %v533
  %v535 = vpop.f32.mrf.mxu0
  %v536 = vadd.f32 %v419, %v535
  %v537 = vand.u32 %v64, 4294901760
  %v538 = vsub.f32 %v64, %v537
  %539 = vmatmul.f32.gmra.mxu0 %v538
  %v540 = vpop.f32.mrf.mxu0
  %v541 = vadd.f32 %v423, %v540
  %v542 = vand.u32 %v67, 4294901760
  %v543 = vsub.f32 %v67, %v542
  %544 = vmatmul.f32.gmra.mxu0 %v543
  %v545 = vpop.f32.mrf.mxu0
  %v546 = vadd.f32 %v427, %v545
  %v547 = vand.u32 %v70, 4294901760
  %v548 = vsub.f32 %v70, %v547
  %549 = vmatmul.f32.gmra.mxu0 %v548
  %v550 = vpop.f32.mrf.mxu0
  %v551 = vadd.f32 %v431, %v550
  %v552 = vand.u32 %v73, 4294901760
  %v553 = vsub.f32 %v73, %v552
  %554 = vmatmul.f32.gmra.mxu0 %v553
  %v555 = vpop.f32.mrf.mxu0
  %v556 = vadd.f32 %v435, %v555
  %v557 = vand.u32 %v76, 4294901760
  %v558 = vsub.f32 %v76, %v557
  %559 = vmatmul.f32.gmra.mxu0 %v558
  %v560 = vpop.f32.mrf.mxu0
  %v561 = vadd.f32 %v439, %v560
  %v562 = vand.u32 %v79, 4294901760
  %v563 = vsub.f32 %v79, %v562
  %564 = vmatmul.f32.gmra.mxu0 %v563
  %v565 = vpop.f32.mrf.mxu0
  %v566 = vadd.f32 %v443, %v565
  %v567 = vand.u32 %v82, 4294901760
  %v568 = vsub.f32 %v82, %v567
  %569 = vmatmul.f32.gmra.mxu0 %v568
  %v570 = vpop.f32.mrf.mxu0
  %v571 = vadd.f32 %v447, %v570
  %v572 = vand.u32 %v85, 4294901760
  %v573 = vsub.f32 %v85, %v572
  %574 = vmatmul.f32.gmra.mxu0 %v573
  %v575 = vpop.f32.mrf.mxu0
  %v576 = vadd.f32 %v451, %v575
  %v577 = vand.u32 %v88, 4294901760
  %v578 = vsub.f32 %v88, %v577
  %579 = vmatmul.f32.gmra.mxu0 %v578
  %v580 = vpop.f32.mrf.mxu0
  %v581 = vadd.f32 %v455, %v580
  %v582 = vand.u32 %v91, 4294901760
  %v583 = vsub.f32 %v91, %v582
  %584 = vmatmul.f32.gmra.mxu0 %v583
  %v585 = vpop.f32.mrf.mxu0
  %v586 = vadd.f32 %v459, %v585
  %v587 = vand.u32 %v94, 4294901760
  %v588 = vsub.f32 %v94, %v587
  %589 = vmatmul.f32.gmra.mxu0 %v588
  %v590 = vpop.f32.mrf.mxu0
  %v591 = vadd.f32 %v463, %v590
  %v592 = vand.u32 %v97, 4294901760
  %v593 = vsub.f32 %v97, %v592
  %594 = vmatmul.f32.gmra.mxu0 %v593
  %v595 = vpop.f32.mrf.mxu0
  %v596 = vadd.f32 %v467, %v595
  %597 = vdwg.mxu0
  %v598 = vand.u32 %v145, 4294901760
  %599 = vmatpush.xpose.msra.mxu0 %v598
  %v600 = vand.u32 %v142, 4294901760
  %601 = vmatpush.xpose.msra.mxu0 %v600
  %v602 = vand.u32 %v139, 4294901760
  %603 = vmatpush.xpose.msra.mxu0 %v602
  %v604 = vand.u32 %v136, 4294901760
  %605 = vmatpush.xpose.msra.mxu0 %v604
  %v606 = vand.u32 %v133, 4294901760
  %607 = vmatpush.xpose.msra.mxu0 %v606
  %v608 = vand.u32 %v130, 4294901760
  %609 = vmatpush.xpose.msra.mxu0 %v608
  %v610 = vand.u32 %v127, 4294901760
  %611 = vmatpush.xpose.msra.mxu0 %v610
  %v612 = vand.u32 %v124, 4294901760
  %613 = vmatpush.xpose.msra.mxu0 %v612
  %v614 = vand.u32 %v121, 4294901760
  %615 = vmatpush.xpose.msra.mxu0 %v614
  %v616 = vand.u32 %v118, 4294901760
  %617 = vmatpush.xpose.msra.mxu0 %v616
  %v618 = vand.u32 %v115, 4294901760
  %619 = vmatpush.xpose.msra.mxu0 %v618
  %v620 = vand.u32 %v112, 4294901760
  %621 = vmatpush.xpose.msra.mxu0 %v620
  %v622 = vand.u32 %v109, 4294901760
  %623 = vmatpush.xpose.msra.mxu0 %v622
  %v624 = vand.u32 %v106, 4294901760
  %625 = vmatpush.xpose.msra.mxu0 %v624
  %v626 = vand.u32 %v103, 4294901760
  %627 = vmatpush.xpose.msra.mxu0 %v626
  %v628 = vand.u32 %v100, 4294901760
  %629 = vmatpush.xpose.msra.mxu0 %v628
  %v630 = vand.u32 %v52, 4294901760
  %v631 = vsub.f32 %v52, %v630
  %v632 = vand.u32 %v631, 4294901760
  %633 = vmatmul.f32.gmra.mxu0 %v632
  %v634 = vpop.f32.mrf.mxu0
  %v635 = vadd.f32 %v521, %v634
  %v636 = vand.u32 %v55, 4294901760
  %v637 = vsub.f32 %v55, %v636
  %v638 = vand.u32 %v637, 4294901760
  %639 = vmatmul.f32.gmra.mxu0 %v638
  %v640 = vpop.f32.mrf.mxu0
  %v641 = vadd.f32 %v526, %v640
  %v642 = vand.u32 %v58, 4294901760
  %v643 = vsub.f32 %v58, %v642
  %v644 = vand.u32 %v643, 4294901760
  %645 = vmatmul.f32.gmra.mxu0 %v644
  %v646 = vpop.f32.mrf.mxu0
  %v647 = vadd.f32 %v531, %v646
  %v648 = vand.u32 %v61, 4294901760
  %v649 = vsub.f32 %v61, %v648
  %v650 = vand.u32 %v649, 4294901760
  %651 = vmatmul.f32.gmra.mxu0 %v650
  %v652 = vpop.f32.mrf.mxu0
  %v653 = vadd.f32 %v536, %v652
  %v654 = vand.u32 %v64, 4294901760
  %v655 = vsub.f32 %v64, %v654
  %v656 = vand.u32 %v655, 4294901760
  %657 = vmatmul.f32.gmra.mxu0 %v656
  %v658 = vpop.f32.mrf.mxu0
  %v659 = vadd.f32 %v541, %v658
  %v660 = vand.u32 %v67, 4294901760
  %v661 = vsub.f32 %v67, %v660
  %v662 = vand.u32 %v661, 4294901760
  %663 = vmatmul.f32.gmra.mxu0 %v662
  %v664 = vpop.f32.mrf.mxu0
  %v665 = vadd.f32 %v546, %v664
  %v666 = vand.u32 %v70, 4294901760
  %v667 = vsub.f32 %v70, %v666
  %v668 = vand.u32 %v667, 4294901760
  %669 = vmatmul.f32.gmra.mxu0 %v668
  %v670 = vpop.f32.mrf.mxu0
  %v671 = vadd.f32 %v551, %v670
  %v672 = vand.u32 %v73, 4294901760
  %v673 = vsub.f32 %v73, %v672
  %v674 = vand.u32 %v673, 4294901760
  %675 = vmatmul.f32.gmra.mxu0 %v674
  %v676 = vpop.f32.mrf.mxu0
  %v677 = vadd.f32 %v556, %v676
  %v678 = vand.u32 %v76, 4294901760
  %v679 = vsub.f32 %v76, %v678
  %v680 = vand.u32 %v679, 4294901760
  %681 = vmatmul.f32.gmra.mxu0 %v680
  %v682 = vpop.f32.mrf.mxu0
  %v683 = vadd.f32 %v561, %v682
  %v684 = vand.u32 %v79, 4294901760
  %v685 = vsub.f32 %v79, %v684
  %v686 = vand.u32 %v685, 4294901760
  %687 = vmatmul.f32.gmra.mxu0 %v686
  %v688 = vpop.f32.mrf.mxu0
  %v689 = vadd.f32 %v566, %v688
  %v690 = vand.u32 %v82, 4294901760
  %v691 = vsub.f32 %v82, %v690
  %v692 = vand.u32 %v691, 4294901760
  %693 = vmatmul.f32.gmra.mxu0 %v692
  %v694 = vpop.f32.mrf.mxu0
  %v695 = vadd.f32 %v571, %v694
  %v696 = vand.u32 %v85, 4294901760
  %v697 = vsub.f32 %v85, %v696
  %v698 = vand.u32 %v697, 4294901760
  %699 = vmatmul.f32.gmra.mxu0 %v698
  %v700 = vpop.f32.mrf.mxu0
  %v701 = vadd.f32 %v576, %v700
  %v702 = vand.u32 %v88, 4294901760
  %v703 = vsub.f32 %v88, %v702
  %v704 = vand.u32 %v703, 4294901760
  %705 = vmatmul.f32.gmra.mxu0 %v704
  %v706 = vpop.f32.mrf.mxu0
  %v707 = vadd.f32 %v581, %v706
  %v708 = vand.u32 %v91, 4294901760
  %v709 = vsub.f32 %v91, %v708
  %v710 = vand.u32 %v709, 4294901760
  %711 = vmatmul.f32.gmra.mxu0 %v710
  %v712 = vpop.f32.mrf.mxu0
  %v713 = vadd.f32 %v586, %v712
  %v714 = vand.u32 %v94, 4294901760
  %v715 = vsub.f32 %v94, %v714
  %v716 = vand.u32 %v715, 4294901760
  %717 = vmatmul.f32.gmra.mxu0 %v716
  %v718 = vpop.f32.mrf.mxu0
  %v719 = vadd.f32 %v591, %v718
  %v720 = vand.u32 %v97, 4294901760
  %v721 = vsub.f32 %v97, %v720
  %v722 = vand.u32 %v721, 4294901760
  %723 = vmatmul.f32.gmra.mxu0 %v722
  %v724 = vpop.f32.mrf.mxu0
  %v725 = vadd.f32 %v596, %v724
  %726 = vdwg.mxu0
  %v727 = vand.u32 %v145, 4294901760
  %v728 = vsub.f32 %v145, %v727
  %v729 = vand.u32 %v728, 4294901760
  %730 = vmatpush.xpose.msra.mxu0 %v729
  %v731 = vand.u32 %v142, 4294901760
  %v732 = vsub.f32 %v142, %v731
  %v733 = vand.u32 %v732, 4294901760
  %734 = vmatpush.xpose.msra.mxu0 %v733
  %v735 = vand.u32 %v139, 4294901760
  %v736 = vsub.f32 %v139, %v735
  %v737 = vand.u32 %v736, 4294901760
  %738 = vmatpush.xpose.msra.mxu0 %v737
  %v739 = vand.u32 %v136, 4294901760
  %v740 = vsub.f32 %v136, %v739
  %v741 = vand.u32 %v740, 4294901760
  %742 = vmatpush.xpose.msra.mxu0 %v741
  %v743 = vand.u32 %v133, 4294901760
  %v744 = vsub.f32 %v133, %v743
  %v745 = vand.u32 %v744, 4294901760
  %746 = vmatpush.xpose.msra.mxu0 %v745
  %v747 = vand.u32 %v130, 4294901760
  %v748 = vsub.f32 %v130, %v747
  %v749 = vand.u32 %v748, 4294901760
  %750 = vmatpush.xpose.msra.mxu0 %v749
  %v751 = vand.u32 %v127, 4294901760
  %v752 = vsub.f32 %v127, %v751
  %v753 = vand.u32 %v752, 4294901760
  %754 = vmatpush.xpose.msra.mxu0 %v753
  %v755 = vand.u32 %v124, 4294901760
  %v756 = vsub.f32 %v124, %v755
  %v757 = vand.u32 %v756, 4294901760
  %758 = vmatpush.xpose.msra.mxu0 %v757
  %v759 = vand.u32 %v121, 4294901760
  %v760 = vsub.f32 %v121, %v759
  %v761 = vand.u32 %v760, 4294901760
  %762 = vmatpush.xpose.msra.mxu0 %v761
  %v763 = vand.u32 %v118, 4294901760
  %v764 = vsub.f32 %v118, %v763
  %v765 = vand.u32 %v764, 4294901760
  %766 = vmatpush.xpose.msra.mxu0 %v765
  %v767 = vand.u32 %v115, 4294901760
  %v768 = vsub.f32 %v115, %v767
  %v769 = vand.u32 %v768, 4294901760
  %770 = vmatpush.xpose.msra.mxu0 %v769
  %v771 = vand.u32 %v112, 4294901760
  %v772 = vsub.f32 %v112, %v771
  %v773 = vand.u32 %v772, 4294901760
  %774 = vmatpush.xpose.msra.mxu0 %v773
  %v775 = vand.u32 %v109, 4294901760
  %v776 = vsub.f32 %v109, %v775
  %v777 = vand.u32 %v776, 4294901760
  %778 = vmatpush.xpose.msra.mxu0 %v777
  %v779 = vand.u32 %v106, 4294901760
  %v780 = vsub.f32 %v106, %v779
  %v781 = vand.u32 %v780, 4294901760
  %782 = vmatpush.xpose.msra.mxu0 %v781
  %v783 = vand.u32 %v103, 4294901760
  %v784 = vsub.f32 %v103, %v783
  %v785 = vand.u32 %v784, 4294901760
  %786 = vmatpush.xpose.msra.mxu0 %v785
  %v787 = vand.u32 %v100, 4294901760
  %v788 = vsub.f32 %v100, %v787
  %v789 = vand.u32 %v788, 4294901760
  %790 = vmatpush.xpose.msra.mxu0 %v789
  %v791 = vand.u32 %v52, 4294901760
  %792 = vmatmul.f32.gmra.mxu0 %v791
  %v793 = vpop.f32.mrf.mxu0
  %v794 = vadd.f32 %v635, %v793
  %v795 = vand.u32 %v55, 4294901760
  %796 = vmatmul.f32.gmra.mxu0 %v795
  %v797 = vpop.f32.mrf.mxu0
  %v798 = vadd.f32 %v641, %v797
  %v799 = vand.u32 %v58, 4294901760
  %800 = vmatmul.f32.gmra.mxu0 %v799
  %v801 = vpop.f32.mrf.mxu0
  %v802 = vadd.f32 %v647, %v801
  %v803 = vand.u32 %v61, 4294901760
  %804 = vmatmul.f32.gmra.mxu0 %v803
  %v805 = vpop.f32.mrf.mxu0
  %v806 = vadd.f32 %v653, %v805
  %v807 = vand.u32 %v64, 4294901760
  %808 = vmatmul.f32.gmra.mxu0 %v807
  %v809 = vpop.f32.mrf.mxu0
  %v810 = vadd.f32 %v659, %v809
  %v811 = vand.u32 %v67, 4294901760
  %812 = vmatmul.f32.gmra.mxu0 %v811
  %v813 = vpop.f32.mrf.mxu0
  %v814 = vadd.f32 %v665, %v813
  %v815 = vand.u32 %v70, 4294901760
  %816 = vmatmul.f32.gmra.mxu0 %v815
  %v817 = vpop.f32.mrf.mxu0
  %v818 = vadd.f32 %v671, %v817
  %v819 = vand.u32 %v73, 4294901760
  %820 = vmatmul.f32.gmra.mxu0 %v819
  %v821 = vpop.f32.mrf.mxu0
  %v822 = vadd.f32 %v677, %v821
  %v823 = vand.u32 %v76, 4294901760
  %824 = vmatmul.f32.gmra.mxu0 %v823
  %v825 = vpop.f32.mrf.mxu0
  %v826 = vadd.f32 %v683, %v825
  %v827 = vand.u32 %v79, 4294901760
  %828 = vmatmul.f32.gmra.mxu0 %v827
  %v829 = vpop.f32.mrf.mxu0
  %v830 = vadd.f32 %v689, %v829
  %v831 = vand.u32 %v82, 4294901760
  %832 = vmatmul.f32.gmra.mxu0 %v831
  %v833 = vpop.f32.mrf.mxu0
  %v834 = vadd.f32 %v695, %v833
  %v835 = vand.u32 %v85, 4294901760
  %836 = vmatmul.f32.gmra.mxu0 %v835
  %v837 = vpop.f32.mrf.mxu0
  %v838 = vadd.f32 %v701, %v837
  %v839 = vand.u32 %v88, 4294901760
  %840 = vmatmul.f32.gmra.mxu0 %v839
  %v841 = vpop.f32.mrf.mxu0
  %v842 = vadd.f32 %v707, %v841
  %v843 = vand.u32 %v91, 4294901760
  %844 = vmatmul.f32.gmra.mxu0 %v843
  %v845 = vpop.f32.mrf.mxu0
  %v846 = vadd.f32 %v713, %v845
  %v847 = vand.u32 %v94, 4294901760
  %848 = vmatmul.f32.gmra.mxu0 %v847
  %v849 = vpop.f32.mrf.mxu0
  %v850 = vadd.f32 %v719, %v849
  %v851 = vand.u32 %v97, 4294901760
  %852 = vmatmul.f32.gmra.mxu0 %v851
  %v853 = vpop.f32.mrf.mxu0
  %v854 = vadd.f32 %v725, %v853
  %855 = vdwg.mxu0
  %v856 = vand.u32 %v145, 4294901760
  %857 = vmatpush.xpose.msra.mxu0 %v856
  %v858 = vand.u32 %v142, 4294901760
  %859 = vmatpush.xpose.msra.mxu0 %v858
  %v860 = vand.u32 %v139, 4294901760
  %861 = vmatpush.xpose.msra.mxu0 %v860
  %v862 = vand.u32 %v136, 4294901760
  %863 = vmatpush.xpose.msra.mxu0 %v862
  %v864 = vand.u32 %v133, 4294901760
  %865 = vmatpush.xpose.msra.mxu0 %v864
  %v866 = vand.u32 %v130, 4294901760
  %867 = vmatpush.xpose.msra.mxu0 %v866
  %v868 = vand.u32 %v127, 4294901760
  %869 = vmatpush.xpose.msra.mxu0 %v868
  %v870 = vand.u32 %v124, 4294901760
  %871 = vmatpush.xpose.msra.mxu0 %v870
  %v872 = vand.u32 %v121, 4294901760
  %873 = vmatpush.xpose.msra.mxu0 %v872
  %v874 = vand.u32 %v118, 4294901760
  %875 = vmatpush.xpose.msra.mxu0 %v874
  %v876 = vand.u32 %v115, 4294901760
  %877 = vmatpush.xpose.msra.mxu0 %v876
  %v878 = vand.u32 %v112, 4294901760
  %879 = vmatpush.xpose.msra.mxu0 %v878
  %v880 = vand.u32 %v109, 4294901760
  %881 = vmatpush.xpose.msra.mxu0 %v880
  %v882 = vand.u32 %v106, 4294901760
  %883 = vmatpush.xpose.msra.mxu0 %v882
  %v884 = vand.u32 %v103, 4294901760
  %885 = vmatpush.xpose.msra.mxu0 %v884
  %v886 = vand.u32 %v100, 4294901760
  %887 = vmatpush.xpose.msra.mxu0 %v886
  %v888 = vand.u32 %v52, 4294901760
  %889 = vmatmul.f32.gmra.mxu0 %v888
  %v890 = vpop.f32.mrf.mxu0
  %v891 = vadd.f32 %v794, %v890
  %v892 = vand.u32 %v55, 4294901760
  %893 = vmatmul.f32.gmra.mxu0 %v892
  %v894 = vpop.f32.mrf.mxu0
  %v895 = vadd.f32 %v798, %v894
  %v896 = vand.u32 %v58, 4294901760
  %897 = vmatmul.f32.gmra.mxu0 %v896
  %v898 = vpop.f32.mrf.mxu0
  %v899 = vadd.f32 %v802, %v898
  %v900 = vand.u32 %v61, 4294901760
  %901 = vmatmul.f32.gmra.mxu0 %v900
  %v902 = vpop.f32.mrf.mxu0
  %v903 = vadd.f32 %v806, %v902
  %v904 = vand.u32 %v64, 4294901760
  %905 = vmatmul.f32.gmra.mxu0 %v904
  %v906 = vpop.f32.mrf.mxu0
  %v907 = vadd.f32 %v810, %v906
  %v908 = vand.u32 %v67, 4294901760
  %909 = vmatmul.f32.gmra.mxu0 %v908
  %v910 = vpop.f32.mrf.mxu0
  %v911 = vadd.f32 %v814, %v910
  %v912 = vand.u32 %v70, 4294901760
  %913 = vmatmul.f32.gmra.mxu0 %v912
  %v914 = vpop.f32.mrf.mxu0
  %v915 = vadd.f32 %v818, %v914
  %v916 = vand.u32 %v73, 4294901760
  %917 = vmatmul.f32.gmra.mxu0 %v916
  %v918 = vpop.f32.mrf.mxu0
  %v919 = vadd.f32 %v822, %v918
  %v920 = vand.u32 %v76, 4294901760
  %921 = vmatmul.f32.gmra.mxu0 %v920
  %v922 = vpop.f32.mrf.mxu0
  %v923 = vadd.f32 %v826, %v922
  %v924 = vand.u32 %v79, 4294901760
  %925 = vmatmul.f32.gmra.mxu0 %v924
  %v926 = vpop.f32.mrf.mxu0
  %v927 = vadd.f32 %v830, %v926
  %v928 = vand.u32 %v82, 4294901760
  %929 = vmatmul.f32.gmra.mxu0 %v928
  %v930 = vpop.f32.mrf.mxu0
  %v931 = vadd.f32 %v834, %v930
  %v932 = vand.u32 %v85, 4294901760
  %933 = vmatmul.f32.gmra.mxu0 %v932
  %v934 = vpop.f32.mrf.mxu0
  %v935 = vadd.f32 %v838, %v934
  %v936 = vand.u32 %v88, 4294901760
  %937 = vmatmul.f32.gmra.mxu0 %v936
  %v938 = vpop.f32.mrf.mxu0
  %v939 = vadd.f32 %v842, %v938
  %v940 = vand.u32 %v91, 4294901760
  %941 = vmatmul.f32.gmra.mxu0 %v940
  %v942 = vpop.f32.mrf.mxu0
  %v943 = vadd.f32 %v846, %v942
  %v944 = vand.u32 %v94, 4294901760
  %945 = vmatmul.f32.gmra.mxu0 %v944
  %v946 = vpop.f32.mrf.mxu0
  %v947 = vadd.f32 %v850, %v946
  %v948 = vand.u32 %v97, 4294901760
  %949 = vmatmul.f32.gmra.mxu0 %v948
  %v950 = vpop.f32.mrf.mxu0
  %v951 = vadd.f32 %v854, %v950
  %952 = vdwg.mxu0
  %v953 = vmul.f32 %v17, %v17
  %v954 = vmul.f32 %v18, %v18
  %v955 = vmul.f32 %v19, %v19
  %v956 = vmul.f32 %v20, %v20
  %v957 = vmul.f32 %v21, %v21
  %v958 = vmul.f32 %v22, %v22
  %v959 = vmul.f32 %v23, %v23
  %v960 = vmul.f32 %v24, %v24
  %v961 = vmul.f32 %v25, %v25
  %v962 = vmul.f32 %v26, %v26
  %v963 = vmul.f32 %v27, %v27
  %v964 = vmul.f32 %v28, %v28
  %v965 = vmul.f32 %v29, %v29
  %v966 = vmul.f32 %v30, %v30
  %v967 = vmul.f32 %v31, %v31
  %v968 = vmul.f32 %v32, %v32
  %v969 = vsel %vm50, %v953, 0.0
  %970 = vadd.xlane.f32.xlu0 %v969
  %v971 = vpop.xlane.xlu0 %970
  %v972 = vsel %vm50, %v954, 0.0
  %973 = vadd.xlane.f32.xlu0 %v972
  %v974 = vpop.xlane.xlu0 %973
  %v975 = vsel %vm50, %v955, 0.0
  %976 = vadd.xlane.f32.xlu0 %v975
  %v977 = vpop.xlane.xlu0 %976
  %v978 = vsel %vm50, %v956, 0.0
  %979 = vadd.xlane.f32.xlu0 %v978
  %v980 = vpop.xlane.xlu0 %979
  %v981 = vsel %vm50, %v957, 0.0
  %982 = vadd.xlane.f32.xlu0 %v981
  %v983 = vpop.xlane.xlu0 %982
  %v984 = vsel %vm50, %v958, 0.0
  %985 = vadd.xlane.f32.xlu0 %v984
  %v986 = vpop.xlane.xlu0 %985
  %v987 = vsel %vm50, %v959, 0.0
  %988 = vadd.xlane.f32.xlu0 %v987
  %v989 = vpop.xlane.xlu0 %988
  %v990 = vsel %vm50, %v960, 0.0
  %991 = vadd.xlane.f32.xlu0 %v990
  %v992 = vpop.xlane.xlu0 %991
  %v993 = vsel %vm50, %v961, 0.0
  %994 = vadd.xlane.f32.xlu0 %v993
  %v995 = vpop.xlane.xlu0 %994
  %v996 = vsel %vm50, %v962, 0.0
  %997 = vadd.xlane.f32.xlu0 %v996
  %v998 = vpop.xlane.xlu0 %997
  %v999 = vsel %vm50, %v963, 0.0
  %1000 = vadd.xlane.f32.xlu0 %v999
  %v1001 = vpop.xlane.xlu0 %1000
  %v1002 = vsel %vm50, %v964, 0.0
  %1003 = vadd.xlane.f32.xlu0 %v1002
  %v1004 = vpop.xlane.xlu0 %1003
  %v1005 = vsel %vm50, %v965, 0.0
  %1006 = vadd.xlane.f32.xlu0 %v1005
  %v1007 = vpop.xlane.xlu0 %1006
  %v1008 = vsel %vm50, %v966, 0.0
  %1009 = vadd.xlane.f32.xlu0 %v1008
  %v1010 = vpop.xlane.xlu0 %1009
  %v1011 = vsel %vm50, %v967, 0.0
  %1012 = vadd.xlane.f32.xlu0 %v1011
  %v1013 = vpop.xlane.xlu0 %1012
  %v1014 = vsel %vm50, %v968, 0.0
  %1015 = vadd.xlane.f32.xlu0 %v1014
  %v1016 = vpop.xlane.xlu0 %1015
  %v1018 = vperm.slane %v49, 0
  %v1020 = vadd.f32 %v971, %v1018
  %v1021 = vadd.f32 %v974, %v1018
  %v1022 = vadd.f32 %v977, %v1018
  %v1023 = vadd.f32 %v980, %v1018
  %v1024 = vadd.f32 %v983, %v1018
  %v1025 = vadd.f32 %v986, %v1018
  %v1026 = vadd.f32 %v989, %v1018
  %v1027 = vadd.f32 %v992, %v1018
  %v1028 = vadd.f32 %v995, %v1018
  %v1029 = vadd.f32 %v998, %v1018
  %v1030 = vadd.f32 %v1001, %v1018
  %v1031 = vadd.f32 %v1004, %v1018
  %v1032 = vadd.f32 %v1007, %v1018
  %v1033 = vadd.f32 %v1010, %v1018
  %v1034 = vadd.f32 %v1013, %v1018
  %v1035 = vadd.f32 %v1016, %v1018
  %v1036 = vmul.f32 %v891, 2.0
  %v1037 = vmul.f32 %v895, 2.0
  %v1038 = vmul.f32 %v899, 2.0
  %v1039 = vmul.f32 %v903, 2.0
  %v1040 = vmul.f32 %v907, 2.0
  %v1041 = vmul.f32 %v911, 2.0
  %v1042 = vmul.f32 %v915, 2.0
  %v1043 = vmul.f32 %v919, 2.0
  %v1044 = vmul.f32 %v923, 2.0
  %v1045 = vmul.f32 %v927, 2.0
  %v1046 = vmul.f32 %v931, 2.0
  %v1047 = vmul.f32 %v935, 2.0
  %v1048 = vmul.f32 %v939, 2.0
  %v1049 = vmul.f32 %v943, 2.0
  %v1050 = vmul.f32 %v947, 2.0
  %v1051 = vmul.f32 %v951, 2.0
  %v1052 = vsub.f32 %v1020, %v1036
  %v1053 = vsub.f32 %v1021, %v1037
  %v1054 = vsub.f32 %v1022, %v1038
  %v1055 = vsub.f32 %v1023, %v1039
  %v1056 = vsub.f32 %v1024, %v1040
  %v1057 = vsub.f32 %v1025, %v1041
  %v1058 = vsub.f32 %v1026, %v1042
  %v1059 = vsub.f32 %v1027, %v1043
  %v1060 = vsub.f32 %v1028, %v1044
  %v1061 = vsub.f32 %v1029, %v1045
  %v1062 = vsub.f32 %v1030, %v1046
  %v1063 = vsub.f32 %v1031, %v1047
  %v1064 = vsub.f32 %v1032, %v1048
  %v1065 = vsub.f32 %v1033, %v1049
  %v1066 = vsub.f32 %v1034, %v1050
  %v1067 = vsub.f32 %v1035, %v1051
  %v1068 = vmax.f32 %v1052, 0.0
  %v1069 = vmax.f32 %v1053, 0.0
  %v1070 = vmax.f32 %v1054, 0.0
  %v1071 = vmax.f32 %v1055, 0.0
  %v1072 = vmax.f32 %v1056, 0.0
  %v1073 = vmax.f32 %v1057, 0.0
  %v1074 = vmax.f32 %v1058, 0.0
  %v1075 = vmax.f32 %v1059, 0.0
  %v1076 = vmax.f32 %v1060, 0.0
  %v1077 = vmax.f32 %v1061, 0.0
  %v1078 = vmax.f32 %v1062, 0.0
  %v1079 = vmax.f32 %v1063, 0.0
  %v1080 = vmax.f32 %v1064, 0.0
  %v1081 = vmax.f32 %v1065, 0.0
  %v1082 = vmax.f32 %v1066, 0.0
  %v1083 = vmax.f32 %v1067, 0.0
  %1084 = vmin.xlane.f32.xlu0 %v1068
  %v1085 = vpop.xlane.xlu0 %1084
  %1086 = vmin.xlane.f32.xlu0 %v1069
  %v1087 = vpop.xlane.xlu0 %1086
  %1088 = vmin.xlane.f32.xlu0 %v1070
  %v1089 = vpop.xlane.xlu0 %1088
  %1090 = vmin.xlane.f32.xlu0 %v1071
  %v1091 = vpop.xlane.xlu0 %1090
  %1092 = vmin.xlane.f32.xlu0 %v1072
  %v1093 = vpop.xlane.xlu0 %1092
  %1094 = vmin.xlane.f32.xlu0 %v1073
  %v1095 = vpop.xlane.xlu0 %1094
  %1096 = vmin.xlane.f32.xlu0 %v1074
  %v1097 = vpop.xlane.xlu0 %1096
  %1098 = vmin.xlane.f32.xlu0 %v1075
  %v1099 = vpop.xlane.xlu0 %1098
  %1100 = vmin.xlane.f32.xlu0 %v1076
  %v1101 = vpop.xlane.xlu0 %1100
  %1102 = vmin.xlane.f32.xlu0 %v1077
  %v1103 = vpop.xlane.xlu0 %1102
  %1104 = vmin.xlane.f32.xlu0 %v1078
  %v1105 = vpop.xlane.xlu0 %1104
  %1106 = vmin.xlane.f32.xlu0 %v1079
  %v1107 = vpop.xlane.xlu0 %1106
  %1108 = vmin.xlane.f32.xlu0 %v1080
  %v1109 = vpop.xlane.xlu0 %1108
  %1110 = vmin.xlane.f32.xlu0 %v1081
  %v1111 = vpop.xlane.xlu0 %1110
  %1112 = vmin.xlane.f32.xlu0 %v1082
  %v1113 = vpop.xlane.xlu0 %1112
  %1114 = vmin.xlane.f32.xlu0 %v1083
  %v1115 = vpop.xlane.xlu0 %1114
  %v1116 = vlaneseq
  %v1117 = vand.u32 %v1116, 127
  %vm1118 = vcmp.eq.f32.partialorder %v1068, %v1085
  %vm1119 = vcmp.eq.f32.partialorder %v1069, %v1087
  %vm1120 = vcmp.eq.f32.partialorder %v1070, %v1089
  %vm1121 = vcmp.eq.f32.partialorder %v1071, %v1091
  %vm1122 = vcmp.eq.f32.partialorder %v1072, %v1093
  %vm1123 = vcmp.eq.f32.partialorder %v1073, %v1095
  %vm1124 = vcmp.eq.f32.partialorder %v1074, %v1097
  %vm1125 = vcmp.eq.f32.partialorder %v1075, %v1099
  %vm1126 = vcmp.eq.f32.partialorder %v1076, %v1101
  %vm1127 = vcmp.eq.f32.partialorder %v1077, %v1103
  %vm1128 = vcmp.eq.f32.partialorder %v1078, %v1105
  %vm1129 = vcmp.eq.f32.partialorder %v1079, %v1107
  %vm1130 = vcmp.eq.f32.partialorder %v1080, %v1109
  %vm1131 = vcmp.eq.f32.partialorder %v1081, %v1111
  %vm1132 = vcmp.eq.f32.partialorder %v1082, %v1113
  %vm1133 = vcmp.eq.f32.partialorder %v1083, %v1115
  %v1134 = vsel %vm1118, %v1117, 128
  %v1135 = vsel %vm1119, %v1117, 128
  %v1136 = vsel %vm1120, %v1117, 128
  %v1137 = vsel %vm1121, %v1117, 128
  %v1138 = vsel %vm1122, %v1117, 128
  %v1139 = vsel %vm1123, %v1117, 128
  %v1140 = vsel %vm1124, %v1117, 128
  %v1141 = vsel %vm1125, %v1117, 128
  %v1142 = vsel %vm1126, %v1117, 128
  %v1143 = vsel %vm1127, %v1117, 128
  %v1144 = vsel %vm1128, %v1117, 128
  %v1145 = vsel %vm1129, %v1117, 128
  %v1146 = vsel %vm1130, %v1117, 128
  %v1147 = vsel %vm1131, %v1117, 128
  %v1148 = vsel %vm1132, %v1117, 128
  %v1149 = vsel %vm1133, %v1117, 128
  %v1150 = vand.u32 %v1134, 65535
  %v1151 = vshra.s32 %v1134, 16
  %v1152 = vcvt.s32.f32 %v1150
  %v1153 = vcvt.s32.f32 %v1151
  %1154 = vmin.xlane.f32.xlu0 %v1153
  %v1155 = vpop.xlane.xlu0 %1154
  %vm1156 = vcmp.eq.f32.partialorder %v1153, %v1155
  %v1157 = vsel %vm1156, %v1152, inf
  %1158 = vmin.xlane.f32.xlu0 %v1157
  %v1159 = vpop.xlane.xlu0 %1158
  %v1160 = vcvt.f32.s32 %v1159
  %v1161 = vcvt.f32.s32 %v1155
  %v1162 = vshll.u32 %v1161, 16
  %v1163 = vadd.s32 %v1162, %v1160
  %v1164 = vand.u32 %v1135, 65535
  %v1165 = vshra.s32 %v1135, 16
  %v1166 = vcvt.s32.f32 %v1164
  %v1167 = vcvt.s32.f32 %v1165
  %1168 = vmin.xlane.f32.xlu0 %v1167
  %v1169 = vpop.xlane.xlu0 %1168
  %vm1170 = vcmp.eq.f32.partialorder %v1167, %v1169
  %v1171 = vsel %vm1170, %v1166, inf
  %1172 = vmin.xlane.f32.xlu0 %v1171
  %v1173 = vpop.xlane.xlu0 %1172
  %v1174 = vcvt.f32.s32 %v1173
  %v1175 = vcvt.f32.s32 %v1169
  %v1176 = vshll.u32 %v1175, 16
  %v1177 = vadd.s32 %v1176, %v1174
  %v1178 = vand.u32 %v1136, 65535
  %v1179 = vshra.s32 %v1136, 16
  %v1180 = vcvt.s32.f32 %v1178
  %v1181 = vcvt.s32.f32 %v1179
  %1182 = vmin.xlane.f32.xlu0 %v1181
  %v1183 = vpop.xlane.xlu0 %1182
  %vm1184 = vcmp.eq.f32.partialorder %v1181, %v1183
  %v1185 = vsel %vm1184, %v1180, inf
  %1186 = vmin.xlane.f32.xlu0 %v1185
  %v1187 = vpop.xlane.xlu0 %1186
  %v1188 = vcvt.f32.s32 %v1187
  %v1189 = vcvt.f32.s32 %v1183
  %v1190 = vshll.u32 %v1189, 16
  %v1191 = vadd.s32 %v1190, %v1188
  %v1192 = vand.u32 %v1137, 65535
  %v1193 = vshra.s32 %v1137, 16
  %v1194 = vcvt.s32.f32 %v1192
  %v1195 = vcvt.s32.f32 %v1193
  %1196 = vmin.xlane.f32.xlu0 %v1195
  %v1197 = vpop.xlane.xlu0 %1196
  %vm1198 = vcmp.eq.f32.partialorder %v1195, %v1197
  %v1199 = vsel %vm1198, %v1194, inf
  %1200 = vmin.xlane.f32.xlu0 %v1199
  %v1201 = vpop.xlane.xlu0 %1200
  %v1202 = vcvt.f32.s32 %v1201
  %v1203 = vcvt.f32.s32 %v1197
  %v1204 = vshll.u32 %v1203, 16
  %v1205 = vadd.s32 %v1204, %v1202
  %v1206 = vand.u32 %v1138, 65535
  %v1207 = vshra.s32 %v1138, 16
  %v1208 = vcvt.s32.f32 %v1206
  %v1209 = vcvt.s32.f32 %v1207
  %1210 = vmin.xlane.f32.xlu0 %v1209
  %v1211 = vpop.xlane.xlu0 %1210
  %vm1212 = vcmp.eq.f32.partialorder %v1209, %v1211
  %v1213 = vsel %vm1212, %v1208, inf
  %1214 = vmin.xlane.f32.xlu0 %v1213
  %v1215 = vpop.xlane.xlu0 %1214
  %v1216 = vcvt.f32.s32 %v1215
  %v1217 = vcvt.f32.s32 %v1211
  %v1218 = vshll.u32 %v1217, 16
  %v1219 = vadd.s32 %v1218, %v1216
  %v1220 = vand.u32 %v1139, 65535
  %v1221 = vshra.s32 %v1139, 16
  %v1222 = vcvt.s32.f32 %v1220
  %v1223 = vcvt.s32.f32 %v1221
  %1224 = vmin.xlane.f32.xlu0 %v1223
  %v1225 = vpop.xlane.xlu0 %1224
  %vm1226 = vcmp.eq.f32.partialorder %v1223, %v1225
  %v1227 = vsel %vm1226, %v1222, inf
  %1228 = vmin.xlane.f32.xlu0 %v1227
  %v1229 = vpop.xlane.xlu0 %1228
  %v1230 = vcvt.f32.s32 %v1229
  %v1231 = vcvt.f32.s32 %v1225
  %v1232 = vshll.u32 %v1231, 16
  %v1233 = vadd.s32 %v1232, %v1230
  %v1234 = vand.u32 %v1140, 65535
  %v1235 = vshra.s32 %v1140, 16
  %v1236 = vcvt.s32.f32 %v1234
  %v1237 = vcvt.s32.f32 %v1235
  %1238 = vmin.xlane.f32.xlu0 %v1237
  %v1239 = vpop.xlane.xlu0 %1238
  %vm1240 = vcmp.eq.f32.partialorder %v1237, %v1239
  %v1241 = vsel %vm1240, %v1236, inf
  %1242 = vmin.xlane.f32.xlu0 %v1241
  %v1243 = vpop.xlane.xlu0 %1242
  %v1244 = vcvt.f32.s32 %v1243
  %v1245 = vcvt.f32.s32 %v1239
  %v1246 = vshll.u32 %v1245, 16
  %v1247 = vadd.s32 %v1246, %v1244
  %v1248 = vand.u32 %v1141, 65535
  %v1249 = vshra.s32 %v1141, 16
  %v1250 = vcvt.s32.f32 %v1248
  %v1251 = vcvt.s32.f32 %v1249
  %1252 = vmin.xlane.f32.xlu0 %v1251
  %v1253 = vpop.xlane.xlu0 %1252
  %vm1254 = vcmp.eq.f32.partialorder %v1251, %v1253
  %v1255 = vsel %vm1254, %v1250, inf
  %1256 = vmin.xlane.f32.xlu0 %v1255
  %v1257 = vpop.xlane.xlu0 %1256
  %v1258 = vcvt.f32.s32 %v1257
  %v1259 = vcvt.f32.s32 %v1253
  %v1260 = vshll.u32 %v1259, 16
  %v1261 = vadd.s32 %v1260, %v1258
  %v1262 = vand.u32 %v1142, 65535
  %v1263 = vshra.s32 %v1142, 16
  %v1264 = vcvt.s32.f32 %v1262
  %v1265 = vcvt.s32.f32 %v1263
  %1266 = vmin.xlane.f32.xlu0 %v1265
  %v1267 = vpop.xlane.xlu0 %1266
  %vm1268 = vcmp.eq.f32.partialorder %v1265, %v1267
  %v1269 = vsel %vm1268, %v1264, inf
  %1270 = vmin.xlane.f32.xlu0 %v1269
  %v1271 = vpop.xlane.xlu0 %1270
  %v1272 = vcvt.f32.s32 %v1271
  %v1273 = vcvt.f32.s32 %v1267
  %v1274 = vshll.u32 %v1273, 16
  %v1275 = vadd.s32 %v1274, %v1272
  %v1276 = vand.u32 %v1143, 65535
  %v1277 = vshra.s32 %v1143, 16
  %v1278 = vcvt.s32.f32 %v1276
  %v1279 = vcvt.s32.f32 %v1277
  %1280 = vmin.xlane.f32.xlu0 %v1279
  %v1281 = vpop.xlane.xlu0 %1280
  %vm1282 = vcmp.eq.f32.partialorder %v1279, %v1281
  %v1283 = vsel %vm1282, %v1278, inf
  %1284 = vmin.xlane.f32.xlu0 %v1283
  %v1285 = vpop.xlane.xlu0 %1284
  %v1286 = vcvt.f32.s32 %v1285
  %v1287 = vcvt.f32.s32 %v1281
  %v1288 = vshll.u32 %v1287, 16
  %v1289 = vadd.s32 %v1288, %v1286
  %v1290 = vand.u32 %v1144, 65535
  %v1291 = vshra.s32 %v1144, 16
  %v1292 = vcvt.s32.f32 %v1290
  %v1293 = vcvt.s32.f32 %v1291
  %1294 = vmin.xlane.f32.xlu0 %v1293
  %v1295 = vpop.xlane.xlu0 %1294
  %vm1296 = vcmp.eq.f32.partialorder %v1293, %v1295
  %v1297 = vsel %vm1296, %v1292, inf
  %1298 = vmin.xlane.f32.xlu0 %v1297
  %v1299 = vpop.xlane.xlu0 %1298
  %v1300 = vcvt.f32.s32 %v1299
  %v1301 = vcvt.f32.s32 %v1295
  %v1302 = vshll.u32 %v1301, 16
  %v1303 = vadd.s32 %v1302, %v1300
  %v1304 = vand.u32 %v1145, 65535
  %v1305 = vshra.s32 %v1145, 16
  %v1306 = vcvt.s32.f32 %v1304
  %v1307 = vcvt.s32.f32 %v1305
  %1308 = vmin.xlane.f32.xlu0 %v1307
  %v1309 = vpop.xlane.xlu0 %1308
  %vm1310 = vcmp.eq.f32.partialorder %v1307, %v1309
  %v1311 = vsel %vm1310, %v1306, inf
  %1312 = vmin.xlane.f32.xlu0 %v1311
  %v1313 = vpop.xlane.xlu0 %1312
  %v1314 = vcvt.f32.s32 %v1313
  %v1315 = vcvt.f32.s32 %v1309
  %v1316 = vshll.u32 %v1315, 16
  %v1317 = vadd.s32 %v1316, %v1314
  %v1318 = vand.u32 %v1146, 65535
  %v1319 = vshra.s32 %v1146, 16
  %v1320 = vcvt.s32.f32 %v1318
  %v1321 = vcvt.s32.f32 %v1319
  %1322 = vmin.xlane.f32.xlu0 %v1321
  %v1323 = vpop.xlane.xlu0 %1322
  %vm1324 = vcmp.eq.f32.partialorder %v1321, %v1323
  %v1325 = vsel %vm1324, %v1320, inf
  %1326 = vmin.xlane.f32.xlu0 %v1325
  %v1327 = vpop.xlane.xlu0 %1326
  %v1328 = vcvt.f32.s32 %v1327
  %v1329 = vcvt.f32.s32 %v1323
  %v1330 = vshll.u32 %v1329, 16
  %v1331 = vadd.s32 %v1330, %v1328
  %v1332 = vand.u32 %v1147, 65535
  %v1333 = vshra.s32 %v1147, 16
  %v1334 = vcvt.s32.f32 %v1332
  %v1335 = vcvt.s32.f32 %v1333
  %1336 = vmin.xlane.f32.xlu0 %v1335
  %v1337 = vpop.xlane.xlu0 %1336
  %vm1338 = vcmp.eq.f32.partialorder %v1335, %v1337
  %v1339 = vsel %vm1338, %v1334, inf
  %1340 = vmin.xlane.f32.xlu0 %v1339
  %v1341 = vpop.xlane.xlu0 %1340
  %v1342 = vcvt.f32.s32 %v1341
  %v1343 = vcvt.f32.s32 %v1337
  %v1344 = vshll.u32 %v1343, 16
  %v1345 = vadd.s32 %v1344, %v1342
  %v1346 = vand.u32 %v1148, 65535
  %v1347 = vshra.s32 %v1148, 16
  %v1348 = vcvt.s32.f32 %v1346
  %v1349 = vcvt.s32.f32 %v1347
  %1350 = vmin.xlane.f32.xlu0 %v1349
  %v1351 = vpop.xlane.xlu0 %1350
  %vm1352 = vcmp.eq.f32.partialorder %v1349, %v1351
  %v1353 = vsel %vm1352, %v1348, inf
  %1354 = vmin.xlane.f32.xlu0 %v1353
  %v1355 = vpop.xlane.xlu0 %1354
  %v1356 = vcvt.f32.s32 %v1355
  %v1357 = vcvt.f32.s32 %v1351
  %v1358 = vshll.u32 %v1357, 16
  %v1359 = vadd.s32 %v1358, %v1356
  %v1360 = vand.u32 %v1149, 65535
  %v1361 = vshra.s32 %v1149, 16
  %v1362 = vcvt.s32.f32 %v1360
  %v1363 = vcvt.s32.f32 %v1361
  %1364 = vmin.xlane.f32.xlu0 %v1363
  %v1365 = vpop.xlane.xlu0 %1364
  %vm1366 = vcmp.eq.f32.partialorder %v1363, %v1365
  %v1367 = vsel %vm1366, %v1362, inf
  %1368 = vmin.xlane.f32.xlu0 %v1367
  %v1369 = vpop.xlane.xlu0 %1368
  %v1370 = vcvt.f32.s32 %v1369
  %v1371 = vcvt.f32.s32 %v1365
  %v1372 = vshll.u32 %v1371, 16
  %v1373 = vadd.s32 %v1372, %v1370
  %vm1374 = vcmp.eq.s32.totalorder %v1117, %v1163
  %vm1375 = vcmp.eq.s32.totalorder %v1117, %v1177
  %vm1376 = vcmp.eq.s32.totalorder %v1117, %v1191
  %vm1377 = vcmp.eq.s32.totalorder %v1117, %v1205
  %vm1378 = vcmp.eq.s32.totalorder %v1117, %v1219
  %vm1379 = vcmp.eq.s32.totalorder %v1117, %v1233
  %vm1380 = vcmp.eq.s32.totalorder %v1117, %v1247
  %vm1381 = vcmp.eq.s32.totalorder %v1117, %v1261
  %vm1382 = vcmp.eq.s32.totalorder %v1117, %v1275
  %vm1383 = vcmp.eq.s32.totalorder %v1117, %v1289
  %vm1384 = vcmp.eq.s32.totalorder %v1117, %v1303
  %vm1385 = vcmp.eq.s32.totalorder %v1117, %v1317
  %vm1386 = vcmp.eq.s32.totalorder %v1117, %v1331
  %vm1387 = vcmp.eq.s32.totalorder %v1117, %v1345
  %vm1388 = vcmp.eq.s32.totalorder %v1117, %v1359
  %vm1389 = vcmp.eq.s32.totalorder %v1117, %v1373
  %v1390 = vsel %vm1374, 1, 0
  %v1391 = vsel %vm1375, 1, 0
  %v1392 = vsel %vm1376, 1, 0
  %v1393 = vsel %vm1377, 1, 0
  %v1394 = vsel %vm1378, 1, 0
  %v1395 = vsel %vm1379, 1, 0
  %v1396 = vsel %vm1380, 1, 0
  %v1397 = vsel %vm1381, 1, 0
  %v1398 = vsel %vm1382, 1, 0
  %v1399 = vsel %vm1383, 1, 0
  %v1400 = vsel %vm1384, 1, 0
  %v1401 = vsel %vm1385, 1, 0
  %v1402 = vsel %vm1386, 1, 0
  %v1403 = vsel %vm1387, 1, 0
  %v1404 = vsel %vm1388, 1, 0
  %v1405 = vsel %vm1389, 1, 0
  %v1406 = vcvt.s32.f32 %v1390
  %v1407 = vcvt.s32.f32 %v1391
  %v1408 = vcvt.s32.f32 %v1392
  %v1409 = vcvt.s32.f32 %v1393
  %v1410 = vcvt.s32.f32 %v1394
  %v1411 = vcvt.s32.f32 %v1395
  %v1412 = vcvt.s32.f32 %v1396
  %v1413 = vcvt.s32.f32 %v1397
  %v1414 = vcvt.s32.f32 %v1398
  %v1415 = vcvt.s32.f32 %v1399
  %v1416 = vcvt.s32.f32 %v1400
  %v1417 = vcvt.s32.f32 %v1401
  %v1418 = vcvt.s32.f32 %v1402
  %v1419 = vcvt.s32.f32 %v1403
  %v1420 = vcvt.s32.f32 %v1404
  %v1421 = vcvt.s32.f32 %v1405
  %v1422 = vand.u32 %v48, 4294901760
  %1423 = vmatpush.msra.mxu0 %v1422
  %v1424 = vand.u32 %v47, 4294901760
  %1425 = vmatpush.msra.mxu0 %v1424
  %v1426 = vand.u32 %v46, 4294901760
  %1427 = vmatpush.msra.mxu0 %v1426
  %v1428 = vand.u32 %v45, 4294901760
  %1429 = vmatpush.msra.mxu0 %v1428
  %v1430 = vand.u32 %v44, 4294901760
  %1431 = vmatpush.msra.mxu0 %v1430
  %v1432 = vand.u32 %v43, 4294901760
  %1433 = vmatpush.msra.mxu0 %v1432
  %v1434 = vand.u32 %v42, 4294901760
  %1435 = vmatpush.msra.mxu0 %v1434
  %v1436 = vand.u32 %v41, 4294901760
  %1437 = vmatpush.msra.mxu0 %v1436
  %v1438 = vand.u32 %v40, 4294901760
  %1439 = vmatpush.msra.mxu0 %v1438
  %v1440 = vand.u32 %v39, 4294901760
  %1441 = vmatpush.msra.mxu0 %v1440
  %v1442 = vand.u32 %v38, 4294901760
  %1443 = vmatpush.msra.mxu0 %v1442
  %v1444 = vand.u32 %v37, 4294901760
  %1445 = vmatpush.msra.mxu0 %v1444
  %v1446 = vand.u32 %v36, 4294901760
  %1447 = vmatpush.msra.mxu0 %v1446
  %v1448 = vand.u32 %v35, 4294901760
  %1449 = vmatpush.msra.mxu0 %v1448
  %v1450 = vand.u32 %v34, 4294901760
  %1451 = vmatpush.msra.mxu0 %v1450
  %v1452 = vand.u32 %v33, 4294901760
  %1453 = vmatpush.msra.mxu0 %v1452
  %v1454 = vand.u32 %v1406, 4294901760
  %v1455 = vsub.f32 %v1406, %v1454
  %v1456 = vand.u32 %v1455, 4294901760
  %v1457 = vsub.f32 %v1455, %v1456
  %v1458 = vand.u32 %v1457, 4294901760
  %1459 = vmatmul.f32.gmra.mxu0 %v1458
  %v1460 = vpop.f32.mrf.mxu0
  %v1461 = vadd.f32 0.0, %v1460
  %v1462 = vand.u32 %v1407, 4294901760
  %v1463 = vsub.f32 %v1407, %v1462
  %v1464 = vand.u32 %v1463, 4294901760
  %v1465 = vsub.f32 %v1463, %v1464
  %v1466 = vand.u32 %v1465, 4294901760
  %1467 = vmatmul.f32.gmra.mxu0 %v1466
  %v1468 = vpop.f32.mrf.mxu0
  %v1469 = vadd.f32 0.0, %v1468
  %v1470 = vand.u32 %v1408, 4294901760
  %v1471 = vsub.f32 %v1408, %v1470
  %v1472 = vand.u32 %v1471, 4294901760
  %v1473 = vsub.f32 %v1471, %v1472
  %v1474 = vand.u32 %v1473, 4294901760
  %1475 = vmatmul.f32.gmra.mxu0 %v1474
  %v1476 = vpop.f32.mrf.mxu0
  %v1477 = vadd.f32 0.0, %v1476
  %v1478 = vand.u32 %v1409, 4294901760
  %v1479 = vsub.f32 %v1409, %v1478
  %v1480 = vand.u32 %v1479, 4294901760
  %v1481 = vsub.f32 %v1479, %v1480
  %v1482 = vand.u32 %v1481, 4294901760
  %1483 = vmatmul.f32.gmra.mxu0 %v1482
  %v1484 = vpop.f32.mrf.mxu0
  %v1485 = vadd.f32 0.0, %v1484
  %v1486 = vand.u32 %v1410, 4294901760
  %v1487 = vsub.f32 %v1410, %v1486
  %v1488 = vand.u32 %v1487, 4294901760
  %v1489 = vsub.f32 %v1487, %v1488
  %v1490 = vand.u32 %v1489, 4294901760
  %1491 = vmatmul.f32.gmra.mxu0 %v1490
  %v1492 = vpop.f32.mrf.mxu0
  %v1493 = vadd.f32 0.0, %v1492
  %v1494 = vand.u32 %v1411, 4294901760
  %v1495 = vsub.f32 %v1411, %v1494
  %v1496 = vand.u32 %v1495, 4294901760
  %v1497 = vsub.f32 %v1495, %v1496
  %v1498 = vand.u32 %v1497, 4294901760
  %1499 = vmatmul.f32.gmra.mxu0 %v1498
  %v1500 = vpop.f32.mrf.mxu0
  %v1501 = vadd.f32 0.0, %v1500
  %v1502 = vand.u32 %v1412, 4294901760
  %v1503 = vsub.f32 %v1412, %v1502
  %v1504 = vand.u32 %v1503, 4294901760
  %v1505 = vsub.f32 %v1503, %v1504
  %v1506 = vand.u32 %v1505, 4294901760
  %1507 = vmatmul.f32.gmra.mxu0 %v1506
  %v1508 = vpop.f32.mrf.mxu0
  %v1509 = vadd.f32 0.0, %v1508
  %v1510 = vand.u32 %v1413, 4294901760
  %v1511 = vsub.f32 %v1413, %v1510
  %v1512 = vand.u32 %v1511, 4294901760
  %v1513 = vsub.f32 %v1511, %v1512
  %v1514 = vand.u32 %v1513, 4294901760
  %1515 = vmatmul.f32.gmra.mxu0 %v1514
  %v1516 = vpop.f32.mrf.mxu0
  %v1517 = vadd.f32 0.0, %v1516
  %v1518 = vand.u32 %v1414, 4294901760
  %v1519 = vsub.f32 %v1414, %v1518
  %v1520 = vand.u32 %v1519, 4294901760
  %v1521 = vsub.f32 %v1519, %v1520
  %v1522 = vand.u32 %v1521, 4294901760
  %1523 = vmatmul.f32.gmra.mxu0 %v1522
  %v1524 = vpop.f32.mrf.mxu0
  %v1525 = vadd.f32 0.0, %v1524
  %v1526 = vand.u32 %v1415, 4294901760
  %v1527 = vsub.f32 %v1415, %v1526
  %v1528 = vand.u32 %v1527, 4294901760
  %v1529 = vsub.f32 %v1527, %v1528
  %v1530 = vand.u32 %v1529, 4294901760
  %1531 = vmatmul.f32.gmra.mxu0 %v1530
  %v1532 = vpop.f32.mrf.mxu0
  %v1533 = vadd.f32 0.0, %v1532
  %v1534 = vand.u32 %v1416, 4294901760
  %v1535 = vsub.f32 %v1416, %v1534
  %v1536 = vand.u32 %v1535, 4294901760
  %v1537 = vsub.f32 %v1535, %v1536
  %v1538 = vand.u32 %v1537, 4294901760
  %1539 = vmatmul.f32.gmra.mxu0 %v1538
  %v1540 = vpop.f32.mrf.mxu0
  %v1541 = vadd.f32 0.0, %v1540
  %v1542 = vand.u32 %v1417, 4294901760
  %v1543 = vsub.f32 %v1417, %v1542
  %v1544 = vand.u32 %v1543, 4294901760
  %v1545 = vsub.f32 %v1543, %v1544
  %v1546 = vand.u32 %v1545, 4294901760
  %1547 = vmatmul.f32.gmra.mxu0 %v1546
  %v1548 = vpop.f32.mrf.mxu0
  %v1549 = vadd.f32 0.0, %v1548
  %v1550 = vand.u32 %v1418, 4294901760
  %v1551 = vsub.f32 %v1418, %v1550
  %v1552 = vand.u32 %v1551, 4294901760
  %v1553 = vsub.f32 %v1551, %v1552
  %v1554 = vand.u32 %v1553, 4294901760
  %1555 = vmatmul.f32.gmra.mxu0 %v1554
  %v1556 = vpop.f32.mrf.mxu0
  %v1557 = vadd.f32 0.0, %v1556
  %v1558 = vand.u32 %v1419, 4294901760
  %v1559 = vsub.f32 %v1419, %v1558
  %v1560 = vand.u32 %v1559, 4294901760
  %v1561 = vsub.f32 %v1559, %v1560
  %v1562 = vand.u32 %v1561, 4294901760
  %1563 = vmatmul.f32.gmra.mxu0 %v1562
  %v1564 = vpop.f32.mrf.mxu0
  %v1565 = vadd.f32 0.0, %v1564
  %v1566 = vand.u32 %v1420, 4294901760
  %v1567 = vsub.f32 %v1420, %v1566
  %v1568 = vand.u32 %v1567, 4294901760
  %v1569 = vsub.f32 %v1567, %v1568
  %v1570 = vand.u32 %v1569, 4294901760
  %1571 = vmatmul.f32.gmra.mxu0 %v1570
  %v1572 = vpop.f32.mrf.mxu0
  %v1573 = vadd.f32 0.0, %v1572
  %v1574 = vand.u32 %v1421, 4294901760
  %v1575 = vsub.f32 %v1421, %v1574
  %v1576 = vand.u32 %v1575, 4294901760
  %v1577 = vsub.f32 %v1575, %v1576
  %v1578 = vand.u32 %v1577, 4294901760
  %1579 = vmatmul.f32.gmra.mxu0 %v1578
  %v1580 = vpop.f32.mrf.mxu0
  %v1581 = vadd.f32 0.0, %v1580
  %1582 = vdwg.mxu0
  %v1583 = vand.u32 %v48, 4294901760
  %v1584 = vsub.f32 %v48, %v1583
  %v1585 = vand.u32 %v1584, 4294901760
  %v1586 = vsub.f32 %v1584, %v1585
  %v1587 = vand.u32 %v1586, 4294901760
  %1588 = vmatpush.msra.mxu0 %v1587
  %v1589 = vand.u32 %v47, 4294901760
  %v1590 = vsub.f32 %v47, %v1589
  %v1591 = vand.u32 %v1590, 4294901760
  %v1592 = vsub.f32 %v1590, %v1591
  %v1593 = vand.u32 %v1592, 4294901760
  %1594 = vmatpush.msra.mxu0 %v1593
  %v1595 = vand.u32 %v46, 4294901760
  %v1596 = vsub.f32 %v46, %v1595
  %v1597 = vand.u32 %v1596, 4294901760
  %v1598 = vsub.f32 %v1596, %v1597
  %v1599 = vand.u32 %v1598, 4294901760
  %1600 = vmatpush.msra.mxu0 %v1599
  %v1601 = vand.u32 %v45, 4294901760
  %v1602 = vsub.f32 %v45, %v1601
  %v1603 = vand.u32 %v1602, 4294901760
  %v1604 = vsub.f32 %v1602, %v1603
  %v1605 = vand.u32 %v1604, 4294901760
  %1606 = vmatpush.msra.mxu0 %v1605
  %v1607 = vand.u32 %v44, 4294901760
  %v1608 = vsub.f32 %v44, %v1607
  %v1609 = vand.u32 %v1608, 4294901760
  %v1610 = vsub.f32 %v1608, %v1609
  %v1611 = vand.u32 %v1610, 4294901760
  %1612 = vmatpush.msra.mxu0 %v1611
  %v1613 = vand.u32 %v43, 4294901760
  %v1614 = vsub.f32 %v43, %v1613
  %v1615 = vand.u32 %v1614, 4294901760
  %v1616 = vsub.f32 %v1614, %v1615
  %v1617 = vand.u32 %v1616, 4294901760
  %1618 = vmatpush.msra.mxu0 %v1617
  %v1619 = vand.u32 %v42, 4294901760
  %v1620 = vsub.f32 %v42, %v1619
  %v1621 = vand.u32 %v1620, 4294901760
  %v1622 = vsub.f32 %v1620, %v1621
  %v1623 = vand.u32 %v1622, 4294901760
  %1624 = vmatpush.msra.mxu0 %v1623
  %v1625 = vand.u32 %v41, 4294901760
  %v1626 = vsub.f32 %v41, %v1625
  %v1627 = vand.u32 %v1626, 4294901760
  %v1628 = vsub.f32 %v1626, %v1627
  %v1629 = vand.u32 %v1628, 4294901760
  %1630 = vmatpush.msra.mxu0 %v1629
  %v1631 = vand.u32 %v40, 4294901760
  %v1632 = vsub.f32 %v40, %v1631
  %v1633 = vand.u32 %v1632, 4294901760
  %v1634 = vsub.f32 %v1632, %v1633
  %v1635 = vand.u32 %v1634, 4294901760
  %1636 = vmatpush.msra.mxu0 %v1635
  %v1637 = vand.u32 %v39, 4294901760
  %v1638 = vsub.f32 %v39, %v1637
  %v1639 = vand.u32 %v1638, 4294901760
  %v1640 = vsub.f32 %v1638, %v1639
  %v1641 = vand.u32 %v1640, 4294901760
  %1642 = vmatpush.msra.mxu0 %v1641
  %v1643 = vand.u32 %v38, 4294901760
  %v1644 = vsub.f32 %v38, %v1643
  %v1645 = vand.u32 %v1644, 4294901760
  %v1646 = vsub.f32 %v1644, %v1645
  %v1647 = vand.u32 %v1646, 4294901760
  %1648 = vmatpush.msra.mxu0 %v1647
  %v1649 = vand.u32 %v37, 4294901760
  %v1650 = vsub.f32 %v37, %v1649
  %v1651 = vand.u32 %v1650, 4294901760
  %v1652 = vsub.f32 %v1650, %v1651
  %v1653 = vand.u32 %v1652, 4294901760
  %1654 = vmatpush.msra.mxu0 %v1653
  %v1655 = vand.u32 %v36, 4294901760
  %v1656 = vsub.f32 %v36, %v1655
  %v1657 = vand.u32 %v1656, 4294901760
  %v1658 = vsub.f32 %v1656, %v1657
  %v1659 = vand.u32 %v1658, 4294901760
  %1660 = vmatpush.msra.mxu0 %v1659
  %v1661 = vand.u32 %v35, 4294901760
  %v1662 = vsub.f32 %v35, %v1661
  %v1663 = vand.u32 %v1662, 4294901760
  %v1664 = vsub.f32 %v1662, %v1663
  %v1665 = vand.u32 %v1664, 4294901760
  %1666 = vmatpush.msra.mxu0 %v1665
  %v1667 = vand.u32 %v34, 4294901760
  %v1668 = vsub.f32 %v34, %v1667
  %v1669 = vand.u32 %v1668, 4294901760
  %v1670 = vsub.f32 %v1668, %v1669
  %v1671 = vand.u32 %v1670, 4294901760
  %1672 = vmatpush.msra.mxu0 %v1671
  %v1673 = vand.u32 %v33, 4294901760
  %v1674 = vsub.f32 %v33, %v1673
  %v1675 = vand.u32 %v1674, 4294901760
  %v1676 = vsub.f32 %v1674, %v1675
  %v1677 = vand.u32 %v1676, 4294901760
  %1678 = vmatpush.msra.mxu0 %v1677
  %v1679 = vand.u32 %v1406, 4294901760
  %1680 = vmatmul.f32.gmra.mxu0 %v1679
  %v1681 = vpop.f32.mrf.mxu0
  %v1682 = vadd.f32 %v1461, %v1681
  %v1683 = vand.u32 %v1407, 4294901760
  %1684 = vmatmul.f32.gmra.mxu0 %v1683
  %v1685 = vpop.f32.mrf.mxu0
  %v1686 = vadd.f32 %v1469, %v1685
  %v1687 = vand.u32 %v1408, 4294901760
  %1688 = vmatmul.f32.gmra.mxu0 %v1687
  %v1689 = vpop.f32.mrf.mxu0
  %v1690 = vadd.f32 %v1477, %v1689
  %v1691 = vand.u32 %v1409, 4294901760
  %1692 = vmatmul.f32.gmra.mxu0 %v1691
  %v1693 = vpop.f32.mrf.mxu0
  %v1694 = vadd.f32 %v1485, %v1693
  %v1695 = vand.u32 %v1410, 4294901760
  %1696 = vmatmul.f32.gmra.mxu0 %v1695
  %v1697 = vpop.f32.mrf.mxu0
  %v1698 = vadd.f32 %v1493, %v1697
  %v1699 = vand.u32 %v1411, 4294901760
  %1700 = vmatmul.f32.gmra.mxu0 %v1699
  %v1701 = vpop.f32.mrf.mxu0
  %v1702 = vadd.f32 %v1501, %v1701
  %v1703 = vand.u32 %v1412, 4294901760
  %1704 = vmatmul.f32.gmra.mxu0 %v1703
  %v1705 = vpop.f32.mrf.mxu0
  %v1706 = vadd.f32 %v1509, %v1705
  %v1707 = vand.u32 %v1413, 4294901760
  %1708 = vmatmul.f32.gmra.mxu0 %v1707
  %v1709 = vpop.f32.mrf.mxu0
  %v1710 = vadd.f32 %v1517, %v1709
  %v1711 = vand.u32 %v1414, 4294901760
  %1712 = vmatmul.f32.gmra.mxu0 %v1711
  %v1713 = vpop.f32.mrf.mxu0
  %v1714 = vadd.f32 %v1525, %v1713
  %v1715 = vand.u32 %v1415, 4294901760
  %1716 = vmatmul.f32.gmra.mxu0 %v1715
  %v1717 = vpop.f32.mrf.mxu0
  %v1718 = vadd.f32 %v1533, %v1717
  %v1719 = vand.u32 %v1416, 4294901760
  %1720 = vmatmul.f32.gmra.mxu0 %v1719
  %v1721 = vpop.f32.mrf.mxu0
  %v1722 = vadd.f32 %v1541, %v1721
  %v1723 = vand.u32 %v1417, 4294901760
  %1724 = vmatmul.f32.gmra.mxu0 %v1723
  %v1725 = vpop.f32.mrf.mxu0
  %v1726 = vadd.f32 %v1549, %v1725
  %v1727 = vand.u32 %v1418, 4294901760
  %1728 = vmatmul.f32.gmra.mxu0 %v1727
  %v1729 = vpop.f32.mrf.mxu0
  %v1730 = vadd.f32 %v1557, %v1729
  %v1731 = vand.u32 %v1419, 4294901760
  %1732 = vmatmul.f32.gmra.mxu0 %v1731
  %v1733 = vpop.f32.mrf.mxu0
  %v1734 = vadd.f32 %v1565, %v1733
  %v1735 = vand.u32 %v1420, 4294901760
  %1736 = vmatmul.f32.gmra.mxu0 %v1735
  %v1737 = vpop.f32.mrf.mxu0
  %v1738 = vadd.f32 %v1573, %v1737
  %v1739 = vand.u32 %v1421, 4294901760
  %1740 = vmatmul.f32.gmra.mxu0 %v1739
  %v1741 = vpop.f32.mrf.mxu0
  %v1742 = vadd.f32 %v1581, %v1741
  %1743 = vdwg.mxu0
  %v1744 = vand.u32 %v48, 4294901760
  %v1745 = vsub.f32 %v48, %v1744
  %1746 = vmatpush.msra.mxu0 %v1745
  %v1747 = vand.u32 %v47, 4294901760
  %v1748 = vsub.f32 %v47, %v1747
  %1749 = vmatpush.msra.mxu0 %v1748
  %v1750 = vand.u32 %v46, 4294901760
  %v1751 = vsub.f32 %v46, %v1750
  %1752 = vmatpush.msra.mxu0 %v1751
  %v1753 = vand.u32 %v45, 4294901760
  %v1754 = vsub.f32 %v45, %v1753
  %1755 = vmatpush.msra.mxu0 %v1754
  %v1756 = vand.u32 %v44, 4294901760
  %v1757 = vsub.f32 %v44, %v1756
  %1758 = vmatpush.msra.mxu0 %v1757
  %v1759 = vand.u32 %v43, 4294901760
  %v1760 = vsub.f32 %v43, %v1759
  %1761 = vmatpush.msra.mxu0 %v1760
  %v1762 = vand.u32 %v42, 4294901760
  %v1763 = vsub.f32 %v42, %v1762
  %1764 = vmatpush.msra.mxu0 %v1763
  %v1765 = vand.u32 %v41, 4294901760
  %v1766 = vsub.f32 %v41, %v1765
  %1767 = vmatpush.msra.mxu0 %v1766
  %v1768 = vand.u32 %v40, 4294901760
  %v1769 = vsub.f32 %v40, %v1768
  %1770 = vmatpush.msra.mxu0 %v1769
  %v1771 = vand.u32 %v39, 4294901760
  %v1772 = vsub.f32 %v39, %v1771
  %1773 = vmatpush.msra.mxu0 %v1772
  %v1774 = vand.u32 %v38, 4294901760
  %v1775 = vsub.f32 %v38, %v1774
  %1776 = vmatpush.msra.mxu0 %v1775
  %v1777 = vand.u32 %v37, 4294901760
  %v1778 = vsub.f32 %v37, %v1777
  %1779 = vmatpush.msra.mxu0 %v1778
  %v1780 = vand.u32 %v36, 4294901760
  %v1781 = vsub.f32 %v36, %v1780
  %1782 = vmatpush.msra.mxu0 %v1781
  %v1783 = vand.u32 %v35, 4294901760
  %v1784 = vsub.f32 %v35, %v1783
  %1785 = vmatpush.msra.mxu0 %v1784
  %v1786 = vand.u32 %v34, 4294901760
  %v1787 = vsub.f32 %v34, %v1786
  %1788 = vmatpush.msra.mxu0 %v1787
  %v1789 = vand.u32 %v33, 4294901760
  %v1790 = vsub.f32 %v33, %v1789
  %1791 = vmatpush.msra.mxu0 %v1790
  %v1792 = vand.u32 %v1406, 4294901760
  %v1793 = vsub.f32 %v1406, %v1792
  %1794 = vmatmul.f32.gmra.mxu0 %v1793
  %v1795 = vpop.f32.mrf.mxu0
  %v1796 = vadd.f32 %v1682, %v1795
  %v1797 = vand.u32 %v1407, 4294901760
  %v1798 = vsub.f32 %v1407, %v1797
  %1799 = vmatmul.f32.gmra.mxu0 %v1798
  %v1800 = vpop.f32.mrf.mxu0
  %v1801 = vadd.f32 %v1686, %v1800
  %v1802 = vand.u32 %v1408, 4294901760
  %v1803 = vsub.f32 %v1408, %v1802
  %1804 = vmatmul.f32.gmra.mxu0 %v1803
  %v1805 = vpop.f32.mrf.mxu0
  %v1806 = vadd.f32 %v1690, %v1805
  %v1807 = vand.u32 %v1409, 4294901760
  %v1808 = vsub.f32 %v1409, %v1807
  %1809 = vmatmul.f32.gmra.mxu0 %v1808
  %v1810 = vpop.f32.mrf.mxu0
  %v1811 = vadd.f32 %v1694, %v1810
  %v1812 = vand.u32 %v1410, 4294901760
  %v1813 = vsub.f32 %v1410, %v1812
  %1814 = vmatmul.f32.gmra.mxu0 %v1813
  %v1815 = vpop.f32.mrf.mxu0
  %v1816 = vadd.f32 %v1698, %v1815
  %v1817 = vand.u32 %v1411, 4294901760
  %v1818 = vsub.f32 %v1411, %v1817
  %1819 = vmatmul.f32.gmra.mxu0 %v1818
  %v1820 = vpop.f32.mrf.mxu0
  %v1821 = vadd.f32 %v1702, %v1820
  %v1822 = vand.u32 %v1412, 4294901760
  %v1823 = vsub.f32 %v1412, %v1822
  %1824 = vmatmul.f32.gmra.mxu0 %v1823
  %v1825 = vpop.f32.mrf.mxu0
  %v1826 = vadd.f32 %v1706, %v1825
  %v1827 = vand.u32 %v1413, 4294901760
  %v1828 = vsub.f32 %v1413, %v1827
  %1829 = vmatmul.f32.gmra.mxu0 %v1828
  %v1830 = vpop.f32.mrf.mxu0
  %v1831 = vadd.f32 %v1710, %v1830
  %v1832 = vand.u32 %v1414, 4294901760
  %v1833 = vsub.f32 %v1414, %v1832
  %1834 = vmatmul.f32.gmra.mxu0 %v1833
  %v1835 = vpop.f32.mrf.mxu0
  %v1836 = vadd.f32 %v1714, %v1835
  %v1837 = vand.u32 %v1415, 4294901760
  %v1838 = vsub.f32 %v1415, %v1837
  %1839 = vmatmul.f32.gmra.mxu0 %v1838
  %v1840 = vpop.f32.mrf.mxu0
  %v1841 = vadd.f32 %v1718, %v1840
  %v1842 = vand.u32 %v1416, 4294901760
  %v1843 = vsub.f32 %v1416, %v1842
  %1844 = vmatmul.f32.gmra.mxu0 %v1843
  %v1845 = vpop.f32.mrf.mxu0
  %v1846 = vadd.f32 %v1722, %v1845
  %v1847 = vand.u32 %v1417, 4294901760
  %v1848 = vsub.f32 %v1417, %v1847
  %1849 = vmatmul.f32.gmra.mxu0 %v1848
  %v1850 = vpop.f32.mrf.mxu0
  %v1851 = vadd.f32 %v1726, %v1850
  %v1852 = vand.u32 %v1418, 4294901760
  %v1853 = vsub.f32 %v1418, %v1852
  %1854 = vmatmul.f32.gmra.mxu0 %v1853
  %v1855 = vpop.f32.mrf.mxu0
  %v1856 = vadd.f32 %v1730, %v1855
  %v1857 = vand.u32 %v1419, 4294901760
  %v1858 = vsub.f32 %v1419, %v1857
  %1859 = vmatmul.f32.gmra.mxu0 %v1858
  %v1860 = vpop.f32.mrf.mxu0
  %v1861 = vadd.f32 %v1734, %v1860
  %v1862 = vand.u32 %v1420, 4294901760
  %v1863 = vsub.f32 %v1420, %v1862
  %1864 = vmatmul.f32.gmra.mxu0 %v1863
  %v1865 = vpop.f32.mrf.mxu0
  %v1866 = vadd.f32 %v1738, %v1865
  %v1867 = vand.u32 %v1421, 4294901760
  %v1868 = vsub.f32 %v1421, %v1867
  %1869 = vmatmul.f32.gmra.mxu0 %v1868
  %v1870 = vpop.f32.mrf.mxu0
  %v1871 = vadd.f32 %v1742, %v1870
  %1872 = vdwg.mxu0
  %v1873 = vand.u32 %v48, 4294901760
  %1874 = vmatpush.msra.mxu0 %v1873
  %v1875 = vand.u32 %v47, 4294901760
  %1876 = vmatpush.msra.mxu0 %v1875
  %v1877 = vand.u32 %v46, 4294901760
  %1878 = vmatpush.msra.mxu0 %v1877
  %v1879 = vand.u32 %v45, 4294901760
  %1880 = vmatpush.msra.mxu0 %v1879
  %v1881 = vand.u32 %v44, 4294901760
  %1882 = vmatpush.msra.mxu0 %v1881
  %v1883 = vand.u32 %v43, 4294901760
  %1884 = vmatpush.msra.mxu0 %v1883
  %v1885 = vand.u32 %v42, 4294901760
  %1886 = vmatpush.msra.mxu0 %v1885
  %v1887 = vand.u32 %v41, 4294901760
  %1888 = vmatpush.msra.mxu0 %v1887
  %v1889 = vand.u32 %v40, 4294901760
  %1890 = vmatpush.msra.mxu0 %v1889
  %v1891 = vand.u32 %v39, 4294901760
  %1892 = vmatpush.msra.mxu0 %v1891
  %v1893 = vand.u32 %v38, 4294901760
  %1894 = vmatpush.msra.mxu0 %v1893
  %v1895 = vand.u32 %v37, 4294901760
  %1896 = vmatpush.msra.mxu0 %v1895
  %v1897 = vand.u32 %v36, 4294901760
  %1898 = vmatpush.msra.mxu0 %v1897
  %v1899 = vand.u32 %v35, 4294901760
  %1900 = vmatpush.msra.mxu0 %v1899
  %v1901 = vand.u32 %v34, 4294901760
  %1902 = vmatpush.msra.mxu0 %v1901
  %v1903 = vand.u32 %v33, 4294901760
  %1904 = vmatpush.msra.mxu0 %v1903
  %v1905 = vand.u32 %v1406, 4294901760
  %v1906 = vsub.f32 %v1406, %v1905
  %v1907 = vand.u32 %v1906, 4294901760
  %1908 = vmatmul.f32.gmra.mxu0 %v1907
  %v1909 = vpop.f32.mrf.mxu0
  %v1910 = vadd.f32 %v1796, %v1909
  %v1911 = vand.u32 %v1407, 4294901760
  %v1912 = vsub.f32 %v1407, %v1911
  %v1913 = vand.u32 %v1912, 4294901760
  %1914 = vmatmul.f32.gmra.mxu0 %v1913
  %v1915 = vpop.f32.mrf.mxu0
  %v1916 = vadd.f32 %v1801, %v1915
  %v1917 = vand.u32 %v1408, 4294901760
  %v1918 = vsub.f32 %v1408, %v1917
  %v1919 = vand.u32 %v1918, 4294901760
  %1920 = vmatmul.f32.gmra.mxu0 %v1919
  %v1921 = vpop.f32.mrf.mxu0
  %v1922 = vadd.f32 %v1806, %v1921
  %v1923 = vand.u32 %v1409, 4294901760
  %v1924 = vsub.f32 %v1409, %v1923
  %v1925 = vand.u32 %v1924, 4294901760
  %1926 = vmatmul.f32.gmra.mxu0 %v1925
  %v1927 = vpop.f32.mrf.mxu0
  %v1928 = vadd.f32 %v1811, %v1927
  %v1929 = vand.u32 %v1410, 4294901760
  %v1930 = vsub.f32 %v1410, %v1929
  %v1931 = vand.u32 %v1930, 4294901760
  %1932 = vmatmul.f32.gmra.mxu0 %v1931
  %v1933 = vpop.f32.mrf.mxu0
  %v1934 = vadd.f32 %v1816, %v1933
  %v1935 = vand.u32 %v1411, 4294901760
  %v1936 = vsub.f32 %v1411, %v1935
  %v1937 = vand.u32 %v1936, 4294901760
  %1938 = vmatmul.f32.gmra.mxu0 %v1937
  %v1939 = vpop.f32.mrf.mxu0
  %v1940 = vadd.f32 %v1821, %v1939
  %v1941 = vand.u32 %v1412, 4294901760
  %v1942 = vsub.f32 %v1412, %v1941
  %v1943 = vand.u32 %v1942, 4294901760
  %1944 = vmatmul.f32.gmra.mxu0 %v1943
  %v1945 = vpop.f32.mrf.mxu0
  %v1946 = vadd.f32 %v1826, %v1945
  %v1947 = vand.u32 %v1413, 4294901760
  %v1948 = vsub.f32 %v1413, %v1947
  %v1949 = vand.u32 %v1948, 4294901760
  %1950 = vmatmul.f32.gmra.mxu0 %v1949
  %v1951 = vpop.f32.mrf.mxu0
  %v1952 = vadd.f32 %v1831, %v1951
  %v1953 = vand.u32 %v1414, 4294901760
  %v1954 = vsub.f32 %v1414, %v1953
  %v1955 = vand.u32 %v1954, 4294901760
  %1956 = vmatmul.f32.gmra.mxu0 %v1955
  %v1957 = vpop.f32.mrf.mxu0
  %v1958 = vadd.f32 %v1836, %v1957
  %v1959 = vand.u32 %v1415, 4294901760
  %v1960 = vsub.f32 %v1415, %v1959
  %v1961 = vand.u32 %v1960, 4294901760
  %1962 = vmatmul.f32.gmra.mxu0 %v1961
  %v1963 = vpop.f32.mrf.mxu0
  %v1964 = vadd.f32 %v1841, %v1963
  %v1965 = vand.u32 %v1416, 4294901760
  %v1966 = vsub.f32 %v1416, %v1965
  %v1967 = vand.u32 %v1966, 4294901760
  %1968 = vmatmul.f32.gmra.mxu0 %v1967
  %v1969 = vpop.f32.mrf.mxu0
  %v1970 = vadd.f32 %v1846, %v1969
  %v1971 = vand.u32 %v1417, 4294901760
  %v1972 = vsub.f32 %v1417, %v1971
  %v1973 = vand.u32 %v1972, 4294901760
  %1974 = vmatmul.f32.gmra.mxu0 %v1973
  %v1975 = vpop.f32.mrf.mxu0
  %v1976 = vadd.f32 %v1851, %v1975
  %v1977 = vand.u32 %v1418, 4294901760
  %v1978 = vsub.f32 %v1418, %v1977
  %v1979 = vand.u32 %v1978, 4294901760
  %1980 = vmatmul.f32.gmra.mxu0 %v1979
  %v1981 = vpop.f32.mrf.mxu0
  %v1982 = vadd.f32 %v1856, %v1981
  %v1983 = vand.u32 %v1419, 4294901760
  %v1984 = vsub.f32 %v1419, %v1983
  %v1985 = vand.u32 %v1984, 4294901760
  %1986 = vmatmul.f32.gmra.mxu0 %v1985
  %v1987 = vpop.f32.mrf.mxu0
  %v1988 = vadd.f32 %v1861, %v1987
  %v1989 = vand.u32 %v1420, 4294901760
  %v1990 = vsub.f32 %v1420, %v1989
  %v1991 = vand.u32 %v1990, 4294901760
  %1992 = vmatmul.f32.gmra.mxu0 %v1991
  %v1993 = vpop.f32.mrf.mxu0
  %v1994 = vadd.f32 %v1866, %v1993
  %v1995 = vand.u32 %v1421, 4294901760
  %v1996 = vsub.f32 %v1421, %v1995
  %v1997 = vand.u32 %v1996, 4294901760
  %1998 = vmatmul.f32.gmra.mxu0 %v1997
  %v1999 = vpop.f32.mrf.mxu0
  %v2000 = vadd.f32 %v1871, %v1999
  %2001 = vdwg.mxu0
  %v2002 = vand.u32 %v48, 4294901760
  %v2003 = vsub.f32 %v48, %v2002
  %v2004 = vand.u32 %v2003, 4294901760
  %2005 = vmatpush.msra.mxu0 %v2004
  %v2006 = vand.u32 %v47, 4294901760
  %v2007 = vsub.f32 %v47, %v2006
  %v2008 = vand.u32 %v2007, 4294901760
  %2009 = vmatpush.msra.mxu0 %v2008
  %v2010 = vand.u32 %v46, 4294901760
  %v2011 = vsub.f32 %v46, %v2010
  %v2012 = vand.u32 %v2011, 4294901760
  %2013 = vmatpush.msra.mxu0 %v2012
  %v2014 = vand.u32 %v45, 4294901760
  %v2015 = vsub.f32 %v45, %v2014
  %v2016 = vand.u32 %v2015, 4294901760
  %2017 = vmatpush.msra.mxu0 %v2016
  %v2018 = vand.u32 %v44, 4294901760
  %v2019 = vsub.f32 %v44, %v2018
  %v2020 = vand.u32 %v2019, 4294901760
  %2021 = vmatpush.msra.mxu0 %v2020
  %v2022 = vand.u32 %v43, 4294901760
  %v2023 = vsub.f32 %v43, %v2022
  %v2024 = vand.u32 %v2023, 4294901760
  %2025 = vmatpush.msra.mxu0 %v2024
  %v2026 = vand.u32 %v42, 4294901760
  %v2027 = vsub.f32 %v42, %v2026
  %v2028 = vand.u32 %v2027, 4294901760
  %2029 = vmatpush.msra.mxu0 %v2028
  %v2030 = vand.u32 %v41, 4294901760
  %v2031 = vsub.f32 %v41, %v2030
  %v2032 = vand.u32 %v2031, 4294901760
  %2033 = vmatpush.msra.mxu0 %v2032
  %v2034 = vand.u32 %v40, 4294901760
  %v2035 = vsub.f32 %v40, %v2034
  %v2036 = vand.u32 %v2035, 4294901760
  %2037 = vmatpush.msra.mxu0 %v2036
  %v2038 = vand.u32 %v39, 4294901760
  %v2039 = vsub.f32 %v39, %v2038
  %v2040 = vand.u32 %v2039, 4294901760
  %2041 = vmatpush.msra.mxu0 %v2040
  %v2042 = vand.u32 %v38, 4294901760
  %v2043 = vsub.f32 %v38, %v2042
  %v2044 = vand.u32 %v2043, 4294901760
  %2045 = vmatpush.msra.mxu0 %v2044
  %v2046 = vand.u32 %v37, 4294901760
  %v2047 = vsub.f32 %v37, %v2046
  %v2048 = vand.u32 %v2047, 4294901760
  %2049 = vmatpush.msra.mxu0 %v2048
  %v2050 = vand.u32 %v36, 4294901760
  %v2051 = vsub.f32 %v36, %v2050
  %v2052 = vand.u32 %v2051, 4294901760
  %2053 = vmatpush.msra.mxu0 %v2052
  %v2054 = vand.u32 %v35, 4294901760
  %v2055 = vsub.f32 %v35, %v2054
  %v2056 = vand.u32 %v2055, 4294901760
  %2057 = vmatpush.msra.mxu0 %v2056
  %v2058 = vand.u32 %v34, 4294901760
  %v2059 = vsub.f32 %v34, %v2058
  %v2060 = vand.u32 %v2059, 4294901760
  %2061 = vmatpush.msra.mxu0 %v2060
  %v2062 = vand.u32 %v33, 4294901760
  %v2063 = vsub.f32 %v33, %v2062
  %v2064 = vand.u32 %v2063, 4294901760
  %2065 = vmatpush.msra.mxu0 %v2064
  %v2066 = vand.u32 %v1406, 4294901760
  %2067 = vmatmul.f32.gmra.mxu0 %v2066
  %v2068 = vpop.f32.mrf.mxu0
  %v2069 = vadd.f32 %v1910, %v2068
  %v2070 = vand.u32 %v1407, 4294901760
  %2071 = vmatmul.f32.gmra.mxu0 %v2070
  %v2072 = vpop.f32.mrf.mxu0
  %v2073 = vadd.f32 %v1916, %v2072
  %v2074 = vand.u32 %v1408, 4294901760
  %2075 = vmatmul.f32.gmra.mxu0 %v2074
  %v2076 = vpop.f32.mrf.mxu0
  %v2077 = vadd.f32 %v1922, %v2076
  %v2078 = vand.u32 %v1409, 4294901760
  %2079 = vmatmul.f32.gmra.mxu0 %v2078
  %v2080 = vpop.f32.mrf.mxu0
  %v2081 = vadd.f32 %v1928, %v2080
  %v2082 = vand.u32 %v1410, 4294901760
  %2083 = vmatmul.f32.gmra.mxu0 %v2082
  %v2084 = vpop.f32.mrf.mxu0
  %v2085 = vadd.f32 %v1934, %v2084
  %v2086 = vand.u32 %v1411, 4294901760
  %2087 = vmatmul.f32.gmra.mxu0 %v2086
  %v2088 = vpop.f32.mrf.mxu0
  %v2089 = vadd.f32 %v1940, %v2088
  %v2090 = vand.u32 %v1412, 4294901760
  %2091 = vmatmul.f32.gmra.mxu0 %v2090
  %v2092 = vpop.f32.mrf.mxu0
  %v2093 = vadd.f32 %v1946, %v2092
  %v2094 = vand.u32 %v1413, 4294901760
  %2095 = vmatmul.f32.gmra.mxu0 %v2094
  %v2096 = vpop.f32.mrf.mxu0
  %v2097 = vadd.f32 %v1952, %v2096
  %v2098 = vand.u32 %v1414, 4294901760
  %2099 = vmatmul.f32.gmra.mxu0 %v2098
  %v2100 = vpop.f32.mrf.mxu0
  %v2101 = vadd.f32 %v1958, %v2100
  %v2102 = vand.u32 %v1415, 4294901760
  %2103 = vmatmul.f32.gmra.mxu0 %v2102
  %v2104 = vpop.f32.mrf.mxu0
  %v2105 = vadd.f32 %v1964, %v2104
  %v2106 = vand.u32 %v1416, 4294901760
  %2107 = vmatmul.f32.gmra.mxu0 %v2106
  %v2108 = vpop.f32.mrf.mxu0
  %v2109 = vadd.f32 %v1970, %v2108
  %v2110 = vand.u32 %v1417, 4294901760
  %2111 = vmatmul.f32.gmra.mxu0 %v2110
  %v2112 = vpop.f32.mrf.mxu0
  %v2113 = vadd.f32 %v1976, %v2112
  %v2114 = vand.u32 %v1418, 4294901760
  %2115 = vmatmul.f32.gmra.mxu0 %v2114
  %v2116 = vpop.f32.mrf.mxu0
  %v2117 = vadd.f32 %v1982, %v2116
  %v2118 = vand.u32 %v1419, 4294901760
  %2119 = vmatmul.f32.gmra.mxu0 %v2118
  %v2120 = vpop.f32.mrf.mxu0
  %v2121 = vadd.f32 %v1988, %v2120
  %v2122 = vand.u32 %v1420, 4294901760
  %2123 = vmatmul.f32.gmra.mxu0 %v2122
  %v2124 = vpop.f32.mrf.mxu0
  %v2125 = vadd.f32 %v1994, %v2124
  %v2126 = vand.u32 %v1421, 4294901760
  %2127 = vmatmul.f32.gmra.mxu0 %v2126
  %v2128 = vpop.f32.mrf.mxu0
  %v2129 = vadd.f32 %v2000, %v2128
  %2130 = vdwg.mxu0
  %v2131 = vand.u32 %v48, 4294901760
  %2132 = vmatpush.msra.mxu0 %v2131
  %v2133 = vand.u32 %v47, 4294901760
  %2134 = vmatpush.msra.mxu0 %v2133
  %v2135 = vand.u32 %v46, 4294901760
  %2136 = vmatpush.msra.mxu0 %v2135
  %v2137 = vand.u32 %v45, 4294901760
  %2138 = vmatpush.msra.mxu0 %v2137
  %v2139 = vand.u32 %v44, 4294901760
  %2140 = vmatpush.msra.mxu0 %v2139
  %v2141 = vand.u32 %v43, 4294901760
  %2142 = vmatpush.msra.mxu0 %v2141
  %v2143 = vand.u32 %v42, 4294901760
  %2144 = vmatpush.msra.mxu0 %v2143
  %v2145 = vand.u32 %v41, 4294901760
  %2146 = vmatpush.msra.mxu0 %v2145
  %v2147 = vand.u32 %v40, 4294901760
  %2148 = vmatpush.msra.mxu0 %v2147
  %v2149 = vand.u32 %v39, 4294901760
  %2150 = vmatpush.msra.mxu0 %v2149
  %v2151 = vand.u32 %v38, 4294901760
  %2152 = vmatpush.msra.mxu0 %v2151
  %v2153 = vand.u32 %v37, 4294901760
  %2154 = vmatpush.msra.mxu0 %v2153
  %v2155 = vand.u32 %v36, 4294901760
  %2156 = vmatpush.msra.mxu0 %v2155
  %v2157 = vand.u32 %v35, 4294901760
  %2158 = vmatpush.msra.mxu0 %v2157
  %v2159 = vand.u32 %v34, 4294901760
  %2160 = vmatpush.msra.mxu0 %v2159
  %v2161 = vand.u32 %v33, 4294901760
  %2162 = vmatpush.msra.mxu0 %v2161
  %v2163 = vand.u32 %v1406, 4294901760
  %2164 = vmatmul.f32.gmra.mxu0 %v2163
  %v2165 = vpop.f32.mrf.mxu0
  %v2166 = vadd.f32 %v2069, %v2165
  %v2167 = vand.u32 %v1407, 4294901760
  %2168 = vmatmul.f32.gmra.mxu0 %v2167
  %v2169 = vpop.f32.mrf.mxu0
  %v2170 = vadd.f32 %v2073, %v2169
  %v2171 = vand.u32 %v1408, 4294901760
  %2172 = vmatmul.f32.gmra.mxu0 %v2171
  %v2173 = vpop.f32.mrf.mxu0
  %v2174 = vadd.f32 %v2077, %v2173
  %v2175 = vand.u32 %v1409, 4294901760
  %2176 = vmatmul.f32.gmra.mxu0 %v2175
  %v2177 = vpop.f32.mrf.mxu0
  %v2178 = vadd.f32 %v2081, %v2177
  %v2179 = vand.u32 %v1410, 4294901760
  %2180 = vmatmul.f32.gmra.mxu0 %v2179
  %v2181 = vpop.f32.mrf.mxu0
  %v2182 = vadd.f32 %v2085, %v2181
  %v2183 = vand.u32 %v1411, 4294901760
  %2184 = vmatmul.f32.gmra.mxu0 %v2183
  %v2185 = vpop.f32.mrf.mxu0
  %v2186 = vadd.f32 %v2089, %v2185
  %v2187 = vand.u32 %v1412, 4294901760
  %2188 = vmatmul.f32.gmra.mxu0 %v2187
  %v2189 = vpop.f32.mrf.mxu0
  %v2190 = vadd.f32 %v2093, %v2189
  %v2191 = vand.u32 %v1413, 4294901760
  %2192 = vmatmul.f32.gmra.mxu0 %v2191
  %v2193 = vpop.f32.mrf.mxu0
  %v2194 = vadd.f32 %v2097, %v2193
  %v2195 = vand.u32 %v1414, 4294901760
  %2196 = vmatmul.f32.gmra.mxu0 %v2195
  %v2197 = vpop.f32.mrf.mxu0
  %v2198 = vadd.f32 %v2101, %v2197
  %v2199 = vand.u32 %v1415, 4294901760
  %2200 = vmatmul.f32.gmra.mxu0 %v2199
  %v2201 = vpop.f32.mrf.mxu0
  %v2202 = vadd.f32 %v2105, %v2201
  %v2203 = vand.u32 %v1416, 4294901760
  %2204 = vmatmul.f32.gmra.mxu0 %v2203
  %v2205 = vpop.f32.mrf.mxu0
  %v2206 = vadd.f32 %v2109, %v2205
  %v2207 = vand.u32 %v1417, 4294901760
  %2208 = vmatmul.f32.gmra.mxu0 %v2207
  %v2209 = vpop.f32.mrf.mxu0
  %v2210 = vadd.f32 %v2113, %v2209
  %v2211 = vand.u32 %v1418, 4294901760
  %2212 = vmatmul.f32.gmra.mxu0 %v2211
  %v2213 = vpop.f32.mrf.mxu0
  %v2214 = vadd.f32 %v2117, %v2213
  %v2215 = vand.u32 %v1419, 4294901760
  %2216 = vmatmul.f32.gmra.mxu0 %v2215
  %v2217 = vpop.f32.mrf.mxu0
  %v2218 = vadd.f32 %v2121, %v2217
  %v2219 = vand.u32 %v1420, 4294901760
  %2220 = vmatmul.f32.gmra.mxu0 %v2219
  %v2221 = vpop.f32.mrf.mxu0
  %v2222 = vadd.f32 %v2125, %v2221
  %v2223 = vand.u32 %v1421, 4294901760
  %2224 = vmatmul.f32.gmra.mxu0 %v2223
  %v2225 = vpop.f32.mrf.mxu0
  %v2226 = vadd.f32 %v2129, %v2225
  %2227 = vdwg.mxu0
  %2228 = vst.msk [vmem:[%s5] sm:$0xff] %vm50, %v2166
  %2229 = vst.msk [vmem:[%s5 + $0x8] sm:$0xff] %vm50, %v2170
  %2230 = vst.msk [vmem:[%s5 + $0x10] sm:$0xff] %vm50, %v2174
  %2231 = vst.msk [vmem:[%s5 + $0x18] sm:$0xff] %vm50, %v2178
  %2232 = vst.msk [vmem:[%s5 + $0x20] sm:$0xff] %vm50, %v2182
  %2233 = vst.msk [vmem:[%s5 + $0x28] sm:$0xff] %vm50, %v2186
  %2234 = vst.msk [vmem:[%s5 + $0x30] sm:$0xff] %vm50, %v2190
  %2235 = vst.msk [vmem:[%s5 + $0x38] sm:$0xff] %vm50, %v2194
  %2236 = vst.msk [vmem:[%s5 + $0x40] sm:$0xff] %vm50, %v2198
  %2237 = vst.msk [vmem:[%s5 + $0x48] sm:$0xff] %vm50, %v2202
  %2238 = vst.msk [vmem:[%s5 + $0x50] sm:$0xff] %vm50, %v2206
  %2239 = vst.msk [vmem:[%s5 + $0x58] sm:$0xff] %vm50, %v2210
  %2240 = vst.msk [vmem:[%s5 + $0x60] sm:$0xff] %vm50, %v2214
  %2241 = vst.msk [vmem:[%s5 + $0x68] sm:$0xff] %vm50, %v2218
  %2242 = vst.msk [vmem:[%s5 + $0x70] sm:$0xff] %vm50, %v2222
  %2243 = vst.msk [vmem:[%s5 + $0x78] sm:$0xff] %vm50, %v2226
  %v2244 = vcvt.s32.f32 %v1117
  %2245 = vmatpush.xpose.msra.mxu0 %v1421
  %2246 = vmatpush.xpose.msra.mxu0 %v1420
  %2247 = vmatpush.xpose.msra.mxu0 %v1419
  %2248 = vmatpush.xpose.msra.mxu0 %v1418
  %2249 = vmatpush.xpose.msra.mxu0 %v1417
  %2250 = vmatpush.xpose.msra.mxu0 %v1416
  %2251 = vmatpush.xpose.msra.mxu0 %v1415
  %2252 = vmatpush.xpose.msra.mxu0 %v1414
  %2253 = vmatpush.xpose.msra.mxu0 %v1413
  %2254 = vmatpush.xpose.msra.mxu0 %v1412
  %2255 = vmatpush.xpose.msra.mxu0 %v1411
  %2256 = vmatpush.xpose.msra.mxu0 %v1410
  %2257 = vmatpush.xpose.msra.mxu0 %v1409
  %2258 = vmatpush.xpose.msra.mxu0 %v1408
  %2259 = vmatpush.xpose.msra.mxu0 %v1407
  %2260 = vmatpush.xpose.msra.mxu0 %v1406
  %2261 = vmatmul.f32.gmra.mxu0 %v2244
  %v2262 = vpop.f32.mrf.mxu0
  %v2263 = vadd.f32 0.0, %v2262
  %2264 = vdwg.mxu0
  %v2265 = vcvt.f32.s32.to.zero.pseudo %v2263
  %2266 = vst [vmem:[%s4] sm:$0x1] %v2265
  %v2267 = vrsqrt.pop %v1068
  %v2268 = vmul.f32 %v2267, %v1068
  %v2269 = vmul.f32 %v2268, %v2267
  %v2270 = vmul.f32 0.5, %v2269
  %v2271 = vsub.f32 1.5, %v2270
  %v2272 = vmul.f32 %v2267, %v2271
  %v2273 = vmul.f32 %v1068, %v2272
  %vm2274 = vcmp.eq.f32.partialorder %v1068, inf
  %v2275 = vsel %vm2274, %v1068, %v2273
  %vm2276 = vcmp.eq.f32.partialorder %v1068, 0.0
  %v2277 = vand.u32 %v1068, 2147483648
  %v2278 = vsel %vm2276, %v2277, %v2275
  %v2279 = vrsqrt.pop %v1069
  %v2280 = vmul.f32 %v2279, %v1069
  %v2281 = vmul.f32 %v2280, %v2279
  %v2282 = vmul.f32 0.5, %v2281
  %v2283 = vsub.f32 1.5, %v2282
  %v2284 = vmul.f32 %v2279, %v2283
  %v2285 = vmul.f32 %v1069, %v2284
  %vm2286 = vcmp.eq.f32.partialorder %v1069, inf
  %v2287 = vsel %vm2286, %v1069, %v2285
  %vm2288 = vcmp.eq.f32.partialorder %v1069, 0.0
  %v2289 = vand.u32 %v1069, 2147483648
  %v2290 = vsel %vm2288, %v2289, %v2287
  %v2291 = vrsqrt.pop %v1070
  %v2292 = vmul.f32 %v2291, %v1070
  %v2293 = vmul.f32 %v2292, %v2291
  %v2294 = vmul.f32 0.5, %v2293
  %v2295 = vsub.f32 1.5, %v2294
  %v2296 = vmul.f32 %v2291, %v2295
  %v2297 = vmul.f32 %v1070, %v2296
  %vm2298 = vcmp.eq.f32.partialorder %v1070, inf
  %v2299 = vsel %vm2298, %v1070, %v2297
  %vm2300 = vcmp.eq.f32.partialorder %v1070, 0.0
  %v2301 = vand.u32 %v1070, 2147483648
  %v2302 = vsel %vm2300, %v2301, %v2299
  %v2303 = vrsqrt.pop %v1071
  %v2304 = vmul.f32 %v2303, %v1071
  %v2305 = vmul.f32 %v2304, %v2303
  %v2306 = vmul.f32 0.5, %v2305
  %v2307 = vsub.f32 1.5, %v2306
  %v2308 = vmul.f32 %v2303, %v2307
  %v2309 = vmul.f32 %v1071, %v2308
  %vm2310 = vcmp.eq.f32.partialorder %v1071, inf
  %v2311 = vsel %vm2310, %v1071, %v2309
  %vm2312 = vcmp.eq.f32.partialorder %v1071, 0.0
  %v2313 = vand.u32 %v1071, 2147483648
  %v2314 = vsel %vm2312, %v2313, %v2311
  %v2315 = vrsqrt.pop %v1072
  %v2316 = vmul.f32 %v2315, %v1072
  %v2317 = vmul.f32 %v2316, %v2315
  %v2318 = vmul.f32 0.5, %v2317
  %v2319 = vsub.f32 1.5, %v2318
  %v2320 = vmul.f32 %v2315, %v2319
  %v2321 = vmul.f32 %v1072, %v2320
  %vm2322 = vcmp.eq.f32.partialorder %v1072, inf
  %v2323 = vsel %vm2322, %v1072, %v2321
  %vm2324 = vcmp.eq.f32.partialorder %v1072, 0.0
  %v2325 = vand.u32 %v1072, 2147483648
  %v2326 = vsel %vm2324, %v2325, %v2323
  %v2327 = vrsqrt.pop %v1073
  %v2328 = vmul.f32 %v2327, %v1073
  %v2329 = vmul.f32 %v2328, %v2327
  %v2330 = vmul.f32 0.5, %v2329
  %v2331 = vsub.f32 1.5, %v2330
  %v2332 = vmul.f32 %v2327, %v2331
  %v2333 = vmul.f32 %v1073, %v2332
  %vm2334 = vcmp.eq.f32.partialorder %v1073, inf
  %v2335 = vsel %vm2334, %v1073, %v2333
  %vm2336 = vcmp.eq.f32.partialorder %v1073, 0.0
  %v2337 = vand.u32 %v1073, 2147483648
  %v2338 = vsel %vm2336, %v2337, %v2335
  %v2339 = vrsqrt.pop %v1074
  %v2340 = vmul.f32 %v2339, %v1074
  %v2341 = vmul.f32 %v2340, %v2339
  %v2342 = vmul.f32 0.5, %v2341
  %v2343 = vsub.f32 1.5, %v2342
  %v2344 = vmul.f32 %v2339, %v2343
  %v2345 = vmul.f32 %v1074, %v2344
  %vm2346 = vcmp.eq.f32.partialorder %v1074, inf
  %v2347 = vsel %vm2346, %v1074, %v2345
  %vm2348 = vcmp.eq.f32.partialorder %v1074, 0.0
  %v2349 = vand.u32 %v1074, 2147483648
  %v2350 = vsel %vm2348, %v2349, %v2347
  %v2351 = vrsqrt.pop %v1075
  %v2352 = vmul.f32 %v2351, %v1075
  %v2353 = vmul.f32 %v2352, %v2351
  %v2354 = vmul.f32 0.5, %v2353
  %v2355 = vsub.f32 1.5, %v2354
  %v2356 = vmul.f32 %v2351, %v2355
  %v2357 = vmul.f32 %v1075, %v2356
  %vm2358 = vcmp.eq.f32.partialorder %v1075, inf
  %v2359 = vsel %vm2358, %v1075, %v2357
  %vm2360 = vcmp.eq.f32.partialorder %v1075, 0.0
  %v2361 = vand.u32 %v1075, 2147483648
  %v2362 = vsel %vm2360, %v2361, %v2359
  %v2363 = vrsqrt.pop %v1076
  %v2364 = vmul.f32 %v2363, %v1076
  %v2365 = vmul.f32 %v2364, %v2363
  %v2366 = vmul.f32 0.5, %v2365
  %v2367 = vsub.f32 1.5, %v2366
  %v2368 = vmul.f32 %v2363, %v2367
  %v2369 = vmul.f32 %v1076, %v2368
  %vm2370 = vcmp.eq.f32.partialorder %v1076, inf
  %v2371 = vsel %vm2370, %v1076, %v2369
  %vm2372 = vcmp.eq.f32.partialorder %v1076, 0.0
  %v2373 = vand.u32 %v1076, 2147483648
  %v2374 = vsel %vm2372, %v2373, %v2371
  %v2375 = vrsqrt.pop %v1077
  %v2376 = vmul.f32 %v2375, %v1077
  %v2377 = vmul.f32 %v2376, %v2375
  %v2378 = vmul.f32 0.5, %v2377
  %v2379 = vsub.f32 1.5, %v2378
  %v2380 = vmul.f32 %v2375, %v2379
  %v2381 = vmul.f32 %v1077, %v2380
  %vm2382 = vcmp.eq.f32.partialorder %v1077, inf
  %v2383 = vsel %vm2382, %v1077, %v2381
  %vm2384 = vcmp.eq.f32.partialorder %v1077, 0.0
  %v2385 = vand.u32 %v1077, 2147483648
  %v2386 = vsel %vm2384, %v2385, %v2383
  %v2387 = vrsqrt.pop %v1078
  %v2388 = vmul.f32 %v2387, %v1078
  %v2389 = vmul.f32 %v2388, %v2387
  %v2390 = vmul.f32 0.5, %v2389
  %v2391 = vsub.f32 1.5, %v2390
  %v2392 = vmul.f32 %v2387, %v2391
  %v2393 = vmul.f32 %v1078, %v2392
  %vm2394 = vcmp.eq.f32.partialorder %v1078, inf
  %v2395 = vsel %vm2394, %v1078, %v2393
  %vm2396 = vcmp.eq.f32.partialorder %v1078, 0.0
  %v2397 = vand.u32 %v1078, 2147483648
  %v2398 = vsel %vm2396, %v2397, %v2395
  %v2399 = vrsqrt.pop %v1079
  %v2400 = vmul.f32 %v2399, %v1079
  %v2401 = vmul.f32 %v2400, %v2399
  %v2402 = vmul.f32 0.5, %v2401
  %v2403 = vsub.f32 1.5, %v2402
  %v2404 = vmul.f32 %v2399, %v2403
  %v2405 = vmul.f32 %v1079, %v2404
  %vm2406 = vcmp.eq.f32.partialorder %v1079, inf
  %v2407 = vsel %vm2406, %v1079, %v2405
  %vm2408 = vcmp.eq.f32.partialorder %v1079, 0.0
  %v2409 = vand.u32 %v1079, 2147483648
  %v2410 = vsel %vm2408, %v2409, %v2407
  %v2411 = vrsqrt.pop %v1080
  %v2412 = vmul.f32 %v2411, %v1080
  %v2413 = vmul.f32 %v2412, %v2411
  %v2414 = vmul.f32 0.5, %v2413
  %v2415 = vsub.f32 1.5, %v2414
  %v2416 = vmul.f32 %v2411, %v2415
  %v2417 = vmul.f32 %v1080, %v2416
  %vm2418 = vcmp.eq.f32.partialorder %v1080, inf
  %v2419 = vsel %vm2418, %v1080, %v2417
  %vm2420 = vcmp.eq.f32.partialorder %v1080, 0.0
  %v2421 = vand.u32 %v1080, 2147483648
  %v2422 = vsel %vm2420, %v2421, %v2419
  %v2423 = vrsqrt.pop %v1081
  %v2424 = vmul.f32 %v2423, %v1081
  %v2425 = vmul.f32 %v2424, %v2423
  %v2426 = vmul.f32 0.5, %v2425
  %v2427 = vsub.f32 1.5, %v2426
  %v2428 = vmul.f32 %v2423, %v2427
  %v2429 = vmul.f32 %v1081, %v2428
  %vm2430 = vcmp.eq.f32.partialorder %v1081, inf
  %v2431 = vsel %vm2430, %v1081, %v2429
  %vm2432 = vcmp.eq.f32.partialorder %v1081, 0.0
  %v2433 = vand.u32 %v1081, 2147483648
  %v2434 = vsel %vm2432, %v2433, %v2431
  %v2435 = vrsqrt.pop %v1082
  %v2436 = vmul.f32 %v2435, %v1082
  %v2437 = vmul.f32 %v2436, %v2435
  %v2438 = vmul.f32 0.5, %v2437
  %v2439 = vsub.f32 1.5, %v2438
  %v2440 = vmul.f32 %v2435, %v2439
  %v2441 = vmul.f32 %v1082, %v2440
  %vm2442 = vcmp.eq.f32.partialorder %v1082, inf
  %v2443 = vsel %vm2442, %v1082, %v2441
  %vm2444 = vcmp.eq.f32.partialorder %v1082, 0.0
  %v2445 = vand.u32 %v1082, 2147483648
  %v2446 = vsel %vm2444, %v2445, %v2443
  %v2447 = vrsqrt.pop %v1083
  %v2448 = vmul.f32 %v2447, %v1083
  %v2449 = vmul.f32 %v2448, %v2447
  %v2450 = vmul.f32 0.5, %v2449
  %v2451 = vsub.f32 1.5, %v2450
  %v2452 = vmul.f32 %v2447, %v2451
  %v2453 = vmul.f32 %v1083, %v2452
  %vm2454 = vcmp.eq.f32.partialorder %v1083, inf
  %v2455 = vsel %vm2454, %v1083, %v2453
  %vm2456 = vcmp.eq.f32.partialorder %v1083, 0.0
  %v2457 = vand.u32 %v1083, 2147483648
  %v2458 = vsel %vm2456, %v2457, %v2455
  %v2459 = vsub.f32 0.0, %v2278
  %v2460 = vsub.f32 0.0, %v2290
  %v2461 = vsub.f32 0.0, %v2302
  %v2462 = vsub.f32 0.0, %v2314
  %v2463 = vsub.f32 0.0, %v2326
  %v2464 = vsub.f32 0.0, %v2338
  %v2465 = vsub.f32 0.0, %v2350
  %v2466 = vsub.f32 0.0, %v2362
  %v2467 = vsub.f32 0.0, %v2374
  %v2468 = vsub.f32 0.0, %v2386
  %v2469 = vsub.f32 0.0, %v2398
  %v2470 = vsub.f32 0.0, %v2410
  %v2471 = vsub.f32 0.0, %v2422
  %v2472 = vsub.f32 0.0, %v2434
  %v2473 = vsub.f32 0.0, %v2446
  %v2474 = vsub.f32 0.0, %v2458
  %2475 = vst [vmem:[%s3] sm:$0xff] %v2459
  %2476 = vst [vmem:[%s3 + $0x8] sm:$0xff] %v2460
  %2477 = vst [vmem:[%s3 + $0x10] sm:$0xff] %v2461
  %2478 = vst [vmem:[%s3 + $0x18] sm:$0xff] %v2462
  %2479 = vst [vmem:[%s3 + $0x20] sm:$0xff] %v2463
  %2480 = vst [vmem:[%s3 + $0x28] sm:$0xff] %v2464
  %2481 = vst [vmem:[%s3 + $0x30] sm:$0xff] %v2465
  %2482 = vst [vmem:[%s3 + $0x38] sm:$0xff] %v2466
  %2483 = vst [vmem:[%s3 + $0x40] sm:$0xff] %v2467
  %2484 = vst [vmem:[%s3 + $0x48] sm:$0xff] %v2468
  %2485 = vst [vmem:[%s3 + $0x50] sm:$0xff] %v2469
  %2486 = vst [vmem:[%s3 + $0x58] sm:$0xff] %v2470
  %2487 = vst [vmem:[%s3 + $0x60] sm:$0xff] %v2471
  %2488 = vst [vmem:[%s3 + $0x68] sm:$0xff] %v2472
  %2489 = vst [vmem:[%s3 + $0x70] sm:$0xff] %v2473
  %2490 = vst [vmem:[%s3 + $0x78] sm:$0xff] %v2474
  // Predicated region
  $region14: #{euclidean_codebook_forward.1} parent=0 // pred_check
    _
  $region15: #{euclidean_codebook_forward.1} parent=0 // pred_check_branch
    %2492 = sbr.rel (0) target = $region17
  $region16: #{euclidean_codebook_forward.1} parent=0 // pred_region
    _
  $region17: #{euclidean_codebook_forward.1} parent=0 // pred_fallthru
    _
  // Predicated region
  $region18: #{euclidean_codebook_forward.1} parent=0 // pred_check
    _
  $region19: #{euclidean_codebook_forward.1} parent=0 // pred_check_branch
    %2494 = sbr.rel (0) target = $region21
  $region20: #{euclidean_codebook_forward.1} parent=0 // pred_region
    _
  $region21: #{euclidean_codebook_forward.1} parent=0 // pred_fallthru
    _
  // Predicated region
  $region22: #{euclidean_codebook_forward.1} parent=0 // pred_check
    _
  $region23: #{euclidean_codebook_forward.1} parent=0 // pred_check_branch
    %2496 = sbr.rel (0) target = $region25
  $region24: #{euclidean_codebook_forward.1} parent=0 // pred_region
    _
  $region25: #{euclidean_codebook_forward.1} parent=0 // pred_fallthru
    _
  // Predicated region
  $region26: #{euclidean_codebook_forward.1} parent=0 // pred_check
    _
  $region27: #{euclidean_codebook_forward.1} parent=0 // pred_check_branch
    %2498 = sbr.rel (0) target = $region29
  $region28: #{euclidean_codebook_forward.1} parent=0 // pred_region
    _
  $region29: #{euclidean_codebook_forward.1} parent=0 // pred_fallthru
    _
  // Predicated region
  $region30: #{euclidean_codebook_forward.1} parent=0 // pred_check
    _
  $region31: #{euclidean_codebook_forward.1} parent=0 // pred_check_branch
    %2500 = sbr.rel (0) target = $region33
  $region32: #{euclidean_codebook_forward.1} parent=0 // pred_region
    _
  $region33: #{euclidean_codebook_forward.1} parent=0 // pred_fallthru
    _
  // Predicated region
  $region34: #{euclidean_codebook_forward.1} parent=0 // pred_check
    _
  $region35: #{euclidean_codebook_forward.1} parent=0 // pred_check_branch
    %2502 = sbr.rel (0) target = $region37
  $region36: #{euclidean_codebook_forward.1} parent=0 // pred_region
    _
  $region37: #{euclidean_codebook_forward.1} parent=0 // pred_fallthru
    _

</llo_original>
